<compile_context>
chip_gen: v7x
topology: tpu7x:2x2x1
jax: 0.10.0
libtpu: 0.0.40
codegen_flags: <defaults>
</compile_context>

<pallas_src>
import functools

import jax
import jax.numpy as jnp
from jax.experimental import pallas as pl
from jax.experimental.pallas import tpu as pltpu


# --------------------------------------------------------------------------
# One att_block (MHA + residual + LN + FFN + residual + LN) on VMEM values.
# --------------------------------------------------------------------------
def _att_block(x_q, x_k, mask_zero, w_refs, E, H):
    """x_q: (Tq, E), x_k: (Tk, E), mask_zero: broadcastable to (Tq, Tk)."""
    (wq_ref, wkv_ref, wo_ref, bo_ref, ln1g_ref, ln1b_ref,
     w1_ref, b1_ref, w2_ref, b2_ref, ln2g_ref, ln2b_ref) = w_refs

    HE = H * E
    # fold the two E**-0.25 scalings (on q and k) into one E**-0.5 on q_all
    scale = jnp.float32(E) ** jnp.float32(-0.5)

    # Fused full-width projections (lane dims 128 / 256 -> fill the MXU).
    q_all = jnp.dot(x_q, wq_ref[...],
                    preferred_element_type=jnp.float32) * scale        # (Tq, HE)
    kv_all = jnp.dot(x_k, wkv_ref[...],
                     preferred_element_type=jnp.float32)               # (Tk, 2*HE)
    k_all = kv_all[:, :HE]                                             # (Tk, HE)
    v_all = kv_all[:, HE:]                                             # (Tk, HE)

    neg_big = jnp.float32(-1e9)
    head_outs = []
    for h in range(H):                       # static, small H
        qh = q_all[:, h * E:(h + 1) * E]     # (Tq, E)
        kh = k_all[:, h * E:(h + 1) * E]     # (Tk, E)
        vh = v_all[:, h * E:(h + 1) * E]     # (Tk, E)

        # scores = qh @ kh^T without materializing the transpose
        s = jax.lax.dot_general(qh, kh, (((1,), (1,)), ((), ())),
                                preferred_element_type=jnp.float32)    # (Tq, Tk)
        s = jnp.where(mask_zero, neg_big, s)                           # masked_fill

        # softmax over keys
        s = s - jnp.max(s, axis=-1, keepdims=True)
        p = jnp.exp(s)
        p = p * pl.reciprocal(jnp.sum(p, axis=-1, keepdims=True), approx=True)

        head_outs.append(jnp.dot(p, vh, preferred_element_type=jnp.float32))

    # unify heads: one (Tq, HE) x (HE, E) matmul
    att = jnp.dot(jnp.concatenate(head_outs, axis=-1), wo_ref[...],
                  preferred_element_type=jnp.float32) + bo_ref[...]    # (Tq, E)

    # residual + LayerNorm 1 (eps = 1e-5, PyTorch default)
    x = x_q + att
    mean = jnp.mean(x, axis=-1, keepdims=True)
    var = jnp.mean((x - mean) ** 2, axis=-1, keepdims=True)
    x = (x - mean) * jax.lax.rsqrt(var + 1e-5)
    x = x * ln1g_ref[...] + ln1b_ref[...]

    # feed-forward: Linear -> ReLU -> Linear
    hdd = jnp.dot(x, w1_ref[...], preferred_element_type=jnp.float32) + b1_ref[...]
    hdd = jnp.maximum(hdd, 0.0)
    ff = jnp.dot(hdd, w2_ref[...], preferred_element_type=jnp.float32) + b2_ref[...]

    # residual + LayerNorm 2
    y = x + ff
    mean2 = jnp.mean(y, axis=-1, keepdims=True)
    var2 = jnp.mean((y - mean2) ** 2, axis=-1, keepdims=True)
    y = (y - mean2) * jax.lax.rsqrt(var2 + 1e-5)
    return y * ln2g_ref[...] + ln2b_ref[...]


# --------------------------------------------------------------------------
# Fused kernel: self att_block on embs, then cross att_block (q=task, k=embs')
# for one batch element.
# --------------------------------------------------------------------------
def transformer_kernel(embs_ref, task_ref, mcol_ref, mrow_ref, *rest,
                       heads: int, emb_dim: int):
    self_w = rest[0:12]
    cross_w = rest[12:24]
    o_ref = rest[24]

    E, H = emb_dim, heads

    embs = embs_ref[0]          # (Te, E)
    task = task_ref[0]          # (Tt, E)
    mcol = mcol_ref[0]          # (Te, 1)  mask as column
    mrow = mrow_ref[0]          # (1, Te)  mask as lane-dense row

    # Hoisted mask predicates (exact masked_fill semantics preserved).
    mask1_zero = (mcol * mrow) == 0.0       # (Te, Te)  self block: mask_q=mask_k=mask
    mask2_zero = mrow == 0.0                # (1, Te)   cross block: mask_q=None(ones)

    # Stage 1: self_att1(q=embs, k=embs, mask_q=mask, mask_k=mask)
    embs1 = _att_block(embs, embs, mask1_zero, self_w, E, H)           # (Te, E)
    # Stage 2: cross_att2(q=task, k=embs1, mask_q=None, mask_k=mask)
    out = _att_block(task, embs1, mask2_zero, cross_w, E, H)           # (Tt, E)

    o_ref[0] = out.astype(o_ref.dtype)


# --------------------------------------------------------------------------
# Wrapper
# --------------------------------------------------------------------------
def _full_spec(shape):
    nd = len(shape)
    return pl.BlockSpec(shape, lambda b, _nd=nd: (0,) * _nd)


def transformer_forward(embs, task, mask, params_self, params_cross, heads):
    """Transformer_v1_without_first_cab.forward"""
    B, Te, E = embs.shape
    _, Tt, _ = task.shape

    if mask is None:
        mask = jnp.ones((B, Te, 1), jnp.float32)
    mask_col = mask.astype(jnp.float32)              # (B, Te, 1)
    mask_row = jnp.swapaxes(mask_col, 1, 2)          # (B, 1, Te) lane-dense

    def pack(p):
        wkv = jnp.concatenate([p["wk"], p["wv"]], axis=1)   # (E, 2*H*E)
        return [p["wq"], wkv, p["wo"], p["bo"], p["ln1_g"], p["ln1_b"],
                p["w1"], p["b1"], p["w2"], p["b2"], p["ln2_g"], p["ln2_b"]]

    weights = pack(params_self) + pack(params_cross)

    in_specs = [
        pl.BlockSpec((1, Te, E), lambda b: (b, 0, 0)),
        pl.BlockSpec((1, Tt, E), lambda b: (b, 0, 0)),
        pl.BlockSpec((1, Te, 1), lambda b: (b, 0, 0)),
        pl.BlockSpec((1, 1, Te), lambda b: (b, 0, 0)),
    ] + [_full_spec(w.shape) for w in weights]

    out_spec = pl.BlockSpec((1, Tt, E), lambda b: (b, 0, 0))

    kernel = functools.partial(transformer_kernel, heads=heads, emb_dim=E)

    return pl.pallas_call(
        kernel,
        out_shape=jax.ShapeDtypeStruct((B, Tt, E), jnp.float32),
        grid_spec=pltpu.PrefetchScalarGridSpec(
            num_scalar_prefetch=0,
            grid=(B,),
            in_specs=in_specs,
            out_specs=out_spec,
        ),
        compiler_params=pltpu.CompilerParams(
            dimension_semantics=("parallel",)),
    )(embs, task, mask_col, mask_row, *weights)


# --------------------------------------------------------------------------
# Deterministic parameter init (synthetic; shapes match the PyTorch module)
# --------------------------------------------------------------------------
def init_att_block_params(key, emb_dim, heads, ff_hidden_mult):
    F_dim = ff_hidden_mult * emb_dim
    ks = jax.random.split(key, 6)

    def w(k, shape, fan_in):
        return jax.random.normal(k, shape, jnp.float32) / jnp.sqrt(fan_in)

    return dict(
        wq=w(ks[0], (emb_dim, emb_dim * heads), emb_dim),
        wk=w(ks[1], (emb_dim, emb_dim * heads), emb_dim),
        wv=w(ks[2], (emb_dim, emb_dim * heads), emb_dim),
        wo=w(ks[3], (emb_dim * heads, emb_dim), emb_dim * heads),
        bo=jnp.zeros((1, emb_dim), jnp.float32),
        ln1_g=jnp.ones((1, emb_dim), jnp.float32),
        ln1_b=jnp.zeros((1, emb_dim), jnp.float32),
        w1=w(ks[4], (emb_dim, F_dim), emb_dim),
        b1=jnp.zeros((1, F_dim), jnp.float32),
        w2=w(ks[5], (F_dim, emb_dim), F_dim),
        b2=jnp.zeros((1, emb_dim), jnp.float32),
        ln2_g=jnp.ones((1, emb_dim), jnp.float32),
        ln2_b=jnp.zeros((1, emb_dim), jnp.float32),
    )


# --------------------------------------------------------------------------
if __name__ == "__main__":
    B = 2          # batch
    Te = 16        # embs sequence length
    Tt = 8         # task sequence length
    EMB = 32       # emb_dim
    HEADS = 4      # heads  (H*E = 128 -> full MXU lane width)
    FF_MULT = 2    # ff_hidden_mult

    key = jax.random.PRNGKey(0)
    k_embs, k_task, k_self, k_cross = jax.random.split(key, 4)

    embs = jax.random.normal(k_embs, (B, Te, EMB), jnp.float32)
    task = jax.random.normal(k_task, (B, Tt, EMB), jnp.float32)

    # mask: last embs position masked out (exercises masked_fill path)
    mask = jnp.ones((B, Te, 1), jnp.float32).at[:, -1, :].set(0.0)

    params_self = init_att_block_params(k_self, EMB, HEADS, FF_MULT)
    params_cross = init_att_block_params(k_cross, EMB, HEADS, FF_MULT)

    out = transformer_forward(embs, task, mask, params_self, params_cross, HEADS)
    out = jax.block_until_ready(out)

    assert out.shape == (B, Tt, EMB)
    assert bool(jnp.all(jnp.isfinite(out)))
    print("KERNEL_OK")
</pallas_src>

<mosaic_0001>
module attributes {stable_mosaic.version = 11 : i64} {
  func.func @transformer_kernel(%arg0: i32, %arg1: memref<1x16x32xf32, #tpu.memory_space<vmem>>, %arg2: memref<1x8x32xf32, #tpu.memory_space<vmem>>, %arg3: memref<1x16x1xf32, #tpu.memory_space<vmem>>, %arg4: memref<1x1x16xf32, #tpu.memory_space<vmem>>, %arg5: memref<32x128xf32, #tpu.memory_space<vmem>>, %arg6: memref<32x256xf32, #tpu.memory_space<vmem>>, %arg7: memref<128x32xf32, #tpu.memory_space<vmem>>, %arg8: memref<1x32xf32, #tpu.memory_space<vmem>>, %arg9: memref<1x32xf32, #tpu.memory_space<vmem>>, %arg10: memref<1x32xf32, #tpu.memory_space<vmem>>, %arg11: memref<32x64xf32, #tpu.memory_space<vmem>>, %arg12: memref<1x64xf32, #tpu.memory_space<vmem>>, %arg13: memref<64x32xf32, #tpu.memory_space<vmem>>, %arg14: memref<1x32xf32, #tpu.memory_space<vmem>>, %arg15: memref<1x32xf32, #tpu.memory_space<vmem>>, %arg16: memref<1x32xf32, #tpu.memory_space<vmem>>, %arg17: memref<32x128xf32, #tpu.memory_space<vmem>>, %arg18: memref<32x256xf32, #tpu.memory_space<vmem>>, %arg19: memref<128x32xf32, #tpu.memory_space<vmem>>, %arg20: memref<1x32xf32, #tpu.memory_space<vmem>>, %arg21: memref<1x32xf32, #tpu.memory_space<vmem>>, %arg22: memref<1x32xf32, #tpu.memory_space<vmem>>, %arg23: memref<32x64xf32, #tpu.memory_space<vmem>>, %arg24: memref<1x64xf32, #tpu.memory_space<vmem>>, %arg25: memref<64x32xf32, #tpu.memory_space<vmem>>, %arg26: memref<1x32xf32, #tpu.memory_space<vmem>>, %arg27: memref<1x32xf32, #tpu.memory_space<vmem>>, %arg28: memref<1x32xf32, #tpu.memory_space<vmem>>, %arg29: memref<1x8x32xf32, #tpu.memory_space<vmem>>) attributes {dimension_semantics = [#tpu.dimension_semantics<parallel>], iteration_bounds = array<i64: 2>, scalar_prefetch = 0 : i64, scratch_operands = 0 : i64, tpu.core_type = #tpu.core_type<tc>, window_params = [{transform_indices = @transform_0, window_bounds = array<i64: 1, 16, 32>}, {transform_indices = @transform_1, window_bounds = array<i64: 1, 8, 32>}, {transform_indices = @transform_2, window_bounds = array<i64: 1, 16, 1>}, {transform_indices = @transform_3, window_bounds = array<i64: 1, 1, 16>}, {pipeline_mode = #tpu.pipeline_mode<synchronous>, transform_indices = @transform_4, window_bounds = array<i64: 32, 128>}, {pipeline_mode = #tpu.pipeline_mode<synchronous>, transform_indices = @transform_5, window_bounds = array<i64: 32, 256>}, {pipeline_mode = #tpu.pipeline_mode<synchronous>, transform_indices = @transform_6, window_bounds = array<i64: 128, 32>}, {pipeline_mode = #tpu.pipeline_mode<synchronous>, transform_indices = @transform_7, window_bounds = array<i64: 1, 32>}, {pipeline_mode = #tpu.pipeline_mode<synchronous>, transform_indices = @transform_8, window_bounds = array<i64: 1, 32>}, {pipeline_mode = #tpu.pipeline_mode<synchronous>, transform_indices = @transform_9, window_bounds = array<i64: 1, 32>}, {pipeline_mode = #tpu.pipeline_mode<synchronous>, transform_indices = @transform_10, window_bounds = array<i64: 32, 64>}, {pipeline_mode = #tpu.pipeline_mode<synchronous>, transform_indices = @transform_11, window_bounds = array<i64: 1, 64>}, {pipeline_mode = #tpu.pipeline_mode<synchronous>, transform_indices = @transform_12, window_bounds = array<i64: 64, 32>}, {pipeline_mode = #tpu.pipeline_mode<synchronous>, transform_indices = @transform_13, window_bounds = array<i64: 1, 32>}, {pipeline_mode = #tpu.pipeline_mode<synchronous>, transform_indices = @transform_14, window_bounds = array<i64: 1, 32>}, {pipeline_mode = #tpu.pipeline_mode<synchronous>, transform_indices = @transform_15, window_bounds = array<i64: 1, 32>}, {pipeline_mode = #tpu.pipeline_mode<synchronous>, transform_indices = @transform_16, window_bounds = array<i64: 32, 128>}, {pipeline_mode = #tpu.pipeline_mode<synchronous>, transform_indices = @transform_17, window_bounds = array<i64: 32, 256>}, {pipeline_mode = #tpu.pipeline_mode<synchronous>, transform_indices = @transform_18, window_bounds = array<i64: 128, 32>}, {pipeline_mode = #tpu.pipeline_mode<synchronous>, transform_indices = @transform_19, window_bounds = array<i64: 1, 32>}, {pipeline_mode = #tpu.pipeline_mode<synchronous>, transform_indices = @transform_20, window_bounds = array<i64: 1, 32>}, {pipeline_mode = #tpu.pipeline_mode<synchronous>, transform_indices = @transform_21, window_bounds = array<i64: 1, 32>}, {pipeline_mode = #tpu.pipeline_mode<synchronous>, transform_indices = @transform_22, window_bounds = array<i64: 32, 64>}, {pipeline_mode = #tpu.pipeline_mode<synchronous>, transform_indices = @transform_23, window_bounds = array<i64: 1, 64>}, {pipeline_mode = #tpu.pipeline_mode<synchronous>, transform_indices = @transform_24, window_bounds = array<i64: 64, 32>}, {pipeline_mode = #tpu.pipeline_mode<synchronous>, transform_indices = @transform_25, window_bounds = array<i64: 1, 32>}, {pipeline_mode = #tpu.pipeline_mode<synchronous>, transform_indices = @transform_26, window_bounds = array<i64: 1, 32>}, {pipeline_mode = #tpu.pipeline_mode<synchronous>, transform_indices = @transform_27, window_bounds = array<i64: 1, 32>}, {transform_indices = @transform_28, window_bounds = array<i64: 1, 8, 32>}]} {
    %c0 = arith.constant 0 : index
    %c0_0 = arith.constant 0 : index
    %c0_1 = arith.constant 0 : index
    %0 = vector.load %arg1[%c0, %c0_0, %c0_1] : memref<1x16x32xf32, #tpu.memory_space<vmem>>, vector<1x16x32xf32>
    %1 = vector.shape_cast %0 : vector<1x16x32xf32> to vector<16x32xf32>
    %c0_2 = arith.constant 0 : index
    %c0_3 = arith.constant 0 : index
    %c0_4 = arith.constant 0 : index
    %2 = vector.load %arg2[%c0_2, %c0_3, %c0_4] : memref<1x8x32xf32, #tpu.memory_space<vmem>>, vector<1x8x32xf32>
    %3 = vector.shape_cast %2 : vector<1x8x32xf32> to vector<8x32xf32>
    %c0_5 = arith.constant 0 : index
    %c0_6 = arith.constant 0 : index
    %c0_7 = arith.constant 0 : index
    %4 = vector.load %arg3[%c0_5, %c0_6, %c0_7] : memref<1x16x1xf32, #tpu.memory_space<vmem>>, vector<1x16x1xf32>
    %5 = vector.shape_cast %4 : vector<1x16x1xf32> to vector<16x1xf32>
    %c0_8 = arith.constant 0 : index
    %c0_9 = arith.constant 0 : index
    %c0_10 = arith.constant 0 : index
    %6 = vector.load %arg4[%c0_8, %c0_9, %c0_10] : memref<1x1x16xf32, #tpu.memory_space<vmem>>, vector<1x1x16xf32>
    %7 = vector.shape_cast %6 : vector<1x1x16xf32> to vector<1x16xf32>
    %8 = vector.broadcast %5 : vector<16x1xf32> to vector<16x16xf32>
    %9 = vector.broadcast %7 : vector<1x16xf32> to vector<16x16xf32>
    %10 = arith.mulf %8, %9 : vector<16x16xf32>
    %cst = arith.constant 0.000000e+00 : f32
    %11 = vector.broadcast %cst : f32 to vector<16x16xf32>
    %12 = arith.cmpf oeq, %10, %11 : vector<16x16xf32>
    %cst_11 = arith.constant 0.000000e+00 : f32
    %13 = vector.broadcast %cst_11 : f32 to vector<1x16xf32>
    %14 = arith.cmpf oeq, %7, %13 : vector<1x16xf32>
    %cst_12 = arith.constant 3.200000e+01 : f32
    %cst_13 = arith.constant -5.000000e-01 : f32
    %15 = math.powf %cst_12, %cst_13 : f32
    %c0_14 = arith.constant 0 : index
    %c0_15 = arith.constant 0 : index
    %16 = vector.load %arg5[%c0_14, %c0_15] : memref<32x128xf32, #tpu.memory_space<vmem>>, vector<32x128xf32>
    %cst_16 = arith.constant dense<0.000000e+00> : vector<16x128xf32>
    %17 = tpu.matmul %1, %16, %cst_16 {dimension_numbers = #tpu.dot_dimension_numbers<[1], [0], [0], [1], [0, 0, 1, 1], [], []>} : vector<16x32xf32>, vector<32x128xf32>, vector<16x128xf32> -> vector<16x128xf32>
    %18 = vector.broadcast %15 : f32 to vector<16x128xf32>
    %19 = arith.mulf %17, %18 : vector<16x128xf32>
    %c0_17 = arith.constant 0 : index
    %c0_18 = arith.constant 0 : index
    %20 = vector.load %arg6[%c0_17, %c0_18] : memref<32x256xf32, #tpu.memory_space<vmem>>, vector<32x256xf32>
    %cst_19 = arith.constant dense<0.000000e+00> : vector<16x256xf32>
    %21 = tpu.matmul %1, %20, %cst_19 {dimension_numbers = #tpu.dot_dimension_numbers<[1], [0], [0], [1], [0, 0, 1, 1], [], []>} : vector<16x32xf32>, vector<32x256xf32>, vector<16x256xf32> -> vector<16x256xf32>
    %22 = vector.extract_strided_slice %21 {offsets = [0, 0], sizes = [16, 128], strides = [1, 1]} : vector<16x256xf32> to vector<16x128xf32>
    %23 = vector.extract_strided_slice %21 {offsets = [0, 128], sizes = [16, 128], strides = [1, 1]} : vector<16x256xf32> to vector<16x128xf32>
    %24 = vector.extract_strided_slice %19 {offsets = [0, 0], sizes = [16, 32], strides = [1, 1]} : vector<16x128xf32> to vector<16x32xf32>
    %25 = vector.extract_strided_slice %22 {offsets = [0, 0], sizes = [16, 32], strides = [1, 1]} : vector<16x128xf32> to vector<16x32xf32>
    %26 = vector.extract_strided_slice %23 {offsets = [0, 0], sizes = [16, 32], strides = [1, 1]} : vector<16x128xf32> to vector<16x32xf32>
    %cst_20 = arith.constant dense<0.000000e+00> : vector<16x16xf32>
    %27 = tpu.matmul %24, %25, %cst_20 {dimension_numbers = #tpu.dot_dimension_numbers<[1], [1], [0], [0], [0, 0, 1, 0], [], []>} : vector<16x32xf32>, vector<16x32xf32>, vector<16x16xf32> -> vector<16x16xf32>
    %cst_21 = arith.constant -1.000000e+09 : f32
    %28 = vector.broadcast %cst_21 : f32 to vector<16x16xf32>
    %29 = arith.select %12, %28, %27 : vector<16x16xi1>, vector<16x16xf32>
    %cst_22 = arith.constant dense<0xFF800000> : vector<16xf32>
    %30 = vector.multi_reduction <maximumf>, %29, %cst_22 [1] : vector<16x16xf32> to vector<16xf32>
    %31 = vector.shape_cast %30 : vector<16xf32> to vector<16x1xf32>
    %32 = vector.broadcast %31 : vector<16x1xf32> to vector<16x16xf32>
    %33 = arith.subf %29, %32 : vector<16x16xf32>
    %34 = math.exp %33 : vector<16x16xf32>
    %cst_23 = arith.constant dense<0.000000e+00> : vector<16xf32>
    %35 = vector.multi_reduction <add>, %34, %cst_23 [1] : vector<16x16xf32> to vector<16xf32>
    %36 = vector.shape_cast %35 : vector<16xf32> to vector<16x1xf32>
    %37 = tpu.reciprocal %36 {approx = true} : vector<16x1xf32> -> vector<16x1xf32>
    %38 = vector.broadcast %37 : vector<16x1xf32> to vector<16x16xf32>
    %39 = arith.mulf %34, %38 : vector<16x16xf32>
    %cst_24 = arith.constant dense<0.000000e+00> : vector<16x32xf32>
    %40 = tpu.matmul %39, %26, %cst_24 {dimension_numbers = #tpu.dot_dimension_numbers<[1], [0], [0], [1], [0, 0, 1, 1], [], []>} : vector<16x16xf32>, vector<16x32xf32>, vector<16x32xf32> -> vector<16x32xf32>
    %41 = vector.extract_strided_slice %19 {offsets = [0, 32], sizes = [16, 32], strides = [1, 1]} : vector<16x128xf32> to vector<16x32xf32>
    %42 = vector.extract_strided_slice %22 {offsets = [0, 32], sizes = [16, 32], strides = [1, 1]} : vector<16x128xf32> to vector<16x32xf32>
    %43 = vector.extract_strided_slice %23 {offsets = [0, 32], sizes = [16, 32], strides = [1, 1]} : vector<16x128xf32> to vector<16x32xf32>
    %cst_25 = arith.constant dense<0.000000e+00> : vector<16x16xf32>
    %44 = tpu.matmul %41, %42, %cst_25 {dimension_numbers = #tpu.dot_dimension_numbers<[1], [1], [0], [0], [0, 0, 1, 0], [], []>} : vector<16x32xf32>, vector<16x32xf32>, vector<16x16xf32> -> vector<16x16xf32>
    %cst_26 = arith.constant -1.000000e+09 : f32
    %45 = vector.broadcast %cst_26 : f32 to vector<16x16xf32>
    %46 = arith.select %12, %45, %44 : vector<16x16xi1>, vector<16x16xf32>
    %cst_27 = arith.constant dense<0xFF800000> : vector<16xf32>
    %47 = vector.multi_reduction <maximumf>, %46, %cst_27 [1] : vector<16x16xf32> to vector<16xf32>
    %48 = vector.shape_cast %47 : vector<16xf32> to vector<16x1xf32>
    %49 = vector.broadcast %48 : vector<16x1xf32> to vector<16x16xf32>
    %50 = arith.subf %46, %49 : vector<16x16xf32>
    %51 = math.exp %50 : vector<16x16xf32>
    %cst_28 = arith.constant dense<0.000000e+00> : vector<16xf32>
    %52 = vector.multi_reduction <add>, %51, %cst_28 [1] : vector<16x16xf32> to vector<16xf32>
    %53 = vector.shape_cast %52 : vector<16xf32> to vector<16x1xf32>
    %54 = tpu.reciprocal %53 {approx = true} : vector<16x1xf32> -> vector<16x1xf32>
    %55 = vector.broadcast %54 : vector<16x1xf32> to vector<16x16xf32>
    %56 = arith.mulf %51, %55 : vector<16x16xf32>
    %cst_29 = arith.constant dense<0.000000e+00> : vector<16x32xf32>
    %57 = tpu.matmul %56, %43, %cst_29 {dimension_numbers = #tpu.dot_dimension_numbers<[1], [0], [0], [1], [0, 0, 1, 1], [], []>} : vector<16x16xf32>, vector<16x32xf32>, vector<16x32xf32> -> vector<16x32xf32>
    %58 = vector.extract_strided_slice %19 {offsets = [0, 64], sizes = [16, 32], strides = [1, 1]} : vector<16x128xf32> to vector<16x32xf32>
    %59 = vector.extract_strided_slice %22 {offsets = [0, 64], sizes = [16, 32], strides = [1, 1]} : vector<16x128xf32> to vector<16x32xf32>
    %60 = vector.extract_strided_slice %23 {offsets = [0, 64], sizes = [16, 32], strides = [1, 1]} : vector<16x128xf32> to vector<16x32xf32>
    %cst_30 = arith.constant dense<0.000000e+00> : vector<16x16xf32>
    %61 = tpu.matmul %58, %59, %cst_30 {dimension_numbers = #tpu.dot_dimension_numbers<[1], [1], [0], [0], [0, 0, 1, 0], [], []>} : vector<16x32xf32>, vector<16x32xf32>, vector<16x16xf32> -> vector<16x16xf32>
    %cst_31 = arith.constant -1.000000e+09 : f32
    %62 = vector.broadcast %cst_31 : f32 to vector<16x16xf32>
    %63 = arith.select %12, %62, %61 : vector<16x16xi1>, vector<16x16xf32>
    %cst_32 = arith.constant dense<0xFF800000> : vector<16xf32>
    %64 = vector.multi_reduction <maximumf>, %63, %cst_32 [1] : vector<16x16xf32> to vector<16xf32>
    %65 = vector.shape_cast %64 : vector<16xf32> to vector<16x1xf32>
    %66 = vector.broadcast %65 : vector<16x1xf32> to vector<16x16xf32>
    %67 = arith.subf %63, %66 : vector<16x16xf32>
    %68 = math.exp %67 : vector<16x16xf32>
    %cst_33 = arith.constant dense<0.000000e+00> : vector<16xf32>
    %69 = vector.multi_reduction <add>, %68, %cst_33 [1] : vector<16x16xf32> to vector<16xf32>
    %70 = vector.shape_cast %69 : vector<16xf32> to vector<16x1xf32>
    %71 = tpu.reciprocal %70 {approx = true} : vector<16x1xf32> -> vector<16x1xf32>
    %72 = vector.broadcast %71 : vector<16x1xf32> to vector<16x16xf32>
    %73 = arith.mulf %68, %72 : vector<16x16xf32>
    %cst_34 = arith.constant dense<0.000000e+00> : vector<16x32xf32>
    %74 = tpu.matmul %73, %60, %cst_34 {dimension_numbers = #tpu.dot_dimension_numbers<[1], [0], [0], [1], [0, 0, 1, 1], [], []>} : vector<16x16xf32>, vector<16x32xf32>, vector<16x32xf32> -> vector<16x32xf32>
    %75 = vector.extract_strided_slice %19 {offsets = [0, 96], sizes = [16, 32], strides = [1, 1]} : vector<16x128xf32> to vector<16x32xf32>
    %76 = vector.extract_strided_slice %22 {offsets = [0, 96], sizes = [16, 32], strides = [1, 1]} : vector<16x128xf32> to vector<16x32xf32>
    %77 = vector.extract_strided_slice %23 {offsets = [0, 96], sizes = [16, 32], strides = [1, 1]} : vector<16x128xf32> to vector<16x32xf32>
    %cst_35 = arith.constant dense<0.000000e+00> : vector<16x16xf32>
    %78 = tpu.matmul %75, %76, %cst_35 {dimension_numbers = #tpu.dot_dimension_numbers<[1], [1], [0], [0], [0, 0, 1, 0], [], []>} : vector<16x32xf32>, vector<16x32xf32>, vector<16x16xf32> -> vector<16x16xf32>
    %cst_36 = arith.constant -1.000000e+09 : f32
    %79 = vector.broadcast %cst_36 : f32 to vector<16x16xf32>
    %80 = arith.select %12, %79, %78 : vector<16x16xi1>, vector<16x16xf32>
    %cst_37 = arith.constant dense<0xFF800000> : vector<16xf32>
    %81 = vector.multi_reduction <maximumf>, %80, %cst_37 [1] : vector<16x16xf32> to vector<16xf32>
    %82 = vector.shape_cast %81 : vector<16xf32> to vector<16x1xf32>
    %83 = vector.broadcast %82 : vector<16x1xf32> to vector<16x16xf32>
    %84 = arith.subf %80, %83 : vector<16x16xf32>
    %85 = math.exp %84 : vector<16x16xf32>
    %cst_38 = arith.constant dense<0.000000e+00> : vector<16xf32>
    %86 = vector.multi_reduction <add>, %85, %cst_38 [1] : vector<16x16xf32> to vector<16xf32>
    %87 = vector.shape_cast %86 : vector<16xf32> to vector<16x1xf32>
    %88 = tpu.reciprocal %87 {approx = true} : vector<16x1xf32> -> vector<16x1xf32>
    %89 = vector.broadcast %88 : vector<16x1xf32> to vector<16x16xf32>
    %90 = arith.mulf %85, %89 : vector<16x16xf32>
    %cst_39 = arith.constant dense<0.000000e+00> : vector<16x32xf32>
    %91 = tpu.matmul %90, %77, %cst_39 {dimension_numbers = #tpu.dot_dimension_numbers<[1], [0], [0], [1], [0, 0, 1, 1], [], []>} : vector<16x16xf32>, vector<16x32xf32>, vector<16x32xf32> -> vector<16x32xf32>
    %92 = tpu.concatenate %40, %57, %74, %91 in 1 : vector<16x32xf32>, vector<16x32xf32>, vector<16x32xf32>, vector<16x32xf32> -> vector<16x128xf32>
    %c0_40 = arith.constant 0 : index
    %c0_41 = arith.constant 0 : index
    %93 = vector.load %arg7[%c0_40, %c0_41] : memref<128x32xf32, #tpu.memory_space<vmem>>, vector<128x32xf32>
    %cst_42 = arith.constant dense<0.000000e+00> : vector<16x32xf32>
    %94 = tpu.matmul %92, %93, %cst_42 {dimension_numbers = #tpu.dot_dimension_numbers<[1], [0], [0], [1], [0, 0, 1, 1], [], []>} : vector<16x128xf32>, vector<128x32xf32>, vector<16x32xf32> -> vector<16x32xf32>
    %c0_43 = arith.constant 0 : index
    %c0_44 = arith.constant 0 : index
    %95 = vector.load %arg8[%c0_43, %c0_44] : memref<1x32xf32, #tpu.memory_space<vmem>>, vector<1x32xf32>
    %96 = vector.broadcast %95 : vector<1x32xf32> to vector<16x32xf32>
    %97 = arith.addf %94, %96 : vector<16x32xf32>
    %98 = arith.addf %1, %97 : vector<16x32xf32>
    %cst_45 = arith.constant dense<0.000000e+00> : vector<16xf32>
    %99 = vector.multi_reduction <add>, %98, %cst_45 [1] : vector<16x32xf32> to vector<16xf32>
    %100 = vector.shape_cast %99 : vector<16xf32> to vector<16x1xf32>
    %cst_46 = arith.constant 3.200000e+01 : f32
    %101 = vector.broadcast %cst_46 : f32 to vector<16x1xf32>
    %102 = arith.divf %100, %101 : vector<16x1xf32>
    %103 = vector.broadcast %102 : vector<16x1xf32> to vector<16x32xf32>
    %104 = arith.subf %98, %103 : vector<16x32xf32>
    %105 = arith.mulf %104, %104 : vector<16x32xf32>
    %cst_47 = arith.constant dense<0.000000e+00> : vector<16xf32>
    %106 = vector.multi_reduction <add>, %105, %cst_47 [1] : vector<16x32xf32> to vector<16xf32>
    %107 = vector.shape_cast %106 : vector<16xf32> to vector<16x1xf32>
    %cst_48 = arith.constant 3.200000e+01 : f32
    %108 = vector.broadcast %cst_48 : f32 to vector<16x1xf32>
    %109 = arith.divf %107, %108 : vector<16x1xf32>
    %110 = vector.broadcast %102 : vector<16x1xf32> to vector<16x32xf32>
    %111 = arith.subf %98, %110 : vector<16x32xf32>
    %cst_49 = arith.constant 9.99999974E-6 : f32
    %112 = vector.broadcast %cst_49 : f32 to vector<16x1xf32>
    %113 = arith.addf %109, %112 : vector<16x1xf32>
    %114 = math.rsqrt %113 : vector<16x1xf32>
    %115 = vector.broadcast %114 : vector<16x1xf32> to vector<16x32xf32>
    %116 = arith.mulf %111, %115 : vector<16x32xf32>
    %c0_50 = arith.constant 0 : index
    %c0_51 = arith.constant 0 : index
    %117 = vector.load %arg9[%c0_50, %c0_51] : memref<1x32xf32, #tpu.memory_space<vmem>>, vector<1x32xf32>
    %118 = vector.broadcast %117 : vector<1x32xf32> to vector<16x32xf32>
    %119 = arith.mulf %116, %118 : vector<16x32xf32>
    %c0_52 = arith.constant 0 : index
    %c0_53 = arith.constant 0 : index
    %120 = vector.load %arg10[%c0_52, %c0_53] : memref<1x32xf32, #tpu.memory_space<vmem>>, vector<1x32xf32>
    %121 = vector.broadcast %120 : vector<1x32xf32> to vector<16x32xf32>
    %122 = arith.addf %119, %121 : vector<16x32xf32>
    %c0_54 = arith.constant 0 : index
    %c0_55 = arith.constant 0 : index
    %123 = vector.load %arg11[%c0_54, %c0_55] : memref<32x64xf32, #tpu.memory_space<vmem>>, vector<32x64xf32>
    %cst_56 = arith.constant dense<0.000000e+00> : vector<16x64xf32>
    %124 = tpu.matmul %122, %123, %cst_56 {dimension_numbers = #tpu.dot_dimension_numbers<[1], [0], [0], [1], [0, 0, 1, 1], [], []>} : vector<16x32xf32>, vector<32x64xf32>, vector<16x64xf32> -> vector<16x64xf32>
    %c0_57 = arith.constant 0 : index
    %c0_58 = arith.constant 0 : index
    %125 = vector.load %arg12[%c0_57, %c0_58] : memref<1x64xf32, #tpu.memory_space<vmem>>, vector<1x64xf32>
    %126 = vector.broadcast %125 : vector<1x64xf32> to vector<16x64xf32>
    %127 = arith.addf %124, %126 : vector<16x64xf32>
    %cst_59 = arith.constant 0.000000e+00 : f32
    %128 = vector.broadcast %cst_59 : f32 to vector<16x64xf32>
    %129 = arith.maximumf %127, %128 : vector<16x64xf32>
    %c0_60 = arith.constant 0 : index
    %c0_61 = arith.constant 0 : index
    %130 = vector.load %arg13[%c0_60, %c0_61] : memref<64x32xf32, #tpu.memory_space<vmem>>, vector<64x32xf32>
    %cst_62 = arith.constant dense<0.000000e+00> : vector<16x32xf32>
    %131 = tpu.matmul %129, %130, %cst_62 {dimension_numbers = #tpu.dot_dimension_numbers<[1], [0], [0], [1], [0, 0, 1, 1], [], []>} : vector<16x64xf32>, vector<64x32xf32>, vector<16x32xf32> -> vector<16x32xf32>
    %c0_63 = arith.constant 0 : index
    %c0_64 = arith.constant 0 : index
    %132 = vector.load %arg14[%c0_63, %c0_64] : memref<1x32xf32, #tpu.memory_space<vmem>>, vector<1x32xf32>
    %133 = vector.broadcast %132 : vector<1x32xf32> to vector<16x32xf32>
    %134 = arith.addf %131, %133 : vector<16x32xf32>
    %135 = arith.addf %122, %134 : vector<16x32xf32>
    %cst_65 = arith.constant dense<0.000000e+00> : vector<16xf32>
    %136 = vector.multi_reduction <add>, %135, %cst_65 [1] : vector<16x32xf32> to vector<16xf32>
    %137 = vector.shape_cast %136 : vector<16xf32> to vector<16x1xf32>
    %cst_66 = arith.constant 3.200000e+01 : f32
    %138 = vector.broadcast %cst_66 : f32 to vector<16x1xf32>
    %139 = arith.divf %137, %138 : vector<16x1xf32>
    %140 = vector.broadcast %139 : vector<16x1xf32> to vector<16x32xf32>
    %141 = arith.subf %135, %140 : vector<16x32xf32>
    %142 = arith.mulf %141, %141 : vector<16x32xf32>
    %cst_67 = arith.constant dense<0.000000e+00> : vector<16xf32>
    %143 = vector.multi_reduction <add>, %142, %cst_67 [1] : vector<16x32xf32> to vector<16xf32>
    %144 = vector.shape_cast %143 : vector<16xf32> to vector<16x1xf32>
    %cst_68 = arith.constant 3.200000e+01 : f32
    %145 = vector.broadcast %cst_68 : f32 to vector<16x1xf32>
    %146 = arith.divf %144, %145 : vector<16x1xf32>
    %147 = vector.broadcast %139 : vector<16x1xf32> to vector<16x32xf32>
    %148 = arith.subf %135, %147 : vector<16x32xf32>
    %cst_69 = arith.constant 9.99999974E-6 : f32
    %149 = vector.broadcast %cst_69 : f32 to vector<16x1xf32>
    %150 = arith.addf %146, %149 : vector<16x1xf32>
    %151 = math.rsqrt %150 : vector<16x1xf32>
    %152 = vector.broadcast %151 : vector<16x1xf32> to vector<16x32xf32>
    %153 = arith.mulf %148, %152 : vector<16x32xf32>
    %c0_70 = arith.constant 0 : index
    %c0_71 = arith.constant 0 : index
    %154 = vector.load %arg15[%c0_70, %c0_71] : memref<1x32xf32, #tpu.memory_space<vmem>>, vector<1x32xf32>
    %155 = vector.broadcast %154 : vector<1x32xf32> to vector<16x32xf32>
    %156 = arith.mulf %153, %155 : vector<16x32xf32>
    %c0_72 = arith.constant 0 : index
    %c0_73 = arith.constant 0 : index
    %157 = vector.load %arg16[%c0_72, %c0_73] : memref<1x32xf32, #tpu.memory_space<vmem>>, vector<1x32xf32>
    %158 = vector.broadcast %157 : vector<1x32xf32> to vector<16x32xf32>
    %159 = arith.addf %156, %158 : vector<16x32xf32>
    %cst_74 = arith.constant 3.200000e+01 : f32
    %cst_75 = arith.constant -5.000000e-01 : f32
    %160 = math.powf %cst_74, %cst_75 : f32
    %c0_76 = arith.constant 0 : index
    %c0_77 = arith.constant 0 : index
    %161 = vector.load %arg17[%c0_76, %c0_77] : memref<32x128xf32, #tpu.memory_space<vmem>>, vector<32x128xf32>
    %cst_78 = arith.constant dense<0.000000e+00> : vector<8x128xf32>
    %162 = tpu.matmul %3, %161, %cst_78 {dimension_numbers = #tpu.dot_dimension_numbers<[1], [0], [0], [1], [0, 0, 1, 1], [], []>} : vector<8x32xf32>, vector<32x128xf32>, vector<8x128xf32> -> vector<8x128xf32>
    %163 = vector.broadcast %160 : f32 to vector<8x128xf32>
    %164 = arith.mulf %162, %163 : vector<8x128xf32>
    %c0_79 = arith.constant 0 : index
    %c0_80 = arith.constant 0 : index
    %165 = vector.load %arg18[%c0_79, %c0_80] : memref<32x256xf32, #tpu.memory_space<vmem>>, vector<32x256xf32>
    %cst_81 = arith.constant dense<0.000000e+00> : vector<16x256xf32>
    %166 = tpu.matmul %159, %165, %cst_81 {dimension_numbers = #tpu.dot_dimension_numbers<[1], [0], [0], [1], [0, 0, 1, 1], [], []>} : vector<16x32xf32>, vector<32x256xf32>, vector<16x256xf32> -> vector<16x256xf32>
    %167 = vector.extract_strided_slice %166 {offsets = [0, 0], sizes = [16, 128], strides = [1, 1]} : vector<16x256xf32> to vector<16x128xf32>
    %168 = vector.extract_strided_slice %166 {offsets = [0, 128], sizes = [16, 128], strides = [1, 1]} : vector<16x256xf32> to vector<16x128xf32>
    %169 = vector.extract_strided_slice %164 {offsets = [0, 0], sizes = [8, 32], strides = [1, 1]} : vector<8x128xf32> to vector<8x32xf32>
    %170 = vector.extract_strided_slice %167 {offsets = [0, 0], sizes = [16, 32], strides = [1, 1]} : vector<16x128xf32> to vector<16x32xf32>
    %171 = vector.extract_strided_slice %168 {offsets = [0, 0], sizes = [16, 32], strides = [1, 1]} : vector<16x128xf32> to vector<16x32xf32>
    %cst_82 = arith.constant dense<0.000000e+00> : vector<8x16xf32>
    %172 = tpu.matmul %169, %170, %cst_82 {dimension_numbers = #tpu.dot_dimension_numbers<[1], [1], [0], [0], [0, 0, 1, 0], [], []>} : vector<8x32xf32>, vector<16x32xf32>, vector<8x16xf32> -> vector<8x16xf32>
    %cst_83 = arith.constant -1.000000e+09 : f32
    %173 = vector.shape_cast %14 : vector<1x16xi1> to vector<1x16xi1>
    %174 = vector.broadcast %173 : vector<1x16xi1> to vector<8x16xi1>
    %175 = vector.broadcast %cst_83 : f32 to vector<8x16xf32>
    %176 = arith.select %174, %175, %172 : vector<8x16xi1>, vector<8x16xf32>
    %cst_84 = arith.constant dense<0xFF800000> : vector<8xf32>
    %177 = vector.multi_reduction <maximumf>, %176, %cst_84 [1] : vector<8x16xf32> to vector<8xf32>
    %178 = vector.shape_cast %177 : vector<8xf32> to vector<8x1xf32>
    %179 = vector.broadcast %178 : vector<8x1xf32> to vector<8x16xf32>
    %180 = arith.subf %176, %179 : vector<8x16xf32>
    %181 = math.exp %180 : vector<8x16xf32>
    %cst_85 = arith.constant dense<0.000000e+00> : vector<8xf32>
    %182 = vector.multi_reduction <add>, %181, %cst_85 [1] : vector<8x16xf32> to vector<8xf32>
    %183 = vector.shape_cast %182 : vector<8xf32> to vector<8x1xf32>
    %184 = tpu.reciprocal %183 {approx = true} : vector<8x1xf32> -> vector<8x1xf32>
    %185 = vector.broadcast %184 : vector<8x1xf32> to vector<8x16xf32>
    %186 = arith.mulf %181, %185 : vector<8x16xf32>
    %cst_86 = arith.constant dense<0.000000e+00> : vector<8x32xf32>
    %187 = tpu.matmul %186, %171, %cst_86 {dimension_numbers = #tpu.dot_dimension_numbers<[1], [0], [0], [1], [0, 0, 1, 1], [], []>} : vector<8x16xf32>, vector<16x32xf32>, vector<8x32xf32> -> vector<8x32xf32>
    %188 = vector.extract_strided_slice %164 {offsets = [0, 32], sizes = [8, 32], strides = [1, 1]} : vector<8x128xf32> to vector<8x32xf32>
    %189 = vector.extract_strided_slice %167 {offsets = [0, 32], sizes = [16, 32], strides = [1, 1]} : vector<16x128xf32> to vector<16x32xf32>
    %190 = vector.extract_strided_slice %168 {offsets = [0, 32], sizes = [16, 32], strides = [1, 1]} : vector<16x128xf32> to vector<16x32xf32>
    %cst_87 = arith.constant dense<0.000000e+00> : vector<8x16xf32>
    %191 = tpu.matmul %188, %189, %cst_87 {dimension_numbers = #tpu.dot_dimension_numbers<[1], [1], [0], [0], [0, 0, 1, 0], [], []>} : vector<8x32xf32>, vector<16x32xf32>, vector<8x16xf32> -> vector<8x16xf32>
    %cst_88 = arith.constant -1.000000e+09 : f32
    %192 = vector.shape_cast %14 : vector<1x16xi1> to vector<1x16xi1>
    %193 = vector.broadcast %192 : vector<1x16xi1> to vector<8x16xi1>
    %194 = vector.broadcast %cst_88 : f32 to vector<8x16xf32>
    %195 = arith.select %193, %194, %191 : vector<8x16xi1>, vector<8x16xf32>
    %cst_89 = arith.constant dense<0xFF800000> : vector<8xf32>
    %196 = vector.multi_reduction <maximumf>, %195, %cst_89 [1] : vector<8x16xf32> to vector<8xf32>
    %197 = vector.shape_cast %196 : vector<8xf32> to vector<8x1xf32>
    %198 = vector.broadcast %197 : vector<8x1xf32> to vector<8x16xf32>
    %199 = arith.subf %195, %198 : vector<8x16xf32>
    %200 = math.exp %199 : vector<8x16xf32>
    %cst_90 = arith.constant dense<0.000000e+00> : vector<8xf32>
    %201 = vector.multi_reduction <add>, %200, %cst_90 [1] : vector<8x16xf32> to vector<8xf32>
    %202 = vector.shape_cast %201 : vector<8xf32> to vector<8x1xf32>
    %203 = tpu.reciprocal %202 {approx = true} : vector<8x1xf32> -> vector<8x1xf32>
    %204 = vector.broadcast %203 : vector<8x1xf32> to vector<8x16xf32>
    %205 = arith.mulf %200, %204 : vector<8x16xf32>
    %cst_91 = arith.constant dense<0.000000e+00> : vector<8x32xf32>
    %206 = tpu.matmul %205, %190, %cst_91 {dimension_numbers = #tpu.dot_dimension_numbers<[1], [0], [0], [1], [0, 0, 1, 1], [], []>} : vector<8x16xf32>, vector<16x32xf32>, vector<8x32xf32> -> vector<8x32xf32>
    %207 = vector.extract_strided_slice %164 {offsets = [0, 64], sizes = [8, 32], strides = [1, 1]} : vector<8x128xf32> to vector<8x32xf32>
    %208 = vector.extract_strided_slice %167 {offsets = [0, 64], sizes = [16, 32], strides = [1, 1]} : vector<16x128xf32> to vector<16x32xf32>
    %209 = vector.extract_strided_slice %168 {offsets = [0, 64], sizes = [16, 32], strides = [1, 1]} : vector<16x128xf32> to vector<16x32xf32>
    %cst_92 = arith.constant dense<0.000000e+00> : vector<8x16xf32>
    %210 = tpu.matmul %207, %208, %cst_92 {dimension_numbers = #tpu.dot_dimension_numbers<[1], [1], [0], [0], [0, 0, 1, 0], [], []>} : vector<8x32xf32>, vector<16x32xf32>, vector<8x16xf32> -> vector<8x16xf32>
    %cst_93 = arith.constant -1.000000e+09 : f32
    %211 = vector.shape_cast %14 : vector<1x16xi1> to vector<1x16xi1>
    %212 = vector.broadcast %211 : vector<1x16xi1> to vector<8x16xi1>
    %213 = vector.broadcast %cst_93 : f32 to vector<8x16xf32>
    %214 = arith.select %212, %213, %210 : vector<8x16xi1>, vector<8x16xf32>
    %cst_94 = arith.constant dense<0xFF800000> : vector<8xf32>
    %215 = vector.multi_reduction <maximumf>, %214, %cst_94 [1] : vector<8x16xf32> to vector<8xf32>
    %216 = vector.shape_cast %215 : vector<8xf32> to vector<8x1xf32>
    %217 = vector.broadcast %216 : vector<8x1xf32> to vector<8x16xf32>
    %218 = arith.subf %214, %217 : vector<8x16xf32>
    %219 = math.exp %218 : vector<8x16xf32>
    %cst_95 = arith.constant dense<0.000000e+00> : vector<8xf32>
    %220 = vector.multi_reduction <add>, %219, %cst_95 [1] : vector<8x16xf32> to vector<8xf32>
    %221 = vector.shape_cast %220 : vector<8xf32> to vector<8x1xf32>
    %222 = tpu.reciprocal %221 {approx = true} : vector<8x1xf32> -> vector<8x1xf32>
    %223 = vector.broadcast %222 : vector<8x1xf32> to vector<8x16xf32>
    %224 = arith.mulf %219, %223 : vector<8x16xf32>
    %cst_96 = arith.constant dense<0.000000e+00> : vector<8x32xf32>
    %225 = tpu.matmul %224, %209, %cst_96 {dimension_numbers = #tpu.dot_dimension_numbers<[1], [0], [0], [1], [0, 0, 1, 1], [], []>} : vector<8x16xf32>, vector<16x32xf32>, vector<8x32xf32> -> vector<8x32xf32>
    %226 = vector.extract_strided_slice %164 {offsets = [0, 96], sizes = [8, 32], strides = [1, 1]} : vector<8x128xf32> to vector<8x32xf32>
    %227 = vector.extract_strided_slice %167 {offsets = [0, 96], sizes = [16, 32], strides = [1, 1]} : vector<16x128xf32> to vector<16x32xf32>
    %228 = vector.extract_strided_slice %168 {offsets = [0, 96], sizes = [16, 32], strides = [1, 1]} : vector<16x128xf32> to vector<16x32xf32>
    %cst_97 = arith.constant dense<0.000000e+00> : vector<8x16xf32>
    %229 = tpu.matmul %226, %227, %cst_97 {dimension_numbers = #tpu.dot_dimension_numbers<[1], [1], [0], [0], [0, 0, 1, 0], [], []>} : vector<8x32xf32>, vector<16x32xf32>, vector<8x16xf32> -> vector<8x16xf32>
    %cst_98 = arith.constant -1.000000e+09 : f32
    %230 = vector.shape_cast %14 : vector<1x16xi1> to vector<1x16xi1>
    %231 = vector.broadcast %230 : vector<1x16xi1> to vector<8x16xi1>
    %232 = vector.broadcast %cst_98 : f32 to vector<8x16xf32>
    %233 = arith.select %231, %232, %229 : vector<8x16xi1>, vector<8x16xf32>
    %cst_99 = arith.constant dense<0xFF800000> : vector<8xf32>
    %234 = vector.multi_reduction <maximumf>, %233, %cst_99 [1] : vector<8x16xf32> to vector<8xf32>
    %235 = vector.shape_cast %234 : vector<8xf32> to vector<8x1xf32>
    %236 = vector.broadcast %235 : vector<8x1xf32> to vector<8x16xf32>
    %237 = arith.subf %233, %236 : vector<8x16xf32>
    %238 = math.exp %237 : vector<8x16xf32>
    %cst_100 = arith.constant dense<0.000000e+00> : vector<8xf32>
    %239 = vector.multi_reduction <add>, %238, %cst_100 [1] : vector<8x16xf32> to vector<8xf32>
    %240 = vector.shape_cast %239 : vector<8xf32> to vector<8x1xf32>
    %241 = tpu.reciprocal %240 {approx = true} : vector<8x1xf32> -> vector<8x1xf32>
    %242 = vector.broadcast %241 : vector<8x1xf32> to vector<8x16xf32>
    %243 = arith.mulf %238, %242 : vector<8x16xf32>
    %cst_101 = arith.constant dense<0.000000e+00> : vector<8x32xf32>
    %244 = tpu.matmul %243, %228, %cst_101 {dimension_numbers = #tpu.dot_dimension_numbers<[1], [0], [0], [1], [0, 0, 1, 1], [], []>} : vector<8x16xf32>, vector<16x32xf32>, vector<8x32xf32> -> vector<8x32xf32>
    %245 = tpu.concatenate %187, %206, %225, %244 in 1 : vector<8x32xf32>, vector<8x32xf32>, vector<8x32xf32>, vector<8x32xf32> -> vector<8x128xf32>
    %c0_102 = arith.constant 0 : index
    %c0_103 = arith.constant 0 : index
    %246 = vector.load %arg19[%c0_102, %c0_103] : memref<128x32xf32, #tpu.memory_space<vmem>>, vector<128x32xf32>
    %cst_104 = arith.constant dense<0.000000e+00> : vector<8x32xf32>
    %247 = tpu.matmul %245, %246, %cst_104 {dimension_numbers = #tpu.dot_dimension_numbers<[1], [0], [0], [1], [0, 0, 1, 1], [], []>} : vector<8x128xf32>, vector<128x32xf32>, vector<8x32xf32> -> vector<8x32xf32>
    %c0_105 = arith.constant 0 : index
    %c0_106 = arith.constant 0 : index
    %248 = vector.load %arg20[%c0_105, %c0_106] : memref<1x32xf32, #tpu.memory_space<vmem>>, vector<1x32xf32>
    %249 = vector.broadcast %248 : vector<1x32xf32> to vector<8x32xf32>
    %250 = arith.addf %247, %249 : vector<8x32xf32>
    %251 = arith.addf %3, %250 : vector<8x32xf32>
    %cst_107 = arith.constant dense<0.000000e+00> : vector<8xf32>
    %252 = vector.multi_reduction <add>, %251, %cst_107 [1] : vector<8x32xf32> to vector<8xf32>
    %253 = vector.shape_cast %252 : vector<8xf32> to vector<8x1xf32>
    %cst_108 = arith.constant 3.200000e+01 : f32
    %254 = vector.broadcast %cst_108 : f32 to vector<8x1xf32>
    %255 = arith.divf %253, %254 : vector<8x1xf32>
    %256 = vector.broadcast %255 : vector<8x1xf32> to vector<8x32xf32>
    %257 = arith.subf %251, %256 : vector<8x32xf32>
    %258 = arith.mulf %257, %257 : vector<8x32xf32>
    %cst_109 = arith.constant dense<0.000000e+00> : vector<8xf32>
    %259 = vector.multi_reduction <add>, %258, %cst_109 [1] : vector<8x32xf32> to vector<8xf32>
    %260 = vector.shape_cast %259 : vector<8xf32> to vector<8x1xf32>
    %cst_110 = arith.constant 3.200000e+01 : f32
    %261 = vector.broadcast %cst_110 : f32 to vector<8x1xf32>
    %262 = arith.divf %260, %261 : vector<8x1xf32>
    %263 = vector.broadcast %255 : vector<8x1xf32> to vector<8x32xf32>
    %264 = arith.subf %251, %263 : vector<8x32xf32>
    %cst_111 = arith.constant 9.99999974E-6 : f32
    %265 = vector.broadcast %cst_111 : f32 to vector<8x1xf32>
    %266 = arith.addf %262, %265 : vector<8x1xf32>
    %267 = math.rsqrt %266 : vector<8x1xf32>
    %268 = vector.broadcast %267 : vector<8x1xf32> to vector<8x32xf32>
    %269 = arith.mulf %264, %268 : vector<8x32xf32>
    %c0_112 = arith.constant 0 : index
    %c0_113 = arith.constant 0 : index
    %270 = vector.load %arg21[%c0_112, %c0_113] : memref<1x32xf32, #tpu.memory_space<vmem>>, vector<1x32xf32>
    %271 = vector.broadcast %270 : vector<1x32xf32> to vector<8x32xf32>
    %272 = arith.mulf %269, %271 : vector<8x32xf32>
    %c0_114 = arith.constant 0 : index
    %c0_115 = arith.constant 0 : index
    %273 = vector.load %arg22[%c0_114, %c0_115] : memref<1x32xf32, #tpu.memory_space<vmem>>, vector<1x32xf32>
    %274 = vector.broadcast %273 : vector<1x32xf32> to vector<8x32xf32>
    %275 = arith.addf %272, %274 : vector<8x32xf32>
    %c0_116 = arith.constant 0 : index
    %c0_117 = arith.constant 0 : index
    %276 = vector.load %arg23[%c0_116, %c0_117] : memref<32x64xf32, #tpu.memory_space<vmem>>, vector<32x64xf32>
    %cst_118 = arith.constant dense<0.000000e+00> : vector<8x64xf32>
    %277 = tpu.matmul %275, %276, %cst_118 {dimension_numbers = #tpu.dot_dimension_numbers<[1], [0], [0], [1], [0, 0, 1, 1], [], []>} : vector<8x32xf32>, vector<32x64xf32>, vector<8x64xf32> -> vector<8x64xf32>
    %c0_119 = arith.constant 0 : index
    %c0_120 = arith.constant 0 : index
    %278 = vector.load %arg24[%c0_119, %c0_120] : memref<1x64xf32, #tpu.memory_space<vmem>>, vector<1x64xf32>
    %279 = vector.broadcast %278 : vector<1x64xf32> to vector<8x64xf32>
    %280 = arith.addf %277, %279 : vector<8x64xf32>
    %cst_121 = arith.constant 0.000000e+00 : f32
    %281 = vector.broadcast %cst_121 : f32 to vector<8x64xf32>
    %282 = arith.maximumf %280, %281 : vector<8x64xf32>
    %c0_122 = arith.constant 0 : index
    %c0_123 = arith.constant 0 : index
    %283 = vector.load %arg25[%c0_122, %c0_123] : memref<64x32xf32, #tpu.memory_space<vmem>>, vector<64x32xf32>
    %cst_124 = arith.constant dense<0.000000e+00> : vector<8x32xf32>
    %284 = tpu.matmul %282, %283, %cst_124 {dimension_numbers = #tpu.dot_dimension_numbers<[1], [0], [0], [1], [0, 0, 1, 1], [], []>} : vector<8x64xf32>, vector<64x32xf32>, vector<8x32xf32> -> vector<8x32xf32>
    %c0_125 = arith.constant 0 : index
    %c0_126 = arith.constant 0 : index
    %285 = vector.load %arg26[%c0_125, %c0_126] : memref<1x32xf32, #tpu.memory_space<vmem>>, vector<1x32xf32>
    %286 = vector.broadcast %285 : vector<1x32xf32> to vector<8x32xf32>
    %287 = arith.addf %284, %286 : vector<8x32xf32>
    %288 = arith.addf %275, %287 : vector<8x32xf32>
    %cst_127 = arith.constant dense<0.000000e+00> : vector<8xf32>
    %289 = vector.multi_reduction <add>, %288, %cst_127 [1] : vector<8x32xf32> to vector<8xf32>
    %290 = vector.shape_cast %289 : vector<8xf32> to vector<8x1xf32>
    %cst_128 = arith.constant 3.200000e+01 : f32
    %291 = vector.broadcast %cst_128 : f32 to vector<8x1xf32>
    %292 = arith.divf %290, %291 : vector<8x1xf32>
    %293 = vector.broadcast %292 : vector<8x1xf32> to vector<8x32xf32>
    %294 = arith.subf %288, %293 : vector<8x32xf32>
    %295 = arith.mulf %294, %294 : vector<8x32xf32>
    %cst_129 = arith.constant dense<0.000000e+00> : vector<8xf32>
    %296 = vector.multi_reduction <add>, %295, %cst_129 [1] : vector<8x32xf32> to vector<8xf32>
    %297 = vector.shape_cast %296 : vector<8xf32> to vector<8x1xf32>
    %cst_130 = arith.constant 3.200000e+01 : f32
    %298 = vector.broadcast %cst_130 : f32 to vector<8x1xf32>
    %299 = arith.divf %297, %298 : vector<8x1xf32>
    %300 = vector.broadcast %292 : vector<8x1xf32> to vector<8x32xf32>
    %301 = arith.subf %288, %300 : vector<8x32xf32>
    %cst_131 = arith.constant 9.99999974E-6 : f32
    %302 = vector.broadcast %cst_131 : f32 to vector<8x1xf32>
    %303 = arith.addf %299, %302 : vector<8x1xf32>
    %304 = math.rsqrt %303 : vector<8x1xf32>
    %305 = vector.broadcast %304 : vector<8x1xf32> to vector<8x32xf32>
    %306 = arith.mulf %301, %305 : vector<8x32xf32>
    %c0_132 = arith.constant 0 : index
    %c0_133 = arith.constant 0 : index
    %307 = vector.load %arg27[%c0_132, %c0_133] : memref<1x32xf32, #tpu.memory_space<vmem>>, vector<1x32xf32>
    %308 = vector.broadcast %307 : vector<1x32xf32> to vector<8x32xf32>
    %309 = arith.mulf %306, %308 : vector<8x32xf32>
    %c0_134 = arith.constant 0 : index
    %c0_135 = arith.constant 0 : index
    %310 = vector.load %arg28[%c0_134, %c0_135] : memref<1x32xf32, #tpu.memory_space<vmem>>, vector<1x32xf32>
    %311 = vector.broadcast %310 : vector<1x32xf32> to vector<8x32xf32>
    %312 = arith.addf %309, %311 : vector<8x32xf32>
    %c0_136 = arith.constant 0 : index
    %c0_137 = arith.constant 0 : index
    %c0_138 = arith.constant 0 : index
    %313 = vector.load %arg29[%c0_136, %c0_137, %c0_138] : memref<1x8x32xf32, #tpu.memory_space<vmem>>, vector<1x8x32xf32>
    %314 = vector.shape_cast %313 : vector<1x8x32xf32> to vector<8x32xf32>
    %315 = vector.shape_cast %312 : vector<8x32xf32> to vector<1x8x32xf32>
    tpu.vector_store %arg29[%c0_136, %c0_137, %c0_138], %315 {strides = array<i32>} : memref<1x8x32xf32, #tpu.memory_space<vmem>>, vector<1x8x32xf32>,
    return
  }
  func.func @transform_0(%arg0: i32) -> (i32, i32, i32) {
    %c0_i32 = arith.constant 0 : i32
    %c0_i32_0 = arith.constant 0 : i32
    %c0_i32_1 = arith.constant 0 : i32
    return %arg0, %c0_i32, %c0_i32_0 : i32, i32, i32
  }
  func.func @transform_1(%arg0: i32) -> (i32, i32, i32) {
    %c0_i32 = arith.constant 0 : i32
    %c0_i32_0 = arith.constant 0 : i32
    %c0_i32_1 = arith.constant 0 : i32
    return %arg0, %c0_i32, %c0_i32_0 : i32, i32, i32
  }
  func.func @transform_2(%arg0: i32) -> (i32, i32, i32) {
    %c0_i32 = arith.constant 0 : i32
    %c0_i32_0 = arith.constant 0 : i32
    %c0_i32_1 = arith.constant 0 : i32
    return %arg0, %c0_i32, %c0_i32_0 : i32, i32, i32
  }
  func.func @transform_3(%arg0: i32) -> (i32, i32, i32) {
    %c0_i32 = arith.constant 0 : i32
    %c0_i32_0 = arith.constant 0 : i32
    %c0_i32_1 = arith.constant 0 : i32
    return %arg0, %c0_i32, %c0_i32_0 : i32, i32, i32
  }
  func.func @transform_4(%arg0: i32) -> (i32, i32) {
    %c0_i32 = arith.constant 0 : i32
    %c0_i32_0 = arith.constant 0 : i32
    %c0_i32_1 = arith.constant 0 : i32
    return %c0_i32, %c0_i32_0 : i32, i32
  }
  func.func @transform_5(%arg0: i32) -> (i32, i32) {
    %c0_i32 = arith.constant 0 : i32
    %c0_i32_0 = arith.constant 0 : i32
    %c0_i32_1 = arith.constant 0 : i32
    return %c0_i32, %c0_i32_0 : i32, i32
  }
  func.func @transform_6(%arg0: i32) -> (i32, i32) {
    %c0_i32 = arith.constant 0 : i32
    %c0_i32_0 = arith.constant 0 : i32
    %c0_i32_1 = arith.constant 0 : i32
    return %c0_i32, %c0_i32_0 : i32, i32
  }
  func.func @transform_7(%arg0: i32) -> (i32, i32) {
    %c0_i32 = arith.constant 0 : i32
    %c0_i32_0 = arith.constant 0 : i32
    %c0_i32_1 = arith.constant 0 : i32
    return %c0_i32, %c0_i32_0 : i32, i32
  }
  func.func @transform_8(%arg0: i32) -> (i32, i32) {
    %c0_i32 = arith.constant 0 : i32
    %c0_i32_0 = arith.constant 0 : i32
    %c0_i32_1 = arith.constant 0 : i32
    return %c0_i32, %c0_i32_0 : i32, i32
  }
  func.func @transform_9(%arg0: i32) -> (i32, i32) {
    %c0_i32 = arith.constant 0 : i32
    %c0_i32_0 = arith.constant 0 : i32
    %c0_i32_1 = arith.constant 0 : i32
    return %c0_i32, %c0_i32_0 : i32, i32
  }
  func.func @transform_10(%arg0: i32) -> (i32, i32) {
    %c0_i32 = arith.constant 0 : i32
    %c0_i32_0 = arith.constant 0 : i32
    %c0_i32_1 = arith.constant 0 : i32
    return %c0_i32, %c0_i32_0 : i32, i32
  }
  func.func @transform_11(%arg0: i32) -> (i32, i32) {
    %c0_i32 = arith.constant 0 : i32
    %c0_i32_0 = arith.constant 0 : i32
    %c0_i32_1 = arith.constant 0 : i32
    return %c0_i32, %c0_i32_0 : i32, i32
  }
  func.func @transform_12(%arg0: i32) -> (i32, i32) {
    %c0_i32 = arith.constant 0 : i32
    %c0_i32_0 = arith.constant 0 : i32
    %c0_i32_1 = arith.constant 0 : i32
    return %c0_i32, %c0_i32_0 : i32, i32
  }
  func.func @transform_13(%arg0: i32) -> (i32, i32) {
    %c0_i32 = arith.constant 0 : i32
    %c0_i32_0 = arith.constant 0 : i32
    %c0_i32_1 = arith.constant 0 : i32
    return %c0_i32, %c0_i32_0 : i32, i32
  }
  func.func @transform_14(%arg0: i32) -> (i32, i32) {
    %c0_i32 = arith.constant 0 : i32
    %c0_i32_0 = arith.constant 0 : i32
    %c0_i32_1 = arith.constant 0 : i32
    return %c0_i32, %c0_i32_0 : i32, i32
  }
  func.func @transform_15(%arg0: i32) -> (i32, i32) {
    %c0_i32 = arith.constant 0 : i32
    %c0_i32_0 = arith.constant 0 : i32
    %c0_i32_1 = arith.constant 0 : i32
    return %c0_i32, %c0_i32_0 : i32, i32
  }
  func.func @transform_16(%arg0: i32) -> (i32, i32) {
    %c0_i32 = arith.constant 0 : i32
    %c0_i32_0 = arith.constant 0 : i32
    %c0_i32_1 = arith.constant 0 : i32
    return %c0_i32, %c0_i32_0 : i32, i32
  }
  func.func @transform_17(%arg0: i32) -> (i32, i32) {
    %c0_i32 = arith.constant 0 : i32
    %c0_i32_0 = arith.constant 0 : i32
    %c0_i32_1 = arith.constant 0 : i32
    return %c0_i32, %c0_i32_0 : i32, i32
  }
  func.func @transform_18(%arg0: i32) -> (i32, i32) {
    %c0_i32 = arith.constant 0 : i32
    %c0_i32_0 = arith.constant 0 : i32
    %c0_i32_1 = arith.constant 0 : i32
    return %c0_i32, %c0_i32_0 : i32, i32
  }
  func.func @transform_19(%arg0: i32) -> (i32, i32) {
    %c0_i32 = arith.constant 0 : i32
    %c0_i32_0 = arith.constant 0 : i32
    %c0_i32_1 = arith.constant 0 : i32
    return %c0_i32, %c0_i32_0 : i32, i32
  }
  func.func @transform_20(%arg0: i32) -> (i32, i32) {
    %c0_i32 = arith.constant 0 : i32
    %c0_i32_0 = arith.constant 0 : i32
    %c0_i32_1 = arith.constant 0 : i32
    return %c0_i32, %c0_i32_0 : i32, i32
  }
  func.func @transform_21(%arg0: i32) -> (i32, i32) {
    %c0_i32 = arith.constant 0 : i32
    %c0_i32_0 = arith.constant 0 : i32
    %c0_i32_1 = arith.constant 0 : i32
    return %c0_i32, %c0_i32_0 : i32, i32
  }
  func.func @transform_22(%arg0: i32) -> (i32, i32) {
    %c0_i32 = arith.constant 0 : i32
    %c0_i32_0 = arith.constant 0 : i32
    %c0_i32_1 = arith.constant 0 : i32
    return %c0_i32, %c0_i32_0 : i32, i32
  }
  func.func @transform_23(%arg0: i32) -> (i32, i32) {
    %c0_i32 = arith.constant 0 : i32
    %c0_i32_0 = arith.constant 0 : i32
    %c0_i32_1 = arith.constant 0 : i32
    return %c0_i32, %c0_i32_0 : i32, i32
  }
  func.func @transform_24(%arg0: i32) -> (i32, i32) {
    %c0_i32 = arith.constant 0 : i32
    %c0_i32_0 = arith.constant 0 : i32
    %c0_i32_1 = arith.constant 0 : i32
    return %c0_i32, %c0_i32_0 : i32, i32
  }
  func.func @transform_25(%arg0: i32) -> (i32, i32) {
    %c0_i32 = arith.constant 0 : i32
    %c0_i32_0 = arith.constant 0 : i32
    %c0_i32_1 = arith.constant 0 : i32
    return %c0_i32, %c0_i32_0 : i32, i32
  }
  func.func @transform_26(%arg0: i32) -> (i32, i32) {
    %c0_i32 = arith.constant 0 : i32
    %c0_i32_0 = arith.constant 0 : i32
    %c0_i32_1 = arith.constant 0 : i32
    return %c0_i32, %c0_i32_0 : i32, i32
  }
  func.func @transform_27(%arg0: i32) -> (i32, i32) {
    %c0_i32 = arith.constant 0 : i32
    %c0_i32_0 = arith.constant 0 : i32
    %c0_i32_1 = arith.constant 0 : i32
    return %c0_i32, %c0_i32_0 : i32, i32
  }
  func.func @transform_28(%arg0: i32) -> (i32, i32, i32) {
    %c0_i32 = arith.constant 0 : i32
    %c0_i32_0 = arith.constant 0 : i32
    %c0_i32_1 = arith.constant 0 : i32
    return %arg0, %c0_i32, %c0_i32_0 : i32, i32, i32
  }
}

</mosaic_0001>

<llo_original>
// kernel: tpu_custom_call.1
$region0: #{tpu_custom_call.1}
  #allocation0 [shape = 'u32[]', space=smem, size = 0x4, offset = 0x4, fixed_abs, tag = 'smem constant byte address 0x4 - core index']
  #allocation1 [shape = 'u32[144,128]{1,0:T(1,128)}', space=vmem, size = 0x12000, scoped, tag = 'internal scratch']
  %s0 = inlined_call_operand.vmem [shape: f32[2,16,32], index: 0, kind: input, shape index: {}]
  %s1 = inlined_call_operand.vmem [shape: f32[2,8,32], index: 1, kind: input, shape index: {}]
  %s2 = inlined_call_operand.vmem [shape: f32[2,16,1], index: 2, kind: input, shape index: {}]
  %s3 = inlined_call_operand.vmem [shape: f32[2,1,16], index: 3, kind: input, shape index: {}]
  %s4 = inlined_call_operand.vmem [shape: f32[32,128], index: 4, kind: input, shape index: {}]
  %s5 = inlined_call_operand.vmem [shape: f32[32,256], index: 5, kind: input, shape index: {}]
  %s6 = inlined_call_operand.vmem [shape: f32[128,32], index: 6, kind: input, shape index: {}]
  %s7 = inlined_call_operand.vmem [shape: f32[1,32], index: 7, kind: input, shape index: {}]
  %s8 = inlined_call_operand.vmem [shape: f32[1,32], index: 8, kind: input, shape index: {}]
  %s9 = inlined_call_operand.vmem [shape: f32[1,32], index: 9, kind: input, shape index: {}]
  %s10 = inlined_call_operand.vmem [shape: f32[32,64], index: 10, kind: input, shape index: {}]
  %s11 = inlined_call_operand.vmem [shape: f32[1,64], index: 11, kind: input, shape index: {}]
  %s12 = inlined_call_operand.vmem [shape: f32[64,32], index: 12, kind: input, shape index: {}]
  %s13 = inlined_call_operand.vmem [shape: f32[1,32], index: 13, kind: input, shape index: {}]
  %s14 = inlined_call_operand.vmem [shape: f32[1,32], index: 14, kind: input, shape index: {}]
  %s15 = inlined_call_operand.vmem [shape: f32[1,32], index: 15, kind: input, shape index: {}]
  %s16 = inlined_call_operand.vmem [shape: f32[32,128], index: 16, kind: input, shape index: {}]
  %s17 = inlined_call_operand.vmem [shape: f32[32,256], index: 17, kind: input, shape index: {}]
  %s18 = inlined_call_operand.vmem [shape: f32[128,32], index: 18, kind: input, shape index: {}]
  %s19 = inlined_call_operand.vmem [shape: f32[1,32], index: 19, kind: input, shape index: {}]
  %s20 = inlined_call_operand.vmem [shape: f32[1,32], index: 20, kind: input, shape index: {}]
  %s21 = inlined_call_operand.vmem [shape: f32[1,32], index: 21, kind: input, shape index: {}]
  %s22 = inlined_call_operand.vmem [shape: f32[32,64], index: 22, kind: input, shape index: {}]
  %s23 = inlined_call_operand.vmem [shape: f32[1,64], index: 23, kind: input, shape index: {}]
  %s24 = inlined_call_operand.vmem [shape: f32[64,32], index: 24, kind: input, shape index: {}]
  %s25 = inlined_call_operand.vmem [shape: f32[1,32], index: 25, kind: input, shape index: {}]
  %s26 = inlined_call_operand.vmem [shape: f32[1,32], index: 26, kind: input, shape index: {}]
  %s27 = inlined_call_operand.vmem [shape: f32[1,32], index: 27, kind: input, shape index: {}]
  %s28 = inlined_call_operand.hbm [shape: f32[2,8,32], index: 28, kind: output, shape index: {}]
  %s29 = sld [smem:[#allocation0]]
  $region145: #{tpu_custom_call.1} parent=0
    _
  %s31 = ssub.s32 1, %s29
  %s32 = scalar_select 0, %s31, %s29
  $region1: #{tpu_custom_call.1} parent=0
    #allocation2 [shape = 'u8[8192]{0}', space=vmem, size = 0x2000, scoped, tag = 'output window, operand 0']
    #allocation3 [shape = 's32[2]{0}', space=sflag, size = 0x8, scoped, tag = 'scoped memory for tpu_custom_call.1']
    %33 = vsyncpa [#allocation3], 0
    %s34 = scalar_lea.sflag [#allocation3], 1
    %35 = vsyncpa %s34, 0
    loop: start=0, step=1, limit=4
    $region2: #{tpu_custom_call.1} parent=1 // loop_pre_header
      _
    $region3: #{tpu_custom_call.1} parent=1 // loop_header
      %s37 = sphi 0, %s41
      %p38 = scmp.ge.s32.totalorder %s37, 4
      %s47 = sphi 0, %s49
      %s50 = sphi 0, %s47
      %s51 = sphi 0, %s50
      %s67 = sphi 0, %s51
      %s73 = sphi 0, %s75
      %s76 = sphi 0, %s73
      %s77 = sphi 0, %s76
      %s93 = sphi 0, %s77
      %s99 = sphi 0, %s101
      %s102 = sphi 0, %s99
      %s103 = sphi 0, %s102
      %s119 = sphi 0, %s103
      %s125 = sphi 0, %s127
      %s128 = sphi 0, %s125
      %s129 = sphi 0, %s128
      %s145 = sphi 0, %s129
      %s149 = sphi 0, %s149
      %s151 = sphi 0, %s149
      %s152 = sphi 0, %s151
      %s166 = sphi 0, %s152
      %s170 = sphi 0, %s170
      %s172 = sphi 0, %s170
      %s173 = sphi 0, %s172
      %s187 = sphi 0, %s173
      %s191 = sphi 0, %s191
      %s193 = sphi 0, %s191
      %s194 = sphi 0, %s193
      %s208 = sphi 0, %s194
      %s212 = sphi 0, %s212
      %s214 = sphi 0, %s212
      %s215 = sphi 0, %s214
      %s229 = sphi 0, %s215
      %s233 = sphi 0, %s233
      %s235 = sphi 0, %s233
      %s236 = sphi 0, %s235
      %s250 = sphi 0, %s236
      %s254 = sphi 0, %s254
      %s256 = sphi 0, %s254
      %s257 = sphi 0, %s256
      %s271 = sphi 0, %s257
      %s275 = sphi 0, %s275
      %s277 = sphi 0, %s275
      %s278 = sphi 0, %s277
      %s292 = sphi 0, %s278
      %s296 = sphi 0, %s296
      %s298 = sphi 0, %s296
      %s299 = sphi 0, %s298
      %s313 = sphi 0, %s299
      %s317 = sphi 0, %s317
      %s319 = sphi 0, %s317
      %s320 = sphi 0, %s319
      %s334 = sphi 0, %s320
      %s338 = sphi 0, %s338
      %s340 = sphi 0, %s338
      %s341 = sphi 0, %s340
      %s355 = sphi 0, %s341
      %s359 = sphi 0, %s359
      %s361 = sphi 0, %s359
      %s362 = sphi 0, %s361
      %s376 = sphi 0, %s362
      %s380 = sphi 0, %s380
      %s382 = sphi 0, %s380
      %s383 = sphi 0, %s382
      %s397 = sphi 0, %s383
      %s401 = sphi 0, %s401
      %s403 = sphi 0, %s401
      %s404 = sphi 0, %s403
      %s418 = sphi 0, %s404
      %s422 = sphi 0, %s422
      %s424 = sphi 0, %s422
      %s425 = sphi 0, %s424
      %s439 = sphi 0, %s425
      %s443 = sphi 0, %s443
      %s445 = sphi 0, %s443
      %s446 = sphi 0, %s445
      %s460 = sphi 0, %s446
      %s464 = sphi 0, %s464
      %s466 = sphi 0, %s464
      %s467 = sphi 0, %s466
      %s481 = sphi 0, %s467
      %s485 = sphi 0, %s485
      %s487 = sphi 0, %s485
      %s488 = sphi 0, %s487
      %s502 = sphi 0, %s488
      %s506 = sphi 0, %s506
      %s508 = sphi 0, %s506
      %s509 = sphi 0, %s508
      %s523 = sphi 0, %s509
      %s527 = sphi 0, %s527
      %s529 = sphi 0, %s527
      %s530 = sphi 0, %s529
      %s544 = sphi 0, %s530
      %s548 = sphi 0, %s548
      %s550 = sphi 0, %s548
      %s551 = sphi 0, %s550
      %s565 = sphi 0, %s551
      %s569 = sphi 0, %s569
      %s571 = sphi 0, %s569
      %s572 = sphi 0, %s571
      %s586 = sphi 0, %s572
      %s590 = sphi 0, %s590
      %s592 = sphi 0, %s590
      %s593 = sphi 0, %s592
      %s607 = sphi 0, %s593
      %s611 = sphi 0, %s611
      %s613 = sphi 0, %s611
      %s614 = sphi 0, %s613
      %s628 = sphi 0, %s614
      %s632 = sphi 0, %s632
      %s634 = sphi 0, %s632
      %s635 = sphi 0, %s634
      %s649 = sphi 0, %s635
      %s655 = sphi 0, %s657
      %s658 = sphi 0, %s655
      %s659 = sphi 0, %s658
      %s675 = sphi 0, %s659
    $region4: #{tpu_custom_call.1} parent=1 // loop_header_branch
      %40 = sbr.rel (%p38) target = $region8
    $region5: #{tpu_custom_call.1} parent=1 // loop_body
      %s42 = ssub.s32 %s37, 1
      %s43 = ssub.s32 %s37, 2
      %s44 = sadd.s32 %s37, 1
      %s45 = ssub.s32 %s37, %s44
      %p46 = scmp.eq.s32.totalorder %s45, 0
      %s48 = sadd.s32 %s47, 1
      %s49 = scalar_select %p46, %s47, %s48
      %p52 = pneg %p46
      %p53 = scmp.eq.s32.totalorder %s37, 1
      %p54 = por %p52, %p53
      %p55 = scmp.ne.s32.totalorder %s47, %s50
      %p56 = scmp.eq.s32.totalorder %s37, 0
      %p57 = por %p55, %p56
      %p58 = scmp.ne.s32.totalorder %s47, %s50
      %p59 = scmp.eq.s32.totalorder %s42, 1
      %p60 = por %p58, %p59
      %p61 = scmp.ne.s32.totalorder %s50, %s51
      %p62 = scmp.eq.s32.totalorder %s42, 0
      %p63 = por %p61, %p62
      %p64 = scmp.ne.s32.totalorder %s50, %s51
      %p65 = scmp.eq.s32.totalorder %s43, 1
      %p66 = por %p64, %p65
      %p68 = scmp.ne.s32.totalorder %s51, %s67
      %p69 = scmp.eq.s32.totalorder %s43, 0
      %p70 = por %p68, %p69
      %s71 = ssub.s32 %s37, %s44
      %p72 = scmp.eq.s32.totalorder %s71, 0
      %s74 = sadd.s32 %s73, 1
      %s75 = scalar_select %p72, %s73, %s74
      %p78 = pneg %p72
      %p79 = scmp.eq.s32.totalorder %s37, 1
      %p80 = por %p78, %p79
      %p81 = scmp.ne.s32.totalorder %s73, %s76
      %p82 = scmp.eq.s32.totalorder %s37, 0
      %p83 = por %p81, %p82
      %p84 = scmp.ne.s32.totalorder %s73, %s76
      %p85 = scmp.eq.s32.totalorder %s42, 1
      %p86 = por %p84, %p85
      %p87 = scmp.ne.s32.totalorder %s76, %s77
      %p88 = scmp.eq.s32.totalorder %s42, 0
      %p89 = por %p87, %p88
      %p90 = scmp.ne.s32.totalorder %s76, %s77
      %p91 = scmp.eq.s32.totalorder %s43, 1
      %p92 = por %p90, %p91
      %p94 = scmp.ne.s32.totalorder %s77, %s93
      %p95 = scmp.eq.s32.totalorder %s43, 0
      %p96 = por %p94, %p95
      %s97 = ssub.s32 %s37, %s44
      %p98 = scmp.eq.s32.totalorder %s97, 0
      %s100 = sadd.s32 %s99, 1
      %s101 = scalar_select %p98, %s99, %s100
      %p104 = pneg %p98
      %p105 = scmp.eq.s32.totalorder %s37, 1
      %p106 = por %p104, %p105
      %p107 = scmp.ne.s32.totalorder %s99, %s102
      %p108 = scmp.eq.s32.totalorder %s37, 0
      %p109 = por %p107, %p108
      %p110 = scmp.ne.s32.totalorder %s99, %s102
      %p111 = scmp.eq.s32.totalorder %s42, 1
      %p112 = por %p110, %p111
      %p113 = scmp.ne.s32.totalorder %s102, %s103
      %p114 = scmp.eq.s32.totalorder %s42, 0
      %p115 = por %p113, %p114
      %p116 = scmp.ne.s32.totalorder %s102, %s103
      %p117 = scmp.eq.s32.totalorder %s43, 1
      %p118 = por %p116, %p117
      %p120 = scmp.ne.s32.totalorder %s103, %s119
      %p121 = scmp.eq.s32.totalorder %s43, 0
      %p122 = por %p120, %p121
      %s123 = ssub.s32 %s37, %s44
      %p124 = scmp.eq.s32.totalorder %s123, 0
      %s126 = sadd.s32 %s125, 1
      %s127 = scalar_select %p124, %s125, %s126
      %p130 = pneg %p124
      %p131 = scmp.eq.s32.totalorder %s37, 1
      %p132 = por %p130, %p131
      %p133 = scmp.ne.s32.totalorder %s125, %s128
      %p134 = scmp.eq.s32.totalorder %s37, 0
      %p135 = por %p133, %p134
      %p136 = scmp.ne.s32.totalorder %s125, %s128
      %p137 = scmp.eq.s32.totalorder %s42, 1
      %p138 = por %p136, %p137
      %p139 = scmp.ne.s32.totalorder %s128, %s129
      %p140 = scmp.eq.s32.totalorder %s42, 0
      %p141 = por %p139, %p140
      %p142 = scmp.ne.s32.totalorder %s128, %s129
      %p143 = scmp.eq.s32.totalorder %s43, 1
      %p144 = por %p142, %p143
      %p146 = scmp.ne.s32.totalorder %s129, %s145
      %p147 = scmp.eq.s32.totalorder %s43, 0
      %p148 = por %p146, %p147
      %s150 = sadd.s32 %s149, 1
      %p153 = scmp.eq.s32.totalorder %s37, 1
      %p154 = scmp.ne.s32.totalorder %s149, %s151
      %p155 = scmp.eq.s32.totalorder %s37, 0
      %p156 = por %p154, %p155
      %p157 = scmp.ne.s32.totalorder %s149, %s151
      %p158 = scmp.eq.s32.totalorder %s42, 1
      %p159 = por %p157, %p158
      %p160 = scmp.ne.s32.totalorder %s151, %s152
      %p161 = scmp.eq.s32.totalorder %s42, 0
      %p162 = por %p160, %p161
      %p163 = scmp.ne.s32.totalorder %s151, %s152
      %p164 = scmp.eq.s32.totalorder %s43, 1
      %p165 = por %p163, %p164
      %p167 = scmp.ne.s32.totalorder %s152, %s166
      %p168 = scmp.eq.s32.totalorder %s43, 0
      %p169 = por %p167, %p168
      %s171 = sadd.s32 %s170, 1
      %p174 = scmp.eq.s32.totalorder %s37, 1
      %p175 = scmp.ne.s32.totalorder %s170, %s172
      %p176 = scmp.eq.s32.totalorder %s37, 0
      %p177 = por %p175, %p176
      %p178 = scmp.ne.s32.totalorder %s170, %s172
      %p179 = scmp.eq.s32.totalorder %s42, 1
      %p180 = por %p178, %p179
      %p181 = scmp.ne.s32.totalorder %s172, %s173
      %p182 = scmp.eq.s32.totalorder %s42, 0
      %p183 = por %p181, %p182
      %p184 = scmp.ne.s32.totalorder %s172, %s173
      %p185 = scmp.eq.s32.totalorder %s43, 1
      %p186 = por %p184, %p185
      %p188 = scmp.ne.s32.totalorder %s173, %s187
      %p189 = scmp.eq.s32.totalorder %s43, 0
      %p190 = por %p188, %p189
      %s192 = sadd.s32 %s191, 1
      %p195 = scmp.eq.s32.totalorder %s37, 1
      %p196 = scmp.ne.s32.totalorder %s191, %s193
      %p197 = scmp.eq.s32.totalorder %s37, 0
      %p198 = por %p196, %p197
      %p199 = scmp.ne.s32.totalorder %s191, %s193
      %p200 = scmp.eq.s32.totalorder %s42, 1
      %p201 = por %p199, %p200
      %p202 = scmp.ne.s32.totalorder %s193, %s194
      %p203 = scmp.eq.s32.totalorder %s42, 0
      %p204 = por %p202, %p203
      %p205 = scmp.ne.s32.totalorder %s193, %s194
      %p206 = scmp.eq.s32.totalorder %s43, 1
      %p207 = por %p205, %p206
      %p209 = scmp.ne.s32.totalorder %s194, %s208
      %p210 = scmp.eq.s32.totalorder %s43, 0
      %p211 = por %p209, %p210
      %s213 = sadd.s32 %s212, 1
      %p216 = scmp.eq.s32.totalorder %s37, 1
      %p217 = scmp.ne.s32.totalorder %s212, %s214
      %p218 = scmp.eq.s32.totalorder %s37, 0
      %p219 = por %p217, %p218
      %p220 = scmp.ne.s32.totalorder %s212, %s214
      %p221 = scmp.eq.s32.totalorder %s42, 1
      %p222 = por %p220, %p221
      %p223 = scmp.ne.s32.totalorder %s214, %s215
      %p224 = scmp.eq.s32.totalorder %s42, 0
      %p225 = por %p223, %p224
      %p226 = scmp.ne.s32.totalorder %s214, %s215
      %p227 = scmp.eq.s32.totalorder %s43, 1
      %p228 = por %p226, %p227
      %p230 = scmp.ne.s32.totalorder %s215, %s229
      %p231 = scmp.eq.s32.totalorder %s43, 0
      %p232 = por %p230, %p231
      %s234 = sadd.s32 %s233, 1
      %p237 = scmp.eq.s32.totalorder %s37, 1
      %p238 = scmp.ne.s32.totalorder %s233, %s235
      %p239 = scmp.eq.s32.totalorder %s37, 0
      %p240 = por %p238, %p239
      %p241 = scmp.ne.s32.totalorder %s233, %s235
      %p242 = scmp.eq.s32.totalorder %s42, 1
      %p243 = por %p241, %p242
      %p244 = scmp.ne.s32.totalorder %s235, %s236
      %p245 = scmp.eq.s32.totalorder %s42, 0
      %p246 = por %p244, %p245
      %p247 = scmp.ne.s32.totalorder %s235, %s236
      %p248 = scmp.eq.s32.totalorder %s43, 1
      %p249 = por %p247, %p248
      %p251 = scmp.ne.s32.totalorder %s236, %s250
      %p252 = scmp.eq.s32.totalorder %s43, 0
      %p253 = por %p251, %p252
      %s255 = sadd.s32 %s254, 1
      %p258 = scmp.eq.s32.totalorder %s37, 1
      %p259 = scmp.ne.s32.totalorder %s254, %s256
      %p260 = scmp.eq.s32.totalorder %s37, 0
      %p261 = por %p259, %p260
      %p262 = scmp.ne.s32.totalorder %s254, %s256
      %p263 = scmp.eq.s32.totalorder %s42, 1
      %p264 = por %p262, %p263
      %p265 = scmp.ne.s32.totalorder %s256, %s257
      %p266 = scmp.eq.s32.totalorder %s42, 0
      %p267 = por %p265, %p266
      %p268 = scmp.ne.s32.totalorder %s256, %s257
      %p269 = scmp.eq.s32.totalorder %s43, 1
      %p270 = por %p268, %p269
      %p272 = scmp.ne.s32.totalorder %s257, %s271
      %p273 = scmp.eq.s32.totalorder %s43, 0
      %p274 = por %p272, %p273
      %s276 = sadd.s32 %s275, 1
      %p279 = scmp.eq.s32.totalorder %s37, 1
      %p280 = scmp.ne.s32.totalorder %s275, %s277
      %p281 = scmp.eq.s32.totalorder %s37, 0
      %p282 = por %p280, %p281
      %p283 = scmp.ne.s32.totalorder %s275, %s277
      %p284 = scmp.eq.s32.totalorder %s42, 1
      %p285 = por %p283, %p284
      %p286 = scmp.ne.s32.totalorder %s277, %s278
      %p287 = scmp.eq.s32.totalorder %s42, 0
      %p288 = por %p286, %p287
      %p289 = scmp.ne.s32.totalorder %s277, %s278
      %p290 = scmp.eq.s32.totalorder %s43, 1
      %p291 = por %p289, %p290
      %p293 = scmp.ne.s32.totalorder %s278, %s292
      %p294 = scmp.eq.s32.totalorder %s43, 0
      %p295 = por %p293, %p294
      %s297 = sadd.s32 %s296, 1
      %p300 = scmp.eq.s32.totalorder %s37, 1
      %p301 = scmp.ne.s32.totalorder %s296, %s298
      %p302 = scmp.eq.s32.totalorder %s37, 0
      %p303 = por %p301, %p302
      %p304 = scmp.ne.s32.totalorder %s296, %s298
      %p305 = scmp.eq.s32.totalorder %s42, 1
      %p306 = por %p304, %p305
      %p307 = scmp.ne.s32.totalorder %s298, %s299
      %p308 = scmp.eq.s32.totalorder %s42, 0
      %p309 = por %p307, %p308
      %p310 = scmp.ne.s32.totalorder %s298, %s299
      %p311 = scmp.eq.s32.totalorder %s43, 1
      %p312 = por %p310, %p311
      %p314 = scmp.ne.s32.totalorder %s299, %s313
      %p315 = scmp.eq.s32.totalorder %s43, 0
      %p316 = por %p314, %p315
      %s318 = sadd.s32 %s317, 1
      %p321 = scmp.eq.s32.totalorder %s37, 1
      %p322 = scmp.ne.s32.totalorder %s317, %s319
      %p323 = scmp.eq.s32.totalorder %s37, 0
      %p324 = por %p322, %p323
      %p325 = scmp.ne.s32.totalorder %s317, %s319
      %p326 = scmp.eq.s32.totalorder %s42, 1
      %p327 = por %p325, %p326
      %p328 = scmp.ne.s32.totalorder %s319, %s320
      %p329 = scmp.eq.s32.totalorder %s42, 0
      %p330 = por %p328, %p329
      %p331 = scmp.ne.s32.totalorder %s319, %s320
      %p332 = scmp.eq.s32.totalorder %s43, 1
      %p333 = por %p331, %p332
      %p335 = scmp.ne.s32.totalorder %s320, %s334
      %p336 = scmp.eq.s32.totalorder %s43, 0
      %p337 = por %p335, %p336
      %s339 = sadd.s32 %s338, 1
      %p342 = scmp.eq.s32.totalorder %s37, 1
      %p343 = scmp.ne.s32.totalorder %s338, %s340
      %p344 = scmp.eq.s32.totalorder %s37, 0
      %p345 = por %p343, %p344
      %p346 = scmp.ne.s32.totalorder %s338, %s340
      %p347 = scmp.eq.s32.totalorder %s42, 1
      %p348 = por %p346, %p347
      %p349 = scmp.ne.s32.totalorder %s340, %s341
      %p350 = scmp.eq.s32.totalorder %s42, 0
      %p351 = por %p349, %p350
      %p352 = scmp.ne.s32.totalorder %s340, %s341
      %p353 = scmp.eq.s32.totalorder %s43, 1
      %p354 = por %p352, %p353
      %p356 = scmp.ne.s32.totalorder %s341, %s355
      %p357 = scmp.eq.s32.totalorder %s43, 0
      %p358 = por %p356, %p357
      %s360 = sadd.s32 %s359, 1
      %p363 = scmp.eq.s32.totalorder %s37, 1
      %p364 = scmp.ne.s32.totalorder %s359, %s361
      %p365 = scmp.eq.s32.totalorder %s37, 0
      %p366 = por %p364, %p365
      %p367 = scmp.ne.s32.totalorder %s359, %s361
      %p368 = scmp.eq.s32.totalorder %s42, 1
      %p369 = por %p367, %p368
      %p370 = scmp.ne.s32.totalorder %s361, %s362
      %p371 = scmp.eq.s32.totalorder %s42, 0
      %p372 = por %p370, %p371
      %p373 = scmp.ne.s32.totalorder %s361, %s362
      %p374 = scmp.eq.s32.totalorder %s43, 1
      %p375 = por %p373, %p374
      %p377 = scmp.ne.s32.totalorder %s362, %s376
      %p378 = scmp.eq.s32.totalorder %s43, 0
      %p379 = por %p377, %p378
      %s381 = sadd.s32 %s380, 1
      %p384 = scmp.eq.s32.totalorder %s37, 1
      %p385 = scmp.ne.s32.totalorder %s380, %s382
      %p386 = scmp.eq.s32.totalorder %s37, 0
      %p387 = por %p385, %p386
      %p388 = scmp.ne.s32.totalorder %s380, %s382
      %p389 = scmp.eq.s32.totalorder %s42, 1
      %p390 = por %p388, %p389
      %p391 = scmp.ne.s32.totalorder %s382, %s383
      %p392 = scmp.eq.s32.totalorder %s42, 0
      %p393 = por %p391, %p392
      %p394 = scmp.ne.s32.totalorder %s382, %s383
      %p395 = scmp.eq.s32.totalorder %s43, 1
      %p396 = por %p394, %p395
      %p398 = scmp.ne.s32.totalorder %s383, %s397
      %p399 = scmp.eq.s32.totalorder %s43, 0
      %p400 = por %p398, %p399
      %s402 = sadd.s32 %s401, 1
      %p405 = scmp.eq.s32.totalorder %s37, 1
      %p406 = scmp.ne.s32.totalorder %s401, %s403
      %p407 = scmp.eq.s32.totalorder %s37, 0
      %p408 = por %p406, %p407
      %p409 = scmp.ne.s32.totalorder %s401, %s403
      %p410 = scmp.eq.s32.totalorder %s42, 1
      %p411 = por %p409, %p410
      %p412 = scmp.ne.s32.totalorder %s403, %s404
      %p413 = scmp.eq.s32.totalorder %s42, 0
      %p414 = por %p412, %p413
      %p415 = scmp.ne.s32.totalorder %s403, %s404
      %p416 = scmp.eq.s32.totalorder %s43, 1
      %p417 = por %p415, %p416
      %p419 = scmp.ne.s32.totalorder %s404, %s418
      %p420 = scmp.eq.s32.totalorder %s43, 0
      %p421 = por %p419, %p420
      %s423 = sadd.s32 %s422, 1
      %p426 = scmp.eq.s32.totalorder %s37, 1
      %p427 = scmp.ne.s32.totalorder %s422, %s424
      %p428 = scmp.eq.s32.totalorder %s37, 0
      %p429 = por %p427, %p428
      %p430 = scmp.ne.s32.totalorder %s422, %s424
      %p431 = scmp.eq.s32.totalorder %s42, 1
      %p432 = por %p430, %p431
      %p433 = scmp.ne.s32.totalorder %s424, %s425
      %p434 = scmp.eq.s32.totalorder %s42, 0
      %p435 = por %p433, %p434
      %p436 = scmp.ne.s32.totalorder %s424, %s425
      %p437 = scmp.eq.s32.totalorder %s43, 1
      %p438 = por %p436, %p437
      %p440 = scmp.ne.s32.totalorder %s425, %s439
      %p441 = scmp.eq.s32.totalorder %s43, 0
      %p442 = por %p440, %p441
      %s444 = sadd.s32 %s443, 1
      %p447 = scmp.eq.s32.totalorder %s37, 1
      %p448 = scmp.ne.s32.totalorder %s443, %s445
      %p449 = scmp.eq.s32.totalorder %s37, 0
      %p450 = por %p448, %p449
      %p451 = scmp.ne.s32.totalorder %s443, %s445
      %p452 = scmp.eq.s32.totalorder %s42, 1
      %p453 = por %p451, %p452
      %p454 = scmp.ne.s32.totalorder %s445, %s446
      %p455 = scmp.eq.s32.totalorder %s42, 0
      %p456 = por %p454, %p455
      %p457 = scmp.ne.s32.totalorder %s445, %s446
      %p458 = scmp.eq.s32.totalorder %s43, 1
      %p459 = por %p457, %p458
      %p461 = scmp.ne.s32.totalorder %s446, %s460
      %p462 = scmp.eq.s32.totalorder %s43, 0
      %p463 = por %p461, %p462
      %s465 = sadd.s32 %s464, 1
      %p468 = scmp.eq.s32.totalorder %s37, 1
      %p469 = scmp.ne.s32.totalorder %s464, %s466
      %p470 = scmp.eq.s32.totalorder %s37, 0
      %p471 = por %p469, %p470
      %p472 = scmp.ne.s32.totalorder %s464, %s466
      %p473 = scmp.eq.s32.totalorder %s42, 1
      %p474 = por %p472, %p473
      %p475 = scmp.ne.s32.totalorder %s466, %s467
      %p476 = scmp.eq.s32.totalorder %s42, 0
      %p477 = por %p475, %p476
      %p478 = scmp.ne.s32.totalorder %s466, %s467
      %p479 = scmp.eq.s32.totalorder %s43, 1
      %p480 = por %p478, %p479
      %p482 = scmp.ne.s32.totalorder %s467, %s481
      %p483 = scmp.eq.s32.totalorder %s43, 0
      %p484 = por %p482, %p483
      %s486 = sadd.s32 %s485, 1
      %p489 = scmp.eq.s32.totalorder %s37, 1
      %p490 = scmp.ne.s32.totalorder %s485, %s487
      %p491 = scmp.eq.s32.totalorder %s37, 0
      %p492 = por %p490, %p491
      %p493 = scmp.ne.s32.totalorder %s485, %s487
      %p494 = scmp.eq.s32.totalorder %s42, 1
      %p495 = por %p493, %p494
      %p496 = scmp.ne.s32.totalorder %s487, %s488
      %p497 = scmp.eq.s32.totalorder %s42, 0
      %p498 = por %p496, %p497
      %p499 = scmp.ne.s32.totalorder %s487, %s488
      %p500 = scmp.eq.s32.totalorder %s43, 1
      %p501 = por %p499, %p500
      %p503 = scmp.ne.s32.totalorder %s488, %s502
      %p504 = scmp.eq.s32.totalorder %s43, 0
      %p505 = por %p503, %p504
      %s507 = sadd.s32 %s506, 1
      %p510 = scmp.eq.s32.totalorder %s37, 1
      %p511 = scmp.ne.s32.totalorder %s506, %s508
      %p512 = scmp.eq.s32.totalorder %s37, 0
      %p513 = por %p511, %p512
      %p514 = scmp.ne.s32.totalorder %s506, %s508
      %p515 = scmp.eq.s32.totalorder %s42, 1
      %p516 = por %p514, %p515
      %p517 = scmp.ne.s32.totalorder %s508, %s509
      %p518 = scmp.eq.s32.totalorder %s42, 0
      %p519 = por %p517, %p518
      %p520 = scmp.ne.s32.totalorder %s508, %s509
      %p521 = scmp.eq.s32.totalorder %s43, 1
      %p522 = por %p520, %p521
      %p524 = scmp.ne.s32.totalorder %s509, %s523
      %p525 = scmp.eq.s32.totalorder %s43, 0
      %p526 = por %p524, %p525
      %s528 = sadd.s32 %s527, 1
      %p531 = scmp.eq.s32.totalorder %s37, 1
      %p532 = scmp.ne.s32.totalorder %s527, %s529
      %p533 = scmp.eq.s32.totalorder %s37, 0
      %p534 = por %p532, %p533
      %p535 = scmp.ne.s32.totalorder %s527, %s529
      %p536 = scmp.eq.s32.totalorder %s42, 1
      %p537 = por %p535, %p536
      %p538 = scmp.ne.s32.totalorder %s529, %s530
      %p539 = scmp.eq.s32.totalorder %s42, 0
      %p540 = por %p538, %p539
      %p541 = scmp.ne.s32.totalorder %s529, %s530
      %p542 = scmp.eq.s32.totalorder %s43, 1
      %p543 = por %p541, %p542
      %p545 = scmp.ne.s32.totalorder %s530, %s544
      %p546 = scmp.eq.s32.totalorder %s43, 0
      %p547 = por %p545, %p546
      %s549 = sadd.s32 %s548, 1
      %p552 = scmp.eq.s32.totalorder %s37, 1
      %p553 = scmp.ne.s32.totalorder %s548, %s550
      %p554 = scmp.eq.s32.totalorder %s37, 0
      %p555 = por %p553, %p554
      %p556 = scmp.ne.s32.totalorder %s548, %s550
      %p557 = scmp.eq.s32.totalorder %s42, 1
      %p558 = por %p556, %p557
      %p559 = scmp.ne.s32.totalorder %s550, %s551
      %p560 = scmp.eq.s32.totalorder %s42, 0
      %p561 = por %p559, %p560
      %p562 = scmp.ne.s32.totalorder %s550, %s551
      %p563 = scmp.eq.s32.totalorder %s43, 1
      %p564 = por %p562, %p563
      %p566 = scmp.ne.s32.totalorder %s551, %s565
      %p567 = scmp.eq.s32.totalorder %s43, 0
      %p568 = por %p566, %p567
      %s570 = sadd.s32 %s569, 1
      %p573 = scmp.eq.s32.totalorder %s37, 1
      %p574 = scmp.ne.s32.totalorder %s569, %s571
      %p575 = scmp.eq.s32.totalorder %s37, 0
      %p576 = por %p574, %p575
      %p577 = scmp.ne.s32.totalorder %s569, %s571
      %p578 = scmp.eq.s32.totalorder %s42, 1
      %p579 = por %p577, %p578
      %p580 = scmp.ne.s32.totalorder %s571, %s572
      %p581 = scmp.eq.s32.totalorder %s42, 0
      %p582 = por %p580, %p581
      %p583 = scmp.ne.s32.totalorder %s571, %s572
      %p584 = scmp.eq.s32.totalorder %s43, 1
      %p585 = por %p583, %p584
      %p587 = scmp.ne.s32.totalorder %s572, %s586
      %p588 = scmp.eq.s32.totalorder %s43, 0
      %p589 = por %p587, %p588
      %s591 = sadd.s32 %s590, 1
      %p594 = scmp.eq.s32.totalorder %s37, 1
      %p595 = scmp.ne.s32.totalorder %s590, %s592
      %p596 = scmp.eq.s32.totalorder %s37, 0
      %p597 = por %p595, %p596
      %p598 = scmp.ne.s32.totalorder %s590, %s592
      %p599 = scmp.eq.s32.totalorder %s42, 1
      %p600 = por %p598, %p599
      %p601 = scmp.ne.s32.totalorder %s592, %s593
      %p602 = scmp.eq.s32.totalorder %s42, 0
      %p603 = por %p601, %p602
      %p604 = scmp.ne.s32.totalorder %s592, %s593
      %p605 = scmp.eq.s32.totalorder %s43, 1
      %p606 = por %p604, %p605
      %p608 = scmp.ne.s32.totalorder %s593, %s607
      %p609 = scmp.eq.s32.totalorder %s43, 0
      %p610 = por %p608, %p609
      %s612 = sadd.s32 %s611, 1
      %p615 = scmp.eq.s32.totalorder %s37, 1
      %p616 = scmp.ne.s32.totalorder %s611, %s613
      %p617 = scmp.eq.s32.totalorder %s37, 0
      %p618 = por %p616, %p617
      %p619 = scmp.ne.s32.totalorder %s611, %s613
      %p620 = scmp.eq.s32.totalorder %s42, 1
      %p621 = por %p619, %p620
      %p622 = scmp.ne.s32.totalorder %s613, %s614
      %p623 = scmp.eq.s32.totalorder %s42, 0
      %p624 = por %p622, %p623
      %p625 = scmp.ne.s32.totalorder %s613, %s614
      %p626 = scmp.eq.s32.totalorder %s43, 1
      %p627 = por %p625, %p626
      %p629 = scmp.ne.s32.totalorder %s614, %s628
      %p630 = scmp.eq.s32.totalorder %s43, 0
      %p631 = por %p629, %p630
      %s633 = sadd.s32 %s632, 1
      %p636 = scmp.eq.s32.totalorder %s37, 1
      %p637 = scmp.ne.s32.totalorder %s632, %s634
      %p638 = scmp.eq.s32.totalorder %s37, 0
      %p639 = por %p637, %p638
      %p640 = scmp.ne.s32.totalorder %s632, %s634
      %p641 = scmp.eq.s32.totalorder %s42, 1
      %p642 = por %p640, %p641
      %p643 = scmp.ne.s32.totalorder %s634, %s635
      %p644 = scmp.eq.s32.totalorder %s42, 0
      %p645 = por %p643, %p644
      %p646 = scmp.ne.s32.totalorder %s634, %s635
      %p647 = scmp.eq.s32.totalorder %s43, 1
      %p648 = por %p646, %p647
      %p650 = scmp.ne.s32.totalorder %s635, %s649
      %p651 = scmp.eq.s32.totalorder %s43, 0
      %p652 = por %p650, %p651
      %s653 = ssub.s32 %s37, %s44
      %p654 = scmp.eq.s32.totalorder %s653, 0
      %s656 = sadd.s32 %s655, 1
      %s657 = scalar_select %p654, %s655, %s656
      %p660 = pneg %p654
      %p661 = scmp.eq.s32.totalorder %s37, 1
      %p662 = por %p660, %p661
      %p663 = scmp.ne.s32.totalorder %s655, %s658
      %p664 = scmp.eq.s32.totalorder %s37, 0
      %p665 = por %p663, %p664
      %p666 = scmp.ne.s32.totalorder %s655, %s658
      %p667 = scmp.eq.s32.totalorder %s42, 1
      %p668 = por %p666, %p667
      %p669 = scmp.ne.s32.totalorder %s658, %s659
      %p670 = scmp.eq.s32.totalorder %s42, 0
      %p671 = por %p669, %p670
      %p672 = scmp.ne.s32.totalorder %s658, %s659
      %p673 = scmp.eq.s32.totalorder %s43, 1
      %p674 = por %p672, %p673
      %p676 = scmp.ne.s32.totalorder %s659, %s675
      %p677 = scmp.eq.s32.totalorder %s43, 0
      %p678 = por %p676, %p677
      %p679 = scmp.le.s32.totalorder 1, %s37
      %p680 = scmp.lt.s32.totalorder %s37, 3
      %p681 = pnand %p679, %p680
      %p682 = pneg %p681
      // Predicated region
      $region9: #{tpu_custom_call.1} parent=5 // pred_check
        _
      $region10: #{tpu_custom_call.1} parent=5 // pred_check_branch
        %684 = sbr.rel (%p681) target = $region12
      $region11: #{tpu_custom_call.1} parent=5 // pred_region
        %s685 = ssub.s32 %s37, 1
        // Predicated region
        $region13: #{tpu_custom_call.1} parent=11 // pred_check
          %p686 = pneg %p162
        $region14: #{tpu_custom_call.1} parent=11 // pred_check_branch
          %688 = sbr.rel (%p686) target = $region16
        $region15: #{tpu_custom_call.1} parent=11 // pred_region
          _
        $region16: #{tpu_custom_call.1} parent=11 // pred_fallthru
          _
        // Predicated region
        $region17: #{tpu_custom_call.1} parent=11 // pred_check
          %p689 = pneg %p183
        $region18: #{tpu_custom_call.1} parent=11 // pred_check_branch
          %691 = sbr.rel (%p689) target = $region20
        $region19: #{tpu_custom_call.1} parent=11 // pred_region
          _
        $region20: #{tpu_custom_call.1} parent=11 // pred_fallthru
          _
        // Predicated region
        $region21: #{tpu_custom_call.1} parent=11 // pred_check
          %p692 = pneg %p204
        $region22: #{tpu_custom_call.1} parent=11 // pred_check_branch
          %694 = sbr.rel (%p692) target = $region24
        $region23: #{tpu_custom_call.1} parent=11 // pred_region
          _
        $region24: #{tpu_custom_call.1} parent=11 // pred_fallthru
          _
        // Predicated region
        $region25: #{tpu_custom_call.1} parent=11 // pred_check
          %p695 = pneg %p225
        $region26: #{tpu_custom_call.1} parent=11 // pred_check_branch
          %697 = sbr.rel (%p695) target = $region28
        $region27: #{tpu_custom_call.1} parent=11 // pred_region
          _
        $region28: #{tpu_custom_call.1} parent=11 // pred_fallthru
          _
        // Predicated region
        $region29: #{tpu_custom_call.1} parent=11 // pred_check
          %p698 = pneg %p246
        $region30: #{tpu_custom_call.1} parent=11 // pred_check_branch
          %700 = sbr.rel (%p698) target = $region32
        $region31: #{tpu_custom_call.1} parent=11 // pred_region
          _
        $region32: #{tpu_custom_call.1} parent=11 // pred_fallthru
          _
        // Predicated region
        $region33: #{tpu_custom_call.1} parent=11 // pred_check
          %p701 = pneg %p267
        $region34: #{tpu_custom_call.1} parent=11 // pred_check_branch
          %703 = sbr.rel (%p701) target = $region36
        $region35: #{tpu_custom_call.1} parent=11 // pred_region
          _
        $region36: #{tpu_custom_call.1} parent=11 // pred_fallthru
          _
        // Predicated region
        $region37: #{tpu_custom_call.1} parent=11 // pred_check
          %p704 = pneg %p288
        $region38: #{tpu_custom_call.1} parent=11 // pred_check_branch
          %706 = sbr.rel (%p704) target = $region40
        $region39: #{tpu_custom_call.1} parent=11 // pred_region
          _
        $region40: #{tpu_custom_call.1} parent=11 // pred_fallthru
          _
        // Predicated region
        $region41: #{tpu_custom_call.1} parent=11 // pred_check
          %p707 = pneg %p309
        $region42: #{tpu_custom_call.1} parent=11 // pred_check_branch
          %709 = sbr.rel (%p707) target = $region44
        $region43: #{tpu_custom_call.1} parent=11 // pred_region
          _
        $region44: #{tpu_custom_call.1} parent=11 // pred_fallthru
          _
        // Predicated region
        $region45: #{tpu_custom_call.1} parent=11 // pred_check
          %p710 = pneg %p330
        $region46: #{tpu_custom_call.1} parent=11 // pred_check_branch
          %712 = sbr.rel (%p710) target = $region48
        $region47: #{tpu_custom_call.1} parent=11 // pred_region
          _
        $region48: #{tpu_custom_call.1} parent=11 // pred_fallthru
          _
        // Predicated region
        $region49: #{tpu_custom_call.1} parent=11 // pred_check
          %p713 = pneg %p351
        $region50: #{tpu_custom_call.1} parent=11 // pred_check_branch
          %715 = sbr.rel (%p713) target = $region52
        $region51: #{tpu_custom_call.1} parent=11 // pred_region
          _
        $region52: #{tpu_custom_call.1} parent=11 // pred_fallthru
          _
        // Predicated region
        $region53: #{tpu_custom_call.1} parent=11 // pred_check
          %p716 = pneg %p372
        $region54: #{tpu_custom_call.1} parent=11 // pred_check_branch
          %718 = sbr.rel (%p716) target = $region56
        $region55: #{tpu_custom_call.1} parent=11 // pred_region
          _
        $region56: #{tpu_custom_call.1} parent=11 // pred_fallthru
          _
        // Predicated region
        $region57: #{tpu_custom_call.1} parent=11 // pred_check
          %p719 = pneg %p393
        $region58: #{tpu_custom_call.1} parent=11 // pred_check_branch
          %721 = sbr.rel (%p719) target = $region60
        $region59: #{tpu_custom_call.1} parent=11 // pred_region
          _
        $region60: #{tpu_custom_call.1} parent=11 // pred_fallthru
          _
        // Predicated region
        $region61: #{tpu_custom_call.1} parent=11 // pred_check
          %p722 = pneg %p414
        $region62: #{tpu_custom_call.1} parent=11 // pred_check_branch
          %724 = sbr.rel (%p722) target = $region64
        $region63: #{tpu_custom_call.1} parent=11 // pred_region
          _
        $region64: #{tpu_custom_call.1} parent=11 // pred_fallthru
          _
        // Predicated region
        $region65: #{tpu_custom_call.1} parent=11 // pred_check
          %p725 = pneg %p435
        $region66: #{tpu_custom_call.1} parent=11 // pred_check_branch
          %727 = sbr.rel (%p725) target = $region68
        $region67: #{tpu_custom_call.1} parent=11 // pred_region
          _
        $region68: #{tpu_custom_call.1} parent=11 // pred_fallthru
          _
        // Predicated region
        $region69: #{tpu_custom_call.1} parent=11 // pred_check
          %p728 = pneg %p456
        $region70: #{tpu_custom_call.1} parent=11 // pred_check_branch
          %730 = sbr.rel (%p728) target = $region72
        $region71: #{tpu_custom_call.1} parent=11 // pred_region
          _
        $region72: #{tpu_custom_call.1} parent=11 // pred_fallthru
          _
        // Predicated region
        $region73: #{tpu_custom_call.1} parent=11 // pred_check
          %p731 = pneg %p477
        $region74: #{tpu_custom_call.1} parent=11 // pred_check_branch
          %733 = sbr.rel (%p731) target = $region76
        $region75: #{tpu_custom_call.1} parent=11 // pred_region
          _
        $region76: #{tpu_custom_call.1} parent=11 // pred_fallthru
          _
        // Predicated region
        $region77: #{tpu_custom_call.1} parent=11 // pred_check
          %p734 = pneg %p498
        $region78: #{tpu_custom_call.1} parent=11 // pred_check_branch
          %736 = sbr.rel (%p734) target = $region80
        $region79: #{tpu_custom_call.1} parent=11 // pred_region
          _
        $region80: #{tpu_custom_call.1} parent=11 // pred_fallthru
          _
        // Predicated region
        $region81: #{tpu_custom_call.1} parent=11 // pred_check
          %p737 = pneg %p519
        $region82: #{tpu_custom_call.1} parent=11 // pred_check_branch
          %739 = sbr.rel (%p737) target = $region84
        $region83: #{tpu_custom_call.1} parent=11 // pred_region
          _
        $region84: #{tpu_custom_call.1} parent=11 // pred_fallthru
          _
        // Predicated region
        $region85: #{tpu_custom_call.1} parent=11 // pred_check
          %p740 = pneg %p540
        $region86: #{tpu_custom_call.1} parent=11 // pred_check_branch
          %742 = sbr.rel (%p740) target = $region88
        $region87: #{tpu_custom_call.1} parent=11 // pred_region
          _
        $region88: #{tpu_custom_call.1} parent=11 // pred_fallthru
          _
        // Predicated region
        $region89: #{tpu_custom_call.1} parent=11 // pred_check
          %p743 = pneg %p561
        $region90: #{tpu_custom_call.1} parent=11 // pred_check_branch
          %745 = sbr.rel (%p743) target = $region92
        $region91: #{tpu_custom_call.1} parent=11 // pred_region
          _
        $region92: #{tpu_custom_call.1} parent=11 // pred_fallthru
          _
        // Predicated region
        $region93: #{tpu_custom_call.1} parent=11 // pred_check
          %p746 = pneg %p582
        $region94: #{tpu_custom_call.1} parent=11 // pred_check_branch
          %748 = sbr.rel (%p746) target = $region96
        $region95: #{tpu_custom_call.1} parent=11 // pred_region
          _
        $region96: #{tpu_custom_call.1} parent=11 // pred_fallthru
          _
        // Predicated region
        $region97: #{tpu_custom_call.1} parent=11 // pred_check
          %p749 = pneg %p603
        $region98: #{tpu_custom_call.1} parent=11 // pred_check_branch
          %751 = sbr.rel (%p749) target = $region100
        $region99: #{tpu_custom_call.1} parent=11 // pred_region
          _
        $region100: #{tpu_custom_call.1} parent=11 // pred_fallthru
          _
        // Predicated region
        $region101: #{tpu_custom_call.1} parent=11 // pred_check
          %p752 = pneg %p624
        $region102: #{tpu_custom_call.1} parent=11 // pred_check_branch
          %754 = sbr.rel (%p752) target = $region104
        $region103: #{tpu_custom_call.1} parent=11 // pred_region
          _
        $region104: #{tpu_custom_call.1} parent=11 // pred_fallthru
          _
        // Predicated region
        $region105: #{tpu_custom_call.1} parent=11 // pred_check
          %p755 = pneg %p645
        $region106: #{tpu_custom_call.1} parent=11 // pred_check_branch
          %757 = sbr.rel (%p755) target = $region108
        $region107: #{tpu_custom_call.1} parent=11 // pred_region
          _
        $region108: #{tpu_custom_call.1} parent=11 // pred_fallthru
          _
      $region12: #{tpu_custom_call.1} parent=5 // pred_fallthru
        _
      %p758 = scmp.lt.s32.totalorder %s37, 2
      // Predicated region
      $region109: #{tpu_custom_call.1} parent=5 // pred_check
        %p759 = pneg %p758
      $region110: #{tpu_custom_call.1} parent=5 // pred_check_branch
        %761 = sbr.rel (%p759) target = $region112
      $region111: #{tpu_custom_call.1} parent=5 // pred_region
        // Predicated region
        $region113: #{tpu_custom_call.1} parent=111 // pred_check
          %p762 = pneg %p57
        $region114: #{tpu_custom_call.1} parent=111 // pred_check_branch
          %764 = sbr.rel (%p762) target = $region116
        $region115: #{tpu_custom_call.1} parent=111 // pred_region
          %p765 = scmp.lt.s32.totalorder %s37, 1
          %s766 = scalar_select %p765, %s37, 1
          %s767 = smul.addr %s766, 2
          %s768 = smul.addr %s767, 8
          %s769 = scalar_lea.vmem %s0, %s768
        $region116: #{tpu_custom_call.1} parent=111 // pred_fallthru
          _
        // Predicated region
        $region117: #{tpu_custom_call.1} parent=111 // pred_check
          %p770 = pneg %p83
        $region118: #{tpu_custom_call.1} parent=111 // pred_check_branch
          %772 = sbr.rel (%p770) target = $region120
        $region119: #{tpu_custom_call.1} parent=111 // pred_region
          %p773 = scmp.lt.s32.totalorder %s37, 1
          %s774 = scalar_select %p773, %s37, 1
          %s775 = smul.addr %s774, 8
          %s776 = scalar_lea.vmem %s1, %s775
        $region120: #{tpu_custom_call.1} parent=111 // pred_fallthru
          _
        // Predicated region
        $region121: #{tpu_custom_call.1} parent=111 // pred_check
          %p777 = pneg %p109
        $region122: #{tpu_custom_call.1} parent=111 // pred_check_branch
          %779 = sbr.rel (%p777) target = $region124
        $region123: #{tpu_custom_call.1} parent=111 // pred_region
          %p780 = scmp.lt.s32.totalorder %s37, 1
          %s781 = scalar_select %p780, %s37, 1
          %s782 = smul.addr %s781, 2
          %s783 = smul.addr %s782, 8
          %s784 = scalar_lea.vmem %s2, %s783
        $region124: #{tpu_custom_call.1} parent=111 // pred_fallthru
          _
        // Predicated region
        $region125: #{tpu_custom_call.1} parent=111 // pred_check
          %p785 = pneg %p135
        $region126: #{tpu_custom_call.1} parent=111 // pred_check_branch
          %787 = sbr.rel (%p785) target = $region128
        $region127: #{tpu_custom_call.1} parent=111 // pred_region
          %p788 = scmp.lt.s32.totalorder %s37, 1
          %s789 = scalar_select %p788, %s37, 1
          %s790 = scalar_lea.vmem %s3, %s789
        $region128: #{tpu_custom_call.1} parent=111 // pred_fallthru
          _
      $region112: #{tpu_custom_call.1} parent=5 // pred_fallthru
        _
      %p791 = scmp.le.s32.totalorder 1, %s37
      %p792 = scmp.lt.s32.totalorder %s37, 3
      %p793 = pnand %p791, %p792
      %p794 = pneg %p793
      // Predicated region
      $region129: #{tpu_custom_call.1} parent=5 // pred_check
        _
      $region130: #{tpu_custom_call.1} parent=5 // pred_check_branch
        %796 = sbr.rel (%p793) target = $region132
      $region131: #{tpu_custom_call.1} parent=5 // pred_region
        %s797 = ssub.s32 %s37, 1
        %p798 = scmp.lt.s32.totalorder %s42, 1
        %s799 = scalar_select %p798, %s42, 1
        %s800 = smul.addr %s799, 2
        %s801 = smul.addr %s800, 8
        %s802 = scalar_lea.vmem %s0, %s801
        %p803 = pneg %p63
        %p804 = pneg %p60
        %p805 = scmp.lt.s32.totalorder %s42, 1
        %s806 = scalar_select %p805, %s42, 1
        %s807 = smul.addr %s806, 8
        %s808 = scalar_lea.vmem %s1, %s807
        %p809 = pneg %p89
        %p810 = pneg %p86
        %p811 = scmp.lt.s32.totalorder %s42, 1
        %s812 = scalar_select %p811, %s42, 1
        %s813 = smul.addr %s812, 2
        %s814 = smul.addr %s813, 8
        %s815 = scalar_lea.vmem %s2, %s814
        %p816 = pneg %p115
        %p817 = pneg %p112
        %p818 = scmp.lt.s32.totalorder %s42, 1
        %s819 = scalar_select %p818, %s42, 1
        %s820 = scalar_lea.vmem %s3, %s819
        %p821 = pneg %p141
        %p822 = pneg %p138
        %p823 = pneg %p162
        %p824 = pneg %p159
        %p825 = pneg %p183
        %p826 = pneg %p180
        %p827 = pneg %p204
        %p828 = pneg %p201
        %p829 = pneg %p225
        %p830 = pneg %p222
        %p831 = pneg %p246
        %p832 = pneg %p243
        %p833 = pneg %p267
        %p834 = pneg %p264
        %p835 = pneg %p288
        %p836 = pneg %p285
        %p837 = pneg %p309
        %p838 = pneg %p306
        %p839 = pneg %p330
        %p840 = pneg %p327
        %p841 = pneg %p351
        %p842 = pneg %p348
        %p843 = pneg %p372
        %p844 = pneg %p369
        %p845 = pneg %p393
        %p846 = pneg %p390
        %p847 = pneg %p414
        %p848 = pneg %p411
        %p849 = pneg %p435
        %p850 = pneg %p432
        %p851 = pneg %p456
        %p852 = pneg %p453
        %p853 = pneg %p477
        %p854 = pneg %p474
        %p855 = pneg %p498
        %p856 = pneg %p495
        %p857 = pneg %p519
        %p858 = pneg %p516
        %p859 = pneg %p540
        %p860 = pneg %p537
        %p861 = pneg %p561
        %p862 = pneg %p558
        %p863 = pneg %p582
        %p864 = pneg %p579
        %p865 = pneg %p603
        %p866 = pneg %p600
        %p867 = pneg %p624
        %p868 = pneg %p621
        %p869 = pneg %p645
        %p870 = pneg %p642
        %p871 = pneg %p671
        %p872 = pneg %p668
        %s873 = sand.u32 %s658, 1
        %s874 = scalar_lea.sflag [#allocation3], %s873
        %s875 = sand.u32 %s658, 1
        %s876 = smul.addr %s875, 8
        %s877 = scalar_lea.vmem [#allocation2], %s876
        %p878 = scmp.lt.s32.totalorder %s42, 1
        %s879 = scalar_select %p878, %s42, 1
        %s880 = smul.addr %s879, 2
        %s881 = smul.addr %s880, 8
        %s882 = scalar_lea.vmem %s0, %s881
        %p883 = scmp.lt.s32.totalorder %s42, 1
        %s884 = scalar_select %p883, %s42, 1
        %s885 = smul.addr %s884, 8
        %s886 = scalar_lea.vmem %s1, %s885
        %p887 = scmp.lt.s32.totalorder %s42, 1
        %s888 = scalar_select %p887, %s42, 1
        %s889 = smul.addr %s888, 2
        %s890 = smul.addr %s889, 8
        %s891 = scalar_lea.vmem %s2, %s890
        %p892 = scmp.lt.s32.totalorder %s42, 1
        %s893 = scalar_select %p892, %s42, 1
        %s894 = scalar_lea.vmem %s3, %s893
        %v895 = vld [vmem:[%s882] sm:$0xff]
        %v896 = vld [vmem:[%s882 + $0x8] sm:$0xff]
        %v897 = vld [vmem:[%s886] sm:$0xff]
        %v898 = vld [vmem:[%s891] sm:$0xff]
        %v899 = vld [vmem:[%s891 + $0x8] sm:$0xff]
        %v900 = vld [vmem:[%s894] sm:$0x1]
        %902 = vset.pattern.permute.xlu0 0
        %903 = vperm.xlu0 %902, %v898
        %v904 = vpop.permute.xlu0 %903
        %907 = vset.pattern.permute.xlu0 0
        %908 = vperm.xlu0 %907, %v899
        %v909 = vpop.permute.xlu0 %908
        %v912 = vlaneseq
        %v913 = vshrl.u32 %v912, 7
        %v914 = vsub.s32 0, %v913
        %v915 = vrot.slane %v900, %v914
        %v917 = vmul.f32 %v904, %v915
        %v918 = vmul.f32 %v909, %v915
        %vm919 = vcmp.eq.f32.partialorder %v917, 0.0
        %vm920 = vcmp.eq.f32.partialorder %v918, 0.0
        %vm921 = vcmp.eq.f32.partialorder %v900, 0.0
        %v922 = vld [vmem:[%s4] sm:$0xff]
        %v923 = vld [vmem:[%s4 + $0x8] sm:$0xff]
        %v924 = vld [vmem:[%s4 + $0x10] sm:$0xff]
        %v925 = vld [vmem:[%s4 + $0x18] sm:$0xff]
        %vm926 = vcmask 261120
        %v928 = vsel %vm926, %v895, 0
        %v931 = vsel %vm926, %v896, 0
        %933 = vmatprep.subr.mxu0 0.0
        %934 = vmatpush1.msra.mxu0 %v922
        %935 = vmatprep.subr.mxu0 0.0
        %936 = vmatpush1.msra.mxu0 %v923
        %937 = vmatprep.subr.mxu0 0.0
        %938 = vmatpush1.msra.mxu0 %v924
        %939 = vmatprep.subr.mxu0 0.0
        %940 = vmatpush1.msra.mxu0 %v925
        %941 = vmatprep.subr.mxu0 0.0
        %942 = vmatpush1.msra.mxu0 0.0
        %943 = vmatprep.subr.mxu0 0.0
        %944 = vmatpush1.msra.mxu0 0.0
        %945 = vmatprep.subr.mxu0 0.0
        %946 = vmatpush1.msra.mxu0 0.0
        %947 = vmatprep.subr.mxu0 0.0
        %948 = vmatpush1.msra.mxu0 0.0
        %949 = vmatprep.subr.mxu0 0.0
        %950 = vmatpush1.msra.mxu0 0.0
        %951 = vmatprep.subr.mxu0 0.0
        %952 = vmatpush1.msra.mxu0 0.0
        %953 = vmatprep.subr.mxu0 0.0
        %954 = vmatpush1.msra.mxu0 0.0
        %955 = vmatprep.subr.mxu0 0.0
        %956 = vmatpush1.msra.mxu0 0.0
        %957 = vmatprep.subr.mxu0 0.0
        %958 = vmatpush1.msra.mxu0 0.0
        %959 = vmatprep.subr.mxu0 0.0
        %960 = vmatpush1.msra.mxu0 0.0
        %961 = vmatprep.subr.mxu0 0.0
        %962 = vmatpush1.msra.mxu0 0.0
        %963 = vmatprep.subr.mxu0 0.0
        %964 = vmatpush1.msra.mxu0 0.0
        %965 = vmatprep.subr.mxu0 0.0
        %966 = vmatpush1.msra.mxu0 0.0
        %967 = vmatprep.subr.mxu0 0.0
        %968 = vmatpush1.msra.mxu0 0.0
        %969 = vmatprep.subr.mxu0 0.0
        %970 = vmatpush1.msra.mxu0 0.0
        %971 = vmatprep.subr.mxu0 0.0
        %972 = vmatpush1.msra.mxu0 0.0
        %973 = vmatprep.subr.mxu0 0.0
        %974 = vmatpush1.msra.mxu0 0.0
        %975 = vmatprep.subr.mxu0 0.0
        %976 = vmatpush1.msra.mxu0 0.0
        %977 = vmatprep.subr.mxu0 0.0
        %978 = vmatpush1.msra.mxu0 0.0
        %979 = vmatprep.subr.mxu0 0.0
        %980 = vmatpush1.msra.mxu0 0.0
        %981 = vmatprep.subr.mxu0 0.0
        %982 = vmatpush1.msra.mxu0 0.0
        %983 = vmatprep.subr.mxu0 0.0
        %984 = vmatpush1.msra.mxu0 0.0
        %985 = vmatprep.subr.mxu0 0.0
        %986 = vmatpush1.msra.mxu0 0.0
        %987 = vmatprep.subr.mxu0 0.0
        %988 = vmatpush1.msra.mxu0 0.0
        %989 = vmatprep.subr.mxu0 0.0
        %990 = vmatpush1.msra.mxu0 0.0
        %991 = vmatprep.subr.mxu0 0.0
        %992 = vmatpush1.msra.mxu0 0.0
        %993 = vmatprep.subr.mxu0 0.0
        %994 = vmatpush1.msra.mxu0 0.0
        %995 = vmatprep.subr.mxu0 0.0
        %996 = vmatpush1.msra.mxu0 0.0
        %997 = vmatprep.mubr.f32.mxu0 0.0
        %998 = vmatmul.mubr.f32.gmra.mrb[0].mxu0 %v928
        %v999 = vpop.f32.mrb[0].mxu0
        %v1000 = vadd.f32 0.0, %v999
        %v1001 = vpop.f32.mrb[0].mxu0
        %1002 = vmatprep.mubr.f32.mxu0 0.0
        %1003 = vmatmul.mubr.f32.gmra.mrb[0].mxu0 %v931
        %v1004 = vpop.f32.mrb[0].mxu0
        %v1005 = vadd.f32 0.0, %v1004
        %v1006 = vpop.f32.mrb[0].mxu0
        %1007 = vdwg.mxu0
        %v1008 = vmul.f32 %v1000, 0.17677669
        %v1009 = vmul.f32 %v1005, 0.17677669
        %v1010 = vld [vmem:[%s5] sm:$0xff]
        %v1011 = vld [vmem:[%s5 + $0x8] sm:$0xff]
        %v1012 = vld [vmem:[%s5 + $0x10] sm:$0xff]
        %v1013 = vld [vmem:[%s5 + $0x18] sm:$0xff]
        %v1014 = vld [vmem:[%s5 + $0x20] sm:$0xff]
        %v1015 = vld [vmem:[%s5 + $0x28] sm:$0xff]
        %v1016 = vld [vmem:[%s5 + $0x30] sm:$0xff]
        %v1017 = vld [vmem:[%s5 + $0x38] sm:$0xff]
        %1018 = vmatprep.subr.mxu0 %v1011
        %1019 = vmatpush1.msra.mxu0 %v1010
        %1020 = vmatprep.subr.mxu0 %v1013
        %1021 = vmatpush1.msra.mxu0 %v1012
        %1022 = vmatprep.subr.mxu0 %v1015
        %1023 = vmatpush1.msra.mxu0 %v1014
        %1024 = vmatprep.subr.mxu0 %v1017
        %1025 = vmatpush1.msra.mxu0 %v1016
        %1026 = vmatprep.subr.mxu0 0.0
        %1027 = vmatpush1.msra.mxu0 0.0
        %1028 = vmatprep.subr.mxu0 0.0
        %1029 = vmatpush1.msra.mxu0 0.0
        %1030 = vmatprep.subr.mxu0 0.0
        %1031 = vmatpush1.msra.mxu0 0.0
        %1032 = vmatprep.subr.mxu0 0.0
        %1033 = vmatpush1.msra.mxu0 0.0
        %1034 = vmatprep.subr.mxu0 0.0
        %1035 = vmatpush1.msra.mxu0 0.0
        %1036 = vmatprep.subr.mxu0 0.0
        %1037 = vmatpush1.msra.mxu0 0.0
        %1038 = vmatprep.subr.mxu0 0.0
        %1039 = vmatpush1.msra.mxu0 0.0
        %1040 = vmatprep.subr.mxu0 0.0
        %1041 = vmatpush1.msra.mxu0 0.0
        %1042 = vmatprep.subr.mxu0 0.0
        %1043 = vmatpush1.msra.mxu0 0.0
        %1044 = vmatprep.subr.mxu0 0.0
        %1045 = vmatpush1.msra.mxu0 0.0
        %1046 = vmatprep.subr.mxu0 0.0
        %1047 = vmatpush1.msra.mxu0 0.0
        %1048 = vmatprep.subr.mxu0 0.0
        %1049 = vmatpush1.msra.mxu0 0.0
        %1050 = vmatprep.subr.mxu0 0.0
        %1051 = vmatpush1.msra.mxu0 0.0
        %1052 = vmatprep.subr.mxu0 0.0
        %1053 = vmatpush1.msra.mxu0 0.0
        %1054 = vmatprep.subr.mxu0 0.0
        %1055 = vmatpush1.msra.mxu0 0.0
        %1056 = vmatprep.subr.mxu0 0.0
        %1057 = vmatpush1.msra.mxu0 0.0
        %1058 = vmatprep.subr.mxu0 0.0
        %1059 = vmatpush1.msra.mxu0 0.0
        %1060 = vmatprep.subr.mxu0 0.0
        %1061 = vmatpush1.msra.mxu0 0.0
        %1062 = vmatprep.subr.mxu0 0.0
        %1063 = vmatpush1.msra.mxu0 0.0
        %1064 = vmatprep.subr.mxu0 0.0
        %1065 = vmatpush1.msra.mxu0 0.0
        %1066 = vmatprep.subr.mxu0 0.0
        %1067 = vmatpush1.msra.mxu0 0.0
        %1068 = vmatprep.subr.mxu0 0.0
        %1069 = vmatpush1.msra.mxu0 0.0
        %1070 = vmatprep.subr.mxu0 0.0
        %1071 = vmatpush1.msra.mxu0 0.0
        %1072 = vmatprep.subr.mxu0 0.0
        %1073 = vmatpush1.msra.mxu0 0.0
        %1074 = vmatprep.subr.mxu0 0.0
        %1075 = vmatpush1.msra.mxu0 0.0
        %1076 = vmatprep.subr.mxu0 0.0
        %1077 = vmatpush1.msra.mxu0 0.0
        %1078 = vmatprep.subr.mxu0 0.0
        %1079 = vmatpush1.msra.mxu0 0.0
        %1080 = vmatprep.subr.mxu0 0.0
        %1081 = vmatpush1.msra.mxu0 0.0
        %1082 = vmatprep.mubr.f32.mxu0 0.0
        %1083 = vmatmul.mubr.f32.gmra.mrb[0].mxu0 %v928
        %v1084 = vpop.f32.mrb[0].mxu0
        %v1085 = vadd.f32 0.0, %v1084
        %v1086 = vpop.f32.mrb[0].mxu0
        %v1087 = vadd.f32 0.0, %v1086
        %1088 = vmatprep.mubr.f32.mxu0 0.0
        %1089 = vmatmul.mubr.f32.gmra.mrb[0].mxu0 %v931
        %v1090 = vpop.f32.mrb[0].mxu0
        %v1091 = vadd.f32 0.0, %v1090
        %v1092 = vpop.f32.mrb[0].mxu0
        %v1093 = vadd.f32 0.0, %v1092
        %1094 = vdwg.mxu0
        %v1096 = vsel %vm926, %v1008, 0
        %v1099 = vsel %vm926, %v1009, 0
        %v1102 = vsel %vm926, %v1085, 0
        %v1105 = vsel %vm926, %v1091, 0
        %1107 = vmatprep.subr.mxu0 0.0
        %1108 = vmatpush1.xpose.msra.mxu0 %v1102
        %1109 = vmatprep.subr.mxu0 0.0
        %1110 = vmatpush1.xpose.msra.mxu0 %v1105
        %1111 = vmatprep.subr.mxu0 0.0
        %1112 = vmatpush1.xpose.msra.mxu0 0.0
        %1113 = vmatprep.subr.mxu0 0.0
        %1114 = vmatpush1.xpose.msra.mxu0 0.0
        %1115 = vmatprep.subr.mxu0 0.0
        %1116 = vmatpush1.xpose.msra.mxu0 0.0
        %1117 = vmatprep.subr.mxu0 0.0
        %1118 = vmatpush1.xpose.msra.mxu0 0.0
        %1119 = vmatprep.subr.mxu0 0.0
        %1120 = vmatpush1.xpose.msra.mxu0 0.0
        %1121 = vmatprep.subr.mxu0 0.0
        %1122 = vmatpush1.xpose.msra.mxu0 0.0
        %1123 = vmatprep.subr.mxu0 0.0
        %1124 = vmatpush1.xpose.msra.mxu0 0.0
        %1125 = vmatprep.subr.mxu0 0.0
        %1126 = vmatpush1.xpose.msra.mxu0 0.0
        %1127 = vmatprep.subr.mxu0 0.0
        %1128 = vmatpush1.xpose.msra.mxu0 0.0
        %1129 = vmatprep.subr.mxu0 0.0
        %1130 = vmatpush1.xpose.msra.mxu0 0.0
        %1131 = vmatprep.subr.mxu0 0.0
        %1132 = vmatpush1.xpose.msra.mxu0 0.0
        %1133 = vmatprep.subr.mxu0 0.0
        %1134 = vmatpush1.xpose.msra.mxu0 0.0
        %1135 = vmatprep.subr.mxu0 0.0
        %1136 = vmatpush1.xpose.msra.mxu0 0.0
        %1137 = vmatprep.subr.mxu0 0.0
        %1138 = vmatpush1.xpose.msra.mxu0 0.0
        %1139 = vmatprep.subr.mxu0 0.0
        %1140 = vmatpush1.xpose.msra.mxu0 0.0
        %1141 = vmatprep.subr.mxu0 0.0
        %1142 = vmatpush1.xpose.msra.mxu0 0.0
        %1143 = vmatprep.subr.mxu0 0.0
        %1144 = vmatpush1.xpose.msra.mxu0 0.0
        %1145 = vmatprep.subr.mxu0 0.0
        %1146 = vmatpush1.xpose.msra.mxu0 0.0
        %1147 = vmatprep.subr.mxu0 0.0
        %1148 = vmatpush1.xpose.msra.mxu0 0.0
        %1149 = vmatprep.subr.mxu0 0.0
        %1150 = vmatpush1.xpose.msra.mxu0 0.0
        %1151 = vmatprep.subr.mxu0 0.0
        %1152 = vmatpush1.xpose.msra.mxu0 0.0
        %1153 = vmatprep.subr.mxu0 0.0
        %1154 = vmatpush1.xpose.msra.mxu0 0.0
        %1155 = vmatprep.subr.mxu0 0.0
        %1156 = vmatpush1.xpose.msra.mxu0 0.0
        %1157 = vmatprep.subr.mxu0 0.0
        %1158 = vmatpush1.xpose.msra.mxu0 0.0
        %1159 = vmatprep.subr.mxu0 0.0
        %1160 = vmatpush1.xpose.msra.mxu0 0.0
        %1161 = vmatprep.subr.mxu0 0.0
        %1162 = vmatpush1.xpose.msra.mxu0 0.0
        %1163 = vmatprep.subr.mxu0 0.0
        %1164 = vmatpush1.xpose.msra.mxu0 0.0
        %1165 = vmatprep.subr.mxu0 0.0
        %1166 = vmatpush1.xpose.msra.mxu0 0.0
        %1167 = vmatprep.subr.mxu0 0.0
        %1168 = vmatpush1.xpose.msra.mxu0 0.0
        %1169 = vmatprep.subr.mxu0 0.0
        %1170 = vmatpush1.xpose.msra.mxu0 0.0
        %1171 = vmatprep.mubr.f32.mxu0 0.0
        %1172 = vmatmul.mubr.f32.gmra.mrb[0].mxu0 %v1096
        %v1173 = vpop.f32.mrb[0].mxu0
        %v1174 = vadd.f32 0.0, %v1173
        %v1175 = vpop.f32.mrb[0].mxu0
        %1176 = vmatprep.mubr.f32.mxu0 0.0
        %1177 = vmatmul.mubr.f32.gmra.mrb[0].mxu0 %v1099
        %v1178 = vpop.f32.mrb[0].mxu0
        %v1179 = vadd.f32 0.0, %v1178
        %v1180 = vpop.f32.mrb[0].mxu0
        %1181 = vdwg.mxu0
        %v1182 = vsel %vm919, -1e+09, %v1174
        %v1183 = vsel %vm920, -1e+09, %v1179
        %vm1184 = vcmask 130048
        %v1185 = vsel %vm1184, %v1182, -inf
        %1186 = vmax.xlane.f32.xlu0 %v1185
        %v1187 = vpop.xlane.xlu0 %1186
        %v1188 = vsel %vm1184, %v1183, -inf
        %1189 = vmax.xlane.f32.xlu0 %v1188
        %v1190 = vpop.xlane.xlu0 %1189
        %v1191 = vsub.f32 %v1182, %v1187
        %v1192 = vsub.f32 %v1183, %v1190
        %v1193 = vmul.f32 %v1191, 1.442695
        %v1194 = vpow.pop %v1193
        %v1195 = vmul.f32 %v1192, 1.442695
        %v1196 = vpow.pop %v1195
        %v1197 = vsel %vm1184, %v1194, 0.0
        %1198 = vadd.xlane.f32.xlu0 %v1197
        %v1199 = vpop.xlane.xlu0 %1198
        %v1200 = vsel %vm1184, %v1196, 0.0
        %1201 = vadd.xlane.f32.xlu0 %v1200
        %v1202 = vpop.xlane.xlu0 %1201
        %v1203 = vrcp.pop %v1199
        %v1204 = vrcp.pop %v1202
        %v1205 = vmul.f32 %v1194, %v1203
        %v1206 = vmul.f32 %v1196, %v1204
        %v1208 = vsel %vm1184, %v1205, 0
        %v1211 = vsel %vm1184, %v1206, 0
        %1213 = vmatprep.subr.mxu0 0.0
        %1214 = vmatpush1.msra.mxu0 %v1087
        %1215 = vmatprep.subr.mxu0 0.0
        %1216 = vmatpush1.msra.mxu0 %v1093
        %1217 = vmatprep.subr.mxu0 0.0
        %1218 = vmatpush1.msra.mxu0 0.0
        %1219 = vmatprep.subr.mxu0 0.0
        %1220 = vmatpush1.msra.mxu0 0.0
        %1221 = vmatprep.subr.mxu0 0.0
        %1222 = vmatpush1.msra.mxu0 0.0
        %1223 = vmatprep.subr.mxu0 0.0
        %1224 = vmatpush1.msra.mxu0 0.0
        %1225 = vmatprep.subr.mxu0 0.0
        %1226 = vmatpush1.msra.mxu0 0.0
        %1227 = vmatprep.subr.mxu0 0.0
        %1228 = vmatpush1.msra.mxu0 0.0
        %1229 = vmatprep.subr.mxu0 0.0
        %1230 = vmatpush1.msra.mxu0 0.0
        %1231 = vmatprep.subr.mxu0 0.0
        %1232 = vmatpush1.msra.mxu0 0.0
        %1233 = vmatprep.subr.mxu0 0.0
        %1234 = vmatpush1.msra.mxu0 0.0
        %1235 = vmatprep.subr.mxu0 0.0
        %1236 = vmatpush1.msra.mxu0 0.0
        %1237 = vmatprep.subr.mxu0 0.0
        %1238 = vmatpush1.msra.mxu0 0.0
        %1239 = vmatprep.subr.mxu0 0.0
        %1240 = vmatpush1.msra.mxu0 0.0
        %1241 = vmatprep.subr.mxu0 0.0
        %1242 = vmatpush1.msra.mxu0 0.0
        %1243 = vmatprep.subr.mxu0 0.0
        %1244 = vmatpush1.msra.mxu0 0.0
        %1245 = vmatprep.subr.mxu0 0.0
        %1246 = vmatpush1.msra.mxu0 0.0
        %1247 = vmatprep.subr.mxu0 0.0
        %1248 = vmatpush1.msra.mxu0 0.0
        %1249 = vmatprep.subr.mxu0 0.0
        %1250 = vmatpush1.msra.mxu0 0.0
        %1251 = vmatprep.subr.mxu0 0.0
        %1252 = vmatpush1.msra.mxu0 0.0
        %1253 = vmatprep.subr.mxu0 0.0
        %1254 = vmatpush1.msra.mxu0 0.0
        %1255 = vmatprep.subr.mxu0 0.0
        %1256 = vmatpush1.msra.mxu0 0.0
        %1257 = vmatprep.subr.mxu0 0.0
        %1258 = vmatpush1.msra.mxu0 0.0
        %1259 = vmatprep.subr.mxu0 0.0
        %1260 = vmatpush1.msra.mxu0 0.0
        %1261 = vmatprep.subr.mxu0 0.0
        %1262 = vmatpush1.msra.mxu0 0.0
        %1263 = vmatprep.subr.mxu0 0.0
        %1264 = vmatpush1.msra.mxu0 0.0
        %1265 = vmatprep.subr.mxu0 0.0
        %1266 = vmatpush1.msra.mxu0 0.0
        %1267 = vmatprep.subr.mxu0 0.0
        %1268 = vmatpush1.msra.mxu0 0.0
        %1269 = vmatprep.subr.mxu0 0.0
        %1270 = vmatpush1.msra.mxu0 0.0
        %1271 = vmatprep.subr.mxu0 0.0
        %1272 = vmatpush1.msra.mxu0 0.0
        %1273 = vmatprep.subr.mxu0 0.0
        %1274 = vmatpush1.msra.mxu0 0.0
        %1275 = vmatprep.subr.mxu0 0.0
        %1276 = vmatpush1.msra.mxu0 0.0
        %1277 = vmatprep.mubr.f32.mxu0 0.0
        %1278 = vmatmul.mubr.f32.gmra.mrb[0].mxu0 %v1208
        %v1279 = vpop.f32.mrb[0].mxu0
        %v1280 = vadd.f32 0.0, %v1279
        %v1281 = vpop.f32.mrb[0].mxu0
        %1282 = vmatprep.mubr.f32.mxu0 0.0
        %1283 = vmatmul.mubr.f32.gmra.mrb[0].mxu0 %v1211
        %v1284 = vpop.f32.mrb[0].mxu0
        %v1285 = vadd.f32 0.0, %v1284
        %v1286 = vpop.f32.mrb[0].mxu0
        %1287 = vdwg.mxu0
        %1288 = vrot.lane.b32.xlu0 %v1008, 96
        %v1289 = vpop.permute.xlu0 %1288
        %1290 = vrot.lane.b32.xlu0 %v1009, 96
        %v1291 = vpop.permute.xlu0 %1290
        %1292 = vrot.lane.b32.xlu0 %v1085, 96
        %v1293 = vpop.permute.xlu0 %1292
        %1294 = vrot.lane.b32.xlu0 %v1091, 96
        %v1295 = vpop.permute.xlu0 %1294
        %v1296 = vsel %vm926, %v1289, 0
        %v1298 = vsel %vm926, %v1291, 0
        %v1300 = vsel %vm926, %v1293, 0
        %v1302 = vsel %vm926, %v1295, 0
        %1304 = vmatprep.subr.mxu0 0.0
        %1305 = vmatpush1.xpose.msra.mxu0 %v1300
        %1306 = vmatprep.subr.mxu0 0.0
        %1307 = vmatpush1.xpose.msra.mxu0 %v1302
        %1308 = vmatprep.subr.mxu0 0.0
        %1309 = vmatpush1.xpose.msra.mxu0 0.0
        %1310 = vmatprep.subr.mxu0 0.0
        %1311 = vmatpush1.xpose.msra.mxu0 0.0
        %1312 = vmatprep.subr.mxu0 0.0
        %1313 = vmatpush1.xpose.msra.mxu0 0.0
        %1314 = vmatprep.subr.mxu0 0.0
        %1315 = vmatpush1.xpose.msra.mxu0 0.0
        %1316 = vmatprep.subr.mxu0 0.0
        %1317 = vmatpush1.xpose.msra.mxu0 0.0
        %1318 = vmatprep.subr.mxu0 0.0
        %1319 = vmatpush1.xpose.msra.mxu0 0.0
        %1320 = vmatprep.subr.mxu0 0.0
        %1321 = vmatpush1.xpose.msra.mxu0 0.0
        %1322 = vmatprep.subr.mxu0 0.0
        %1323 = vmatpush1.xpose.msra.mxu0 0.0
        %1324 = vmatprep.subr.mxu0 0.0
        %1325 = vmatpush1.xpose.msra.mxu0 0.0
        %1326 = vmatprep.subr.mxu0 0.0
        %1327 = vmatpush1.xpose.msra.mxu0 0.0
        %1328 = vmatprep.subr.mxu0 0.0
        %1329 = vmatpush1.xpose.msra.mxu0 0.0
        %1330 = vmatprep.subr.mxu0 0.0
        %1331 = vmatpush1.xpose.msra.mxu0 0.0
        %1332 = vmatprep.subr.mxu0 0.0
        %1333 = vmatpush1.xpose.msra.mxu0 0.0
        %1334 = vmatprep.subr.mxu0 0.0
        %1335 = vmatpush1.xpose.msra.mxu0 0.0
        %1336 = vmatprep.subr.mxu0 0.0
        %1337 = vmatpush1.xpose.msra.mxu0 0.0
        %1338 = vmatprep.subr.mxu0 0.0
        %1339 = vmatpush1.xpose.msra.mxu0 0.0
        %1340 = vmatprep.subr.mxu0 0.0
        %1341 = vmatpush1.xpose.msra.mxu0 0.0
        %1342 = vmatprep.subr.mxu0 0.0
        %1343 = vmatpush1.xpose.msra.mxu0 0.0
        %1344 = vmatprep.subr.mxu0 0.0
        %1345 = vmatpush1.xpose.msra.mxu0 0.0
        %1346 = vmatprep.subr.mxu0 0.0
        %1347 = vmatpush1.xpose.msra.mxu0 0.0
        %1348 = vmatprep.subr.mxu0 0.0
        %1349 = vmatpush1.xpose.msra.mxu0 0.0
        %1350 = vmatprep.subr.mxu0 0.0
        %1351 = vmatpush1.xpose.msra.mxu0 0.0
        %1352 = vmatprep.subr.mxu0 0.0
        %1353 = vmatpush1.xpose.msra.mxu0 0.0
        %1354 = vmatprep.subr.mxu0 0.0
        %1355 = vmatpush1.xpose.msra.mxu0 0.0
        %1356 = vmatprep.subr.mxu0 0.0
        %1357 = vmatpush1.xpose.msra.mxu0 0.0
        %1358 = vmatprep.subr.mxu0 0.0
        %1359 = vmatpush1.xpose.msra.mxu0 0.0
        %1360 = vmatprep.subr.mxu0 0.0
        %1361 = vmatpush1.xpose.msra.mxu0 0.0
        %1362 = vmatprep.subr.mxu0 0.0
        %1363 = vmatpush1.xpose.msra.mxu0 0.0
        %1364 = vmatprep.subr.mxu0 0.0
        %1365 = vmatpush1.xpose.msra.mxu0 0.0
        %1366 = vmatprep.subr.mxu0 0.0
        %1367 = vmatpush1.xpose.msra.mxu0 0.0
        %1368 = vmatprep.mubr.f32.mxu0 0.0
        %1369 = vmatmul.mubr.f32.gmra.mrb[0].mxu0 %v1296
        %v1370 = vpop.f32.mrb[0].mxu0
        %v1371 = vadd.f32 0.0, %v1370
        %v1372 = vpop.f32.mrb[0].mxu0
        %1373 = vmatprep.mubr.f32.mxu0 0.0
        %1374 = vmatmul.mubr.f32.gmra.mrb[0].mxu0 %v1298
        %v1375 = vpop.f32.mrb[0].mxu0
        %v1376 = vadd.f32 0.0, %v1375
        %v1377 = vpop.f32.mrb[0].mxu0
        %1378 = vdwg.mxu0
        %v1379 = vsel %vm919, -1e+09, %v1371
        %v1380 = vsel %vm920, -1e+09, %v1376
        %v1381 = vsel %vm1184, %v1379, -inf
        %1382 = vmax.xlane.f32.xlu0 %v1381
        %v1383 = vpop.xlane.xlu0 %1382
        %v1384 = vsel %vm1184, %v1380, -inf
        %1385 = vmax.xlane.f32.xlu0 %v1384
        %v1386 = vpop.xlane.xlu0 %1385
        %v1387 = vsub.f32 %v1379, %v1383
        %v1388 = vsub.f32 %v1380, %v1386
        %v1389 = vmul.f32 %v1387, 1.442695
        %v1390 = vpow.pop %v1389
        %v1391 = vmul.f32 %v1388, 1.442695
        %v1392 = vpow.pop %v1391
        %v1393 = vsel %vm1184, %v1390, 0.0
        %1394 = vadd.xlane.f32.xlu0 %v1393
        %v1395 = vpop.xlane.xlu0 %1394
        %v1396 = vsel %vm1184, %v1392, 0.0
        %1397 = vadd.xlane.f32.xlu0 %v1396
        %v1398 = vpop.xlane.xlu0 %1397
        %v1399 = vrcp.pop %v1395
        %v1400 = vrcp.pop %v1398
        %v1401 = vmul.f32 %v1390, %v1399
        %v1402 = vmul.f32 %v1392, %v1400
        %1405 = vrot.lane.b32.xlu0 %v1087, 96
        %v1406 = vpop.permute.xlu0 %1405
        %1407 = vrot.lane.b32.xlu0 %v1093, 96
        %v1408 = vpop.permute.xlu0 %1407
        %v1412 = vsel %vm1184, %v1401, 0
        %v1415 = vsel %vm1184, %v1402, 0
        %1417 = vmatprep.subr.mxu0 0.0
        %1418 = vmatpush1.msra.mxu0 %v1406
        %1419 = vmatprep.subr.mxu0 0.0
        %1420 = vmatpush1.msra.mxu0 %v1408
        %1421 = vmatprep.subr.mxu0 0.0
        %1422 = vmatpush1.msra.mxu0 0.0
        %1423 = vmatprep.subr.mxu0 0.0
        %1424 = vmatpush1.msra.mxu0 0.0
        %1425 = vmatprep.subr.mxu0 0.0
        %1426 = vmatpush1.msra.mxu0 0.0
        %1427 = vmatprep.subr.mxu0 0.0
        %1428 = vmatpush1.msra.mxu0 0.0
        %1429 = vmatprep.subr.mxu0 0.0
        %1430 = vmatpush1.msra.mxu0 0.0
        %1431 = vmatprep.subr.mxu0 0.0
        %1432 = vmatpush1.msra.mxu0 0.0
        %1433 = vmatprep.subr.mxu0 0.0
        %1434 = vmatpush1.msra.mxu0 0.0
        %1435 = vmatprep.subr.mxu0 0.0
        %1436 = vmatpush1.msra.mxu0 0.0
        %1437 = vmatprep.subr.mxu0 0.0
        %1438 = vmatpush1.msra.mxu0 0.0
        %1439 = vmatprep.subr.mxu0 0.0
        %1440 = vmatpush1.msra.mxu0 0.0
        %1441 = vmatprep.subr.mxu0 0.0
        %1442 = vmatpush1.msra.mxu0 0.0
        %1443 = vmatprep.subr.mxu0 0.0
        %1444 = vmatpush1.msra.mxu0 0.0
        %1445 = vmatprep.subr.mxu0 0.0
        %1446 = vmatpush1.msra.mxu0 0.0
        %1447 = vmatprep.subr.mxu0 0.0
        %1448 = vmatpush1.msra.mxu0 0.0
        %1449 = vmatprep.subr.mxu0 0.0
        %1450 = vmatpush1.msra.mxu0 0.0
        %1451 = vmatprep.subr.mxu0 0.0
        %1452 = vmatpush1.msra.mxu0 0.0
        %1453 = vmatprep.subr.mxu0 0.0
        %1454 = vmatpush1.msra.mxu0 0.0
        %1455 = vmatprep.subr.mxu0 0.0
        %1456 = vmatpush1.msra.mxu0 0.0
        %1457 = vmatprep.subr.mxu0 0.0
        %1458 = vmatpush1.msra.mxu0 0.0
        %1459 = vmatprep.subr.mxu0 0.0
        %1460 = vmatpush1.msra.mxu0 0.0
        %1461 = vmatprep.subr.mxu0 0.0
        %1462 = vmatpush1.msra.mxu0 0.0
        %1463 = vmatprep.subr.mxu0 0.0
        %1464 = vmatpush1.msra.mxu0 0.0
        %1465 = vmatprep.subr.mxu0 0.0
        %1466 = vmatpush1.msra.mxu0 0.0
        %1467 = vmatprep.subr.mxu0 0.0
        %1468 = vmatpush1.msra.mxu0 0.0
        %1469 = vmatprep.subr.mxu0 0.0
        %1470 = vmatpush1.msra.mxu0 0.0
        %1471 = vmatprep.subr.mxu0 0.0
        %1472 = vmatpush1.msra.mxu0 0.0
        %1473 = vmatprep.subr.mxu0 0.0
        %1474 = vmatpush1.msra.mxu0 0.0
        %1475 = vmatprep.subr.mxu0 0.0
        %1476 = vmatpush1.msra.mxu0 0.0
        %1477 = vmatprep.subr.mxu0 0.0
        %1478 = vmatpush1.msra.mxu0 0.0
        %1479 = vmatprep.subr.mxu0 0.0
        %1480 = vmatpush1.msra.mxu0 0.0
        %1481 = vmatprep.mubr.f32.mxu0 0.0
        %1482 = vmatmul.mubr.f32.gmra.mrb[0].mxu0 %v1412
        %v1483 = vpop.f32.mrb[0].mxu0
        %v1484 = vadd.f32 0.0, %v1483
        %v1485 = vpop.f32.mrb[0].mxu0
        %1486 = vmatprep.mubr.f32.mxu0 0.0
        %1487 = vmatmul.mubr.f32.gmra.mrb[0].mxu0 %v1415
        %v1488 = vpop.f32.mrb[0].mxu0
        %v1489 = vadd.f32 0.0, %v1488
        %v1490 = vpop.f32.mrb[0].mxu0
        %1491 = vdwg.mxu0
        %1492 = vrot.lane.b32.xlu0 %v1008, 64
        %v1493 = vpop.permute.xlu0 %1492
        %1494 = vrot.lane.b32.xlu0 %v1009, 64
        %v1495 = vpop.permute.xlu0 %1494
        %1496 = vrot.lane.b32.xlu0 %v1085, 64
        %v1497 = vpop.permute.xlu0 %1496
        %1498 = vrot.lane.b32.xlu0 %v1091, 64
        %v1499 = vpop.permute.xlu0 %1498
        %v1500 = vsel %vm926, %v1493, 0
        %v1502 = vsel %vm926, %v1495, 0
        %v1504 = vsel %vm926, %v1497, 0
        %v1506 = vsel %vm926, %v1499, 0
        %1508 = vmatprep.subr.mxu0 0.0
        %1509 = vmatpush1.xpose.msra.mxu0 %v1504
        %1510 = vmatprep.subr.mxu0 0.0
        %1511 = vmatpush1.xpose.msra.mxu0 %v1506
        %1512 = vmatprep.subr.mxu0 0.0
        %1513 = vmatpush1.xpose.msra.mxu0 0.0
        %1514 = vmatprep.subr.mxu0 0.0
        %1515 = vmatpush1.xpose.msra.mxu0 0.0
        %1516 = vmatprep.subr.mxu0 0.0
        %1517 = vmatpush1.xpose.msra.mxu0 0.0
        %1518 = vmatprep.subr.mxu0 0.0
        %1519 = vmatpush1.xpose.msra.mxu0 0.0
        %1520 = vmatprep.subr.mxu0 0.0
        %1521 = vmatpush1.xpose.msra.mxu0 0.0
        %1522 = vmatprep.subr.mxu0 0.0
        %1523 = vmatpush1.xpose.msra.mxu0 0.0
        %1524 = vmatprep.subr.mxu0 0.0
        %1525 = vmatpush1.xpose.msra.mxu0 0.0
        %1526 = vmatprep.subr.mxu0 0.0
        %1527 = vmatpush1.xpose.msra.mxu0 0.0
        %1528 = vmatprep.subr.mxu0 0.0
        %1529 = vmatpush1.xpose.msra.mxu0 0.0
        %1530 = vmatprep.subr.mxu0 0.0
        %1531 = vmatpush1.xpose.msra.mxu0 0.0
        %1532 = vmatprep.subr.mxu0 0.0
        %1533 = vmatpush1.xpose.msra.mxu0 0.0
        %1534 = vmatprep.subr.mxu0 0.0
        %1535 = vmatpush1.xpose.msra.mxu0 0.0
        %1536 = vmatprep.subr.mxu0 0.0
        %1537 = vmatpush1.xpose.msra.mxu0 0.0
        %1538 = vmatprep.subr.mxu0 0.0
        %1539 = vmatpush1.xpose.msra.mxu0 0.0
        %1540 = vmatprep.subr.mxu0 0.0
        %1541 = vmatpush1.xpose.msra.mxu0 0.0
        %1542 = vmatprep.subr.mxu0 0.0
        %1543 = vmatpush1.xpose.msra.mxu0 0.0
        %1544 = vmatprep.subr.mxu0 0.0
        %1545 = vmatpush1.xpose.msra.mxu0 0.0
        %1546 = vmatprep.subr.mxu0 0.0
        %1547 = vmatpush1.xpose.msra.mxu0 0.0
        %1548 = vmatprep.subr.mxu0 0.0
        %1549 = vmatpush1.xpose.msra.mxu0 0.0
        %1550 = vmatprep.subr.mxu0 0.0
        %1551 = vmatpush1.xpose.msra.mxu0 0.0
        %1552 = vmatprep.subr.mxu0 0.0
        %1553 = vmatpush1.xpose.msra.mxu0 0.0
        %1554 = vmatprep.subr.mxu0 0.0
        %1555 = vmatpush1.xpose.msra.mxu0 0.0
        %1556 = vmatprep.subr.mxu0 0.0
        %1557 = vmatpush1.xpose.msra.mxu0 0.0
        %1558 = vmatprep.subr.mxu0 0.0
        %1559 = vmatpush1.xpose.msra.mxu0 0.0
        %1560 = vmatprep.subr.mxu0 0.0
        %1561 = vmatpush1.xpose.msra.mxu0 0.0
        %1562 = vmatprep.subr.mxu0 0.0
        %1563 = vmatpush1.xpose.msra.mxu0 0.0
        %1564 = vmatprep.subr.mxu0 0.0
        %1565 = vmatpush1.xpose.msra.mxu0 0.0
        %1566 = vmatprep.subr.mxu0 0.0
        %1567 = vmatpush1.xpose.msra.mxu0 0.0
        %1568 = vmatprep.subr.mxu0 0.0
        %1569 = vmatpush1.xpose.msra.mxu0 0.0
        %1570 = vmatprep.subr.mxu0 0.0
        %1571 = vmatpush1.xpose.msra.mxu0 0.0
        %1572 = vmatprep.mubr.f32.mxu0 0.0
        %1573 = vmatmul.mubr.f32.gmra.mrb[0].mxu0 %v1500
        %v1574 = vpop.f32.mrb[0].mxu0
        %v1575 = vadd.f32 0.0, %v1574
        %v1576 = vpop.f32.mrb[0].mxu0
        %1577 = vmatprep.mubr.f32.mxu0 0.0
        %1578 = vmatmul.mubr.f32.gmra.mrb[0].mxu0 %v1502
        %v1579 = vpop.f32.mrb[0].mxu0
        %v1580 = vadd.f32 0.0, %v1579
        %v1581 = vpop.f32.mrb[0].mxu0
        %1582 = vdwg.mxu0
        %v1583 = vsel %vm919, -1e+09, %v1575
        %v1584 = vsel %vm920, -1e+09, %v1580
        %v1585 = vsel %vm1184, %v1583, -inf
        %1586 = vmax.xlane.f32.xlu0 %v1585
        %v1587 = vpop.xlane.xlu0 %1586
        %v1588 = vsel %vm1184, %v1584, -inf
        %1589 = vmax.xlane.f32.xlu0 %v1588
        %v1590 = vpop.xlane.xlu0 %1589
        %v1591 = vsub.f32 %v1583, %v1587
        %v1592 = vsub.f32 %v1584, %v1590
        %v1593 = vmul.f32 %v1591, 1.442695
        %v1594 = vpow.pop %v1593
        %v1595 = vmul.f32 %v1592, 1.442695
        %v1596 = vpow.pop %v1595
        %v1597 = vsel %vm1184, %v1594, 0.0
        %1598 = vadd.xlane.f32.xlu0 %v1597
        %v1599 = vpop.xlane.xlu0 %1598
        %v1600 = vsel %vm1184, %v1596, 0.0
        %1601 = vadd.xlane.f32.xlu0 %v1600
        %v1602 = vpop.xlane.xlu0 %1601
        %v1603 = vrcp.pop %v1599
        %v1604 = vrcp.pop %v1602
        %v1605 = vmul.f32 %v1594, %v1603
        %v1606 = vmul.f32 %v1596, %v1604
        %1607 = vrot.lane.b32.xlu0 %v1087, 64
        %v1608 = vpop.permute.xlu0 %1607
        %1609 = vrot.lane.b32.xlu0 %v1093, 64
        %v1610 = vpop.permute.xlu0 %1609
        %v1614 = vsel %vm1184, %v1605, 0
        %v1617 = vsel %vm1184, %v1606, 0
        %1619 = vmatprep.subr.mxu0 0.0
        %1620 = vmatpush1.msra.mxu0 %v1608
        %1621 = vmatprep.subr.mxu0 0.0
        %1622 = vmatpush1.msra.mxu0 %v1610
        %1623 = vmatprep.subr.mxu0 0.0
        %1624 = vmatpush1.msra.mxu0 0.0
        %1625 = vmatprep.subr.mxu0 0.0
        %1626 = vmatpush1.msra.mxu0 0.0
        %1627 = vmatprep.subr.mxu0 0.0
        %1628 = vmatpush1.msra.mxu0 0.0
        %1629 = vmatprep.subr.mxu0 0.0
        %1630 = vmatpush1.msra.mxu0 0.0
        %1631 = vmatprep.subr.mxu0 0.0
        %1632 = vmatpush1.msra.mxu0 0.0
        %1633 = vmatprep.subr.mxu0 0.0
        %1634 = vmatpush1.msra.mxu0 0.0
        %1635 = vmatprep.subr.mxu0 0.0
        %1636 = vmatpush1.msra.mxu0 0.0
        %1637 = vmatprep.subr.mxu0 0.0
        %1638 = vmatpush1.msra.mxu0 0.0
        %1639 = vmatprep.subr.mxu0 0.0
        %1640 = vmatpush1.msra.mxu0 0.0
        %1641 = vmatprep.subr.mxu0 0.0
        %1642 = vmatpush1.msra.mxu0 0.0
        %1643 = vmatprep.subr.mxu0 0.0
        %1644 = vmatpush1.msra.mxu0 0.0
        %1645 = vmatprep.subr.mxu0 0.0
        %1646 = vmatpush1.msra.mxu0 0.0
        %1647 = vmatprep.subr.mxu0 0.0
        %1648 = vmatpush1.msra.mxu0 0.0
        %1649 = vmatprep.subr.mxu0 0.0
        %1650 = vmatpush1.msra.mxu0 0.0
        %1651 = vmatprep.subr.mxu0 0.0
        %1652 = vmatpush1.msra.mxu0 0.0
        %1653 = vmatprep.subr.mxu0 0.0
        %1654 = vmatpush1.msra.mxu0 0.0
        %1655 = vmatprep.subr.mxu0 0.0
        %1656 = vmatpush1.msra.mxu0 0.0
        %1657 = vmatprep.subr.mxu0 0.0
        %1658 = vmatpush1.msra.mxu0 0.0
        %1659 = vmatprep.subr.mxu0 0.0
        %1660 = vmatpush1.msra.mxu0 0.0
        %1661 = vmatprep.subr.mxu0 0.0
        %1662 = vmatpush1.msra.mxu0 0.0
        %1663 = vmatprep.subr.mxu0 0.0
        %1664 = vmatpush1.msra.mxu0 0.0
        %1665 = vmatprep.subr.mxu0 0.0
        %1666 = vmatpush1.msra.mxu0 0.0
        %1667 = vmatprep.subr.mxu0 0.0
        %1668 = vmatpush1.msra.mxu0 0.0
        %1669 = vmatprep.subr.mxu0 0.0
        %1670 = vmatpush1.msra.mxu0 0.0
        %1671 = vmatprep.subr.mxu0 0.0
        %1672 = vmatpush1.msra.mxu0 0.0
        %1673 = vmatprep.subr.mxu0 0.0
        %1674 = vmatpush1.msra.mxu0 0.0
        %1675 = vmatprep.subr.mxu0 0.0
        %1676 = vmatpush1.msra.mxu0 0.0
        %1677 = vmatprep.subr.mxu0 0.0
        %1678 = vmatpush1.msra.mxu0 0.0
        %1679 = vmatprep.subr.mxu0 0.0
        %1680 = vmatpush1.msra.mxu0 0.0
        %1681 = vmatprep.subr.mxu0 0.0
        %1682 = vmatpush1.msra.mxu0 0.0
        %1683 = vmatprep.mubr.f32.mxu0 0.0
        %1684 = vmatmul.mubr.f32.gmra.mrb[0].mxu0 %v1614
        %v1685 = vpop.f32.mrb[0].mxu0
        %v1686 = vadd.f32 0.0, %v1685
        %v1687 = vpop.f32.mrb[0].mxu0
        %1688 = vmatprep.mubr.f32.mxu0 0.0
        %1689 = vmatmul.mubr.f32.gmra.mrb[0].mxu0 %v1617
        %v1690 = vpop.f32.mrb[0].mxu0
        %v1691 = vadd.f32 0.0, %v1690
        %v1692 = vpop.f32.mrb[0].mxu0
        %1693 = vdwg.mxu0
        %1694 = vrot.lane.b32.xlu0 %v1008, 32
        %v1695 = vpop.permute.xlu0 %1694
        %1696 = vrot.lane.b32.xlu0 %v1009, 32
        %v1697 = vpop.permute.xlu0 %1696
        %1698 = vrot.lane.b32.xlu0 %v1085, 32
        %v1699 = vpop.permute.xlu0 %1698
        %1700 = vrot.lane.b32.xlu0 %v1091, 32
        %v1701 = vpop.permute.xlu0 %1700
        %v1702 = vsel %vm926, %v1695, 0
        %v1704 = vsel %vm926, %v1697, 0
        %v1706 = vsel %vm926, %v1699, 0
        %v1708 = vsel %vm926, %v1701, 0
        %1710 = vmatprep.subr.mxu0 0.0
        %1711 = vmatpush1.xpose.msra.mxu0 %v1706
        %1712 = vmatprep.subr.mxu0 0.0
        %1713 = vmatpush1.xpose.msra.mxu0 %v1708
        %1714 = vmatprep.subr.mxu0 0.0
        %1715 = vmatpush1.xpose.msra.mxu0 0.0
        %1716 = vmatprep.subr.mxu0 0.0
        %1717 = vmatpush1.xpose.msra.mxu0 0.0
        %1718 = vmatprep.subr.mxu0 0.0
        %1719 = vmatpush1.xpose.msra.mxu0 0.0
        %1720 = vmatprep.subr.mxu0 0.0
        %1721 = vmatpush1.xpose.msra.mxu0 0.0
        %1722 = vmatprep.subr.mxu0 0.0
        %1723 = vmatpush1.xpose.msra.mxu0 0.0
        %1724 = vmatprep.subr.mxu0 0.0
        %1725 = vmatpush1.xpose.msra.mxu0 0.0
        %1726 = vmatprep.subr.mxu0 0.0
        %1727 = vmatpush1.xpose.msra.mxu0 0.0
        %1728 = vmatprep.subr.mxu0 0.0
        %1729 = vmatpush1.xpose.msra.mxu0 0.0
        %1730 = vmatprep.subr.mxu0 0.0
        %1731 = vmatpush1.xpose.msra.mxu0 0.0
        %1732 = vmatprep.subr.mxu0 0.0
        %1733 = vmatpush1.xpose.msra.mxu0 0.0
        %1734 = vmatprep.subr.mxu0 0.0
        %1735 = vmatpush1.xpose.msra.mxu0 0.0
        %1736 = vmatprep.subr.mxu0 0.0
        %1737 = vmatpush1.xpose.msra.mxu0 0.0
        %1738 = vmatprep.subr.mxu0 0.0
        %1739 = vmatpush1.xpose.msra.mxu0 0.0
        %1740 = vmatprep.subr.mxu0 0.0
        %1741 = vmatpush1.xpose.msra.mxu0 0.0
        %1742 = vmatprep.subr.mxu0 0.0
        %1743 = vmatpush1.xpose.msra.mxu0 0.0
        %1744 = vmatprep.subr.mxu0 0.0
        %1745 = vmatpush1.xpose.msra.mxu0 0.0
        %1746 = vmatprep.subr.mxu0 0.0
        %1747 = vmatpush1.xpose.msra.mxu0 0.0
        %1748 = vmatprep.subr.mxu0 0.0
        %1749 = vmatpush1.xpose.msra.mxu0 0.0
        %1750 = vmatprep.subr.mxu0 0.0
        %1751 = vmatpush1.xpose.msra.mxu0 0.0
        %1752 = vmatprep.subr.mxu0 0.0
        %1753 = vmatpush1.xpose.msra.mxu0 0.0
        %1754 = vmatprep.subr.mxu0 0.0
        %1755 = vmatpush1.xpose.msra.mxu0 0.0
        %1756 = vmatprep.subr.mxu0 0.0
        %1757 = vmatpush1.xpose.msra.mxu0 0.0
        %1758 = vmatprep.subr.mxu0 0.0
        %1759 = vmatpush1.xpose.msra.mxu0 0.0
        %1760 = vmatprep.subr.mxu0 0.0
        %1761 = vmatpush1.xpose.msra.mxu0 0.0
        %1762 = vmatprep.subr.mxu0 0.0
        %1763 = vmatpush1.xpose.msra.mxu0 0.0
        %1764 = vmatprep.subr.mxu0 0.0
        %1765 = vmatpush1.xpose.msra.mxu0 0.0
        %1766 = vmatprep.subr.mxu0 0.0
        %1767 = vmatpush1.xpose.msra.mxu0 0.0
        %1768 = vmatprep.subr.mxu0 0.0
        %1769 = vmatpush1.xpose.msra.mxu0 0.0
        %1770 = vmatprep.subr.mxu0 0.0
        %1771 = vmatpush1.xpose.msra.mxu0 0.0
        %1772 = vmatprep.subr.mxu0 0.0
        %1773 = vmatpush1.xpose.msra.mxu0 0.0
        %1774 = vmatprep.mubr.f32.mxu0 0.0
        %1775 = vmatmul.mubr.f32.gmra.mrb[0].mxu0 %v1702
        %v1776 = vpop.f32.mrb[0].mxu0
        %v1777 = vadd.f32 0.0, %v1776
        %v1778 = vpop.f32.mrb[0].mxu0
        %1779 = vmatprep.mubr.f32.mxu0 0.0
        %1780 = vmatmul.mubr.f32.gmra.mrb[0].mxu0 %v1704
        %v1781 = vpop.f32.mrb[0].mxu0
        %v1782 = vadd.f32 0.0, %v1781
        %v1783 = vpop.f32.mrb[0].mxu0
        %1784 = vdwg.mxu0
        %v1785 = vsel %vm919, -1e+09, %v1777
        %v1786 = vsel %vm920, -1e+09, %v1782
        %v1787 = vsel %vm1184, %v1785, -inf
        %1788 = vmax.xlane.f32.xlu0 %v1787
        %v1789 = vpop.xlane.xlu0 %1788
        %v1790 = vsel %vm1184, %v1786, -inf
        %1791 = vmax.xlane.f32.xlu0 %v1790
        %v1792 = vpop.xlane.xlu0 %1791
        %v1793 = vsub.f32 %v1785, %v1789
        %v1794 = vsub.f32 %v1786, %v1792
        %v1795 = vmul.f32 %v1793, 1.442695
        %v1796 = vpow.pop %v1795
        %v1797 = vmul.f32 %v1794, 1.442695
        %v1798 = vpow.pop %v1797
        %v1799 = vsel %vm1184, %v1796, 0.0
        %1800 = vadd.xlane.f32.xlu0 %v1799
        %v1801 = vpop.xlane.xlu0 %1800
        %v1802 = vsel %vm1184, %v1798, 0.0
        %1803 = vadd.xlane.f32.xlu0 %v1802
        %v1804 = vpop.xlane.xlu0 %1803
        %v1805 = vrcp.pop %v1801
        %v1806 = vrcp.pop %v1804
        %v1807 = vmul.f32 %v1796, %v1805
        %v1808 = vmul.f32 %v1798, %v1806
        %1809 = vrot.lane.b32.xlu0 %v1087, 32
        %v1810 = vpop.permute.xlu0 %1809
        %1811 = vrot.lane.b32.xlu0 %v1093, 32
        %v1812 = vpop.permute.xlu0 %1811
        %v1816 = vsel %vm1184, %v1807, 0
        %v1819 = vsel %vm1184, %v1808, 0
        %1821 = vmatprep.subr.mxu0 0.0
        %1822 = vmatpush1.msra.mxu0 %v1810
        %1823 = vmatprep.subr.mxu0 0.0
        %1824 = vmatpush1.msra.mxu0 %v1812
        %1825 = vmatprep.subr.mxu0 0.0
        %1826 = vmatpush1.msra.mxu0 0.0
        %1827 = vmatprep.subr.mxu0 0.0
        %1828 = vmatpush1.msra.mxu0 0.0
        %1829 = vmatprep.subr.mxu0 0.0
        %1830 = vmatpush1.msra.mxu0 0.0
        %1831 = vmatprep.subr.mxu0 0.0
        %1832 = vmatpush1.msra.mxu0 0.0
        %1833 = vmatprep.subr.mxu0 0.0
        %1834 = vmatpush1.msra.mxu0 0.0
        %1835 = vmatprep.subr.mxu0 0.0
        %1836 = vmatpush1.msra.mxu0 0.0
        %1837 = vmatprep.subr.mxu0 0.0
        %1838 = vmatpush1.msra.mxu0 0.0
        %1839 = vmatprep.subr.mxu0 0.0
        %1840 = vmatpush1.msra.mxu0 0.0
        %1841 = vmatprep.subr.mxu0 0.0
        %1842 = vmatpush1.msra.mxu0 0.0
        %1843 = vmatprep.subr.mxu0 0.0
        %1844 = vmatpush1.msra.mxu0 0.0
        %1845 = vmatprep.subr.mxu0 0.0
        %1846 = vmatpush1.msra.mxu0 0.0
        %1847 = vmatprep.subr.mxu0 0.0
        %1848 = vmatpush1.msra.mxu0 0.0
        %1849 = vmatprep.subr.mxu0 0.0
        %1850 = vmatpush1.msra.mxu0 0.0
        %1851 = vmatprep.subr.mxu0 0.0
        %1852 = vmatpush1.msra.mxu0 0.0
        %1853 = vmatprep.subr.mxu0 0.0
        %1854 = vmatpush1.msra.mxu0 0.0
        %1855 = vmatprep.subr.mxu0 0.0
        %1856 = vmatpush1.msra.mxu0 0.0
        %1857 = vmatprep.subr.mxu0 0.0
        %1858 = vmatpush1.msra.mxu0 0.0
        %1859 = vmatprep.subr.mxu0 0.0
        %1860 = vmatpush1.msra.mxu0 0.0
        %1861 = vmatprep.subr.mxu0 0.0
        %1862 = vmatpush1.msra.mxu0 0.0
        %1863 = vmatprep.subr.mxu0 0.0
        %1864 = vmatpush1.msra.mxu0 0.0
        %1865 = vmatprep.subr.mxu0 0.0
        %1866 = vmatpush1.msra.mxu0 0.0
        %1867 = vmatprep.subr.mxu0 0.0
        %1868 = vmatpush1.msra.mxu0 0.0
        %1869 = vmatprep.subr.mxu0 0.0
        %1870 = vmatpush1.msra.mxu0 0.0
        %1871 = vmatprep.subr.mxu0 0.0
        %1872 = vmatpush1.msra.mxu0 0.0
        %1873 = vmatprep.subr.mxu0 0.0
        %1874 = vmatpush1.msra.mxu0 0.0
        %1875 = vmatprep.subr.mxu0 0.0
        %1876 = vmatpush1.msra.mxu0 0.0
        %1877 = vmatprep.subr.mxu0 0.0
        %1878 = vmatpush1.msra.mxu0 0.0
        %1879 = vmatprep.subr.mxu0 0.0
        %1880 = vmatpush1.msra.mxu0 0.0
        %1881 = vmatprep.subr.mxu0 0.0
        %1882 = vmatpush1.msra.mxu0 0.0
        %1883 = vmatprep.subr.mxu0 0.0
        %1884 = vmatpush1.msra.mxu0 0.0
        %1885 = vmatprep.mubr.f32.mxu0 0.0
        %1886 = vmatmul.mubr.f32.gmra.mrb[0].mxu0 %v1816
        %v1887 = vpop.f32.mrb[0].mxu0
        %v1888 = vadd.f32 0.0, %v1887
        %v1889 = vpop.f32.mrb[0].mxu0
        %1890 = vmatprep.mubr.f32.mxu0 0.0
        %1891 = vmatmul.mubr.f32.gmra.mrb[0].mxu0 %v1819
        %v1892 = vpop.f32.mrb[0].mxu0
        %v1893 = vadd.f32 0.0, %v1892
        %v1894 = vpop.f32.mrb[0].mxu0
        %1895 = vdwg.mxu0
        %1898 = vrot.lane.b32.xlu0 %v1484, 32
        %v1899 = vpop.permute.xlu0 %1898
        %1900 = vrot.lane.b32.xlu0 %v1489, 32
        %v1901 = vpop.permute.xlu0 %1900
        %1906 = vrot.lane.b32.xlu0 %v1686, 64
        %v1907 = vpop.permute.xlu0 %1906
        %1908 = vrot.lane.b32.xlu0 %v1691, 64
        %v1909 = vpop.permute.xlu0 %1908
        %1914 = vrot.lane.b32.xlu0 %v1888, 96
        %v1915 = vpop.permute.xlu0 %1914
        %1916 = vrot.lane.b32.xlu0 %v1893, 96
        %v1917 = vpop.permute.xlu0 %1916
        %v1920 = vsel %vm926, %v1280, %v1899
        %v1921 = vsel %vm926, %v1285, %v1901
        %vm1922 = vcmask 523264
        %v1923 = vsel %vm1922, %v1920, %v1907
        %v1924 = vsel %vm1922, %v1921, %v1909
        %vm1925 = vcmask 785408
        %v1926 = vsel %vm1925, %v1923, %v1915
        %v1927 = vsel %vm1925, %v1924, %v1917
        %v1928 = vld [vmem:[%s6] sm:$0xff]
        %v1929 = vld [vmem:[%s6 + $0x8] sm:$0xff]
        %v1930 = vld [vmem:[%s6 + $0x10] sm:$0xff]
        %v1931 = vld [vmem:[%s6 + $0x18] sm:$0xff]
        %v1932 = vld [vmem:[%s6 + $0x20] sm:$0xff]
        %v1933 = vld [vmem:[%s6 + $0x28] sm:$0xff]
        %v1934 = vld [vmem:[%s6 + $0x30] sm:$0xff]
        %v1935 = vld [vmem:[%s6 + $0x38] sm:$0xff]
        %v1936 = vld [vmem:[%s6 + $0x40] sm:$0xff]
        %v1937 = vld [vmem:[%s6 + $0x48] sm:$0xff]
        %v1938 = vld [vmem:[%s6 + $0x50] sm:$0xff]
        %v1939 = vld [vmem:[%s6 + $0x58] sm:$0xff]
        %v1940 = vld [vmem:[%s6 + $0x60] sm:$0xff]
        %v1941 = vld [vmem:[%s6 + $0x68] sm:$0xff]
        %v1942 = vld [vmem:[%s6 + $0x70] sm:$0xff]
        %v1943 = vld [vmem:[%s6 + $0x78] sm:$0xff]
        %v1944 = vld [vmem:[%s7] sm:$0x1]
        %v1946 = vlaneseq
        %v1947 = vshrl.u32 %v1946, 7
        %v1948 = vsub.s32 0, %v1947
        %v1949 = vrot.slane %v1944, %v1948
        %1951 = vmatprep.subr.mxu0 0.0
        %1952 = vmatpush1.msra.mxu0 %v1928
        %1953 = vmatprep.subr.mxu0 0.0
        %1954 = vmatpush1.msra.mxu0 %v1929
        %1955 = vmatprep.subr.mxu0 0.0
        %1956 = vmatpush1.msra.mxu0 %v1930
        %1957 = vmatprep.subr.mxu0 0.0
        %1958 = vmatpush1.msra.mxu0 %v1931
        %1959 = vmatprep.subr.mxu0 0.0
        %1960 = vmatpush1.msra.mxu0 %v1932
        %1961 = vmatprep.subr.mxu0 0.0
        %1962 = vmatpush1.msra.mxu0 %v1933
        %1963 = vmatprep.subr.mxu0 0.0
        %1964 = vmatpush1.msra.mxu0 %v1934
        %1965 = vmatprep.subr.mxu0 0.0
        %1966 = vmatpush1.msra.mxu0 %v1935
        %1967 = vmatprep.subr.mxu0 0.0
        %1968 = vmatpush1.msra.mxu0 %v1936
        %1969 = vmatprep.subr.mxu0 0.0
        %1970 = vmatpush1.msra.mxu0 %v1937
        %1971 = vmatprep.subr.mxu0 0.0
        %1972 = vmatpush1.msra.mxu0 %v1938
        %1973 = vmatprep.subr.mxu0 0.0
        %1974 = vmatpush1.msra.mxu0 %v1939
        %1975 = vmatprep.subr.mxu0 0.0
        %1976 = vmatpush1.msra.mxu0 %v1940
        %1977 = vmatprep.subr.mxu0 0.0
        %1978 = vmatpush1.msra.mxu0 %v1941
        %1979 = vmatprep.subr.mxu0 0.0
        %1980 = vmatpush1.msra.mxu0 %v1942
        %1981 = vmatprep.subr.mxu0 0.0
        %1982 = vmatpush1.msra.mxu0 %v1943
        %1983 = vmatprep.subr.mxu0 0.0
        %1984 = vmatpush1.msra.mxu0 0.0
        %1985 = vmatprep.subr.mxu0 0.0
        %1986 = vmatpush1.msra.mxu0 0.0
        %1987 = vmatprep.subr.mxu0 0.0
        %1988 = vmatpush1.msra.mxu0 0.0
        %1989 = vmatprep.subr.mxu0 0.0
        %1990 = vmatpush1.msra.mxu0 0.0
        %1991 = vmatprep.subr.mxu0 0.0
        %1992 = vmatpush1.msra.mxu0 0.0
        %1993 = vmatprep.subr.mxu0 0.0
        %1994 = vmatpush1.msra.mxu0 0.0
        %1995 = vmatprep.subr.mxu0 0.0
        %1996 = vmatpush1.msra.mxu0 0.0
        %1997 = vmatprep.subr.mxu0 0.0
        %1998 = vmatpush1.msra.mxu0 0.0
        %1999 = vmatprep.subr.mxu0 0.0
        %2000 = vmatpush1.msra.mxu0 0.0
        %2001 = vmatprep.subr.mxu0 0.0
        %2002 = vmatpush1.msra.mxu0 0.0
        %2003 = vmatprep.subr.mxu0 0.0
        %2004 = vmatpush1.msra.mxu0 0.0
        %2005 = vmatprep.subr.mxu0 0.0
        %2006 = vmatpush1.msra.mxu0 0.0
        %2007 = vmatprep.subr.mxu0 0.0
        %2008 = vmatpush1.msra.mxu0 0.0
        %2009 = vmatprep.subr.mxu0 0.0
        %2010 = vmatpush1.msra.mxu0 0.0
        %2011 = vmatprep.subr.mxu0 0.0
        %2012 = vmatpush1.msra.mxu0 0.0
        %2013 = vmatprep.subr.mxu0 0.0
        %2014 = vmatpush1.msra.mxu0 0.0
        %2015 = vmatprep.mubr.f32.mxu0 0.0
        %2016 = vmatmul.mubr.f32.gmra.mrb[0].mxu0 %v1926
        %v2017 = vpop.f32.mrb[0].mxu0
        %v2018 = vadd.f32 %v1949, %v2017
        %v2019 = vpop.f32.mrb[0].mxu0
        %2020 = vmatprep.mubr.f32.mxu0 0.0
        %2021 = vmatmul.mubr.f32.gmra.mrb[0].mxu0 %v1927
        %v2022 = vpop.f32.mrb[0].mxu0
        %v2023 = vadd.f32 %v1949, %v2022
        %v2024 = vpop.f32.mrb[0].mxu0
        %2025 = vdwg.mxu0
        %v2026 = vadd.f32 %v895, %v2018
        %v2027 = vadd.f32 %v896, %v2023
        %v2028 = vsel %vm926, %v2026, 0.0
        %2029 = vadd.xlane.f32.xlu0 %v2028
        %v2030 = vpop.xlane.xlu0 %2029
        %v2031 = vsel %vm926, %v2027, 0.0
        %2032 = vadd.xlane.f32.xlu0 %v2031
        %v2033 = vpop.xlane.xlu0 %2032
        %v2034 = vrcp.pop 32.0
        %v2035 = vmul.f32 %v2030, %v2034
        %v2036 = vmul.f32 %v2033, %v2034
        %v2037 = vsub.f32 %v2026, %v2035
        %v2038 = vsub.f32 %v2027, %v2036
        %v2039 = vmul.f32 %v2037, %v2037
        %v2040 = vmul.f32 %v2038, %v2038
        %v2041 = vsel %vm926, %v2039, 0.0
        %2042 = vadd.xlane.f32.xlu0 %v2041
        %v2043 = vpop.xlane.xlu0 %2042
        %v2044 = vsel %vm926, %v2040, 0.0
        %2045 = vadd.xlane.f32.xlu0 %v2044
        %v2046 = vpop.xlane.xlu0 %2045
        %v2047 = vmul.f32 %v2043, %v2034
        %v2048 = vmul.f32 %v2046, %v2034
        %v2049 = vadd.f32 %v2047, 1e-05
        %v2050 = vadd.f32 %v2048, 1e-05
        %v2051 = vrsqrt.pop %v2049
        %v2052 = vrsqrt.pop %v2050
        %v2053 = vmul.f32 %v2037, %v2051
        %v2054 = vmul.f32 %v2038, %v2052
        %v2055 = vld [vmem:[%s8] sm:$0x1]
        %v2057 = vlaneseq
        %v2058 = vshrl.u32 %v2057, 7
        %v2059 = vsub.s32 0, %v2058
        %v2060 = vrot.slane %v2055, %v2059
        %v2062 = vmul.f32 %v2053, %v2060
        %v2063 = vmul.f32 %v2054, %v2060
        %v2064 = vld [vmem:[%s9] sm:$0x1]
        %v2066 = vlaneseq
        %v2067 = vshrl.u32 %v2066, 7
        %v2068 = vsub.s32 0, %v2067
        %v2069 = vrot.slane %v2064, %v2068
        %v2071 = vadd.f32 %v2062, %v2069
        %v2072 = vadd.f32 %v2063, %v2069
        %v2073 = vld [vmem:[%s10] sm:$0xff]
        %v2074 = vld [vmem:[%s10 + $0x8] sm:$0xff]
        %v2075 = vld [vmem:[%s10 + $0x10] sm:$0xff]
        %v2076 = vld [vmem:[%s10 + $0x18] sm:$0xff]
        %v2077 = vld [vmem:[%s11] sm:$0x1]
        %v2079 = vlaneseq
        %v2080 = vshrl.u32 %v2079, 7
        %v2081 = vsub.s32 0, %v2080
        %v2082 = vrot.slane %v2077, %v2081
        %v2085 = vsel %vm926, %v2071, 0
        %v2088 = vsel %vm926, %v2072, 0
        %2090 = vmatprep.subr.mxu0 0.0
        %2091 = vmatpush1.msra.mxu0 %v2073
        %2092 = vmatprep.subr.mxu0 0.0
        %2093 = vmatpush1.msra.mxu0 %v2074
        %2094 = vmatprep.subr.mxu0 0.0
        %2095 = vmatpush1.msra.mxu0 %v2075
        %2096 = vmatprep.subr.mxu0 0.0
        %2097 = vmatpush1.msra.mxu0 %v2076
        %2098 = vmatprep.subr.mxu0 0.0
        %2099 = vmatpush1.msra.mxu0 0.0
        %2100 = vmatprep.subr.mxu0 0.0
        %2101 = vmatpush1.msra.mxu0 0.0
        %2102 = vmatprep.subr.mxu0 0.0
        %2103 = vmatpush1.msra.mxu0 0.0
        %2104 = vmatprep.subr.mxu0 0.0
        %2105 = vmatpush1.msra.mxu0 0.0
        %2106 = vmatprep.subr.mxu0 0.0
        %2107 = vmatpush1.msra.mxu0 0.0
        %2108 = vmatprep.subr.mxu0 0.0
        %2109 = vmatpush1.msra.mxu0 0.0
        %2110 = vmatprep.subr.mxu0 0.0
        %2111 = vmatpush1.msra.mxu0 0.0
        %2112 = vmatprep.subr.mxu0 0.0
        %2113 = vmatpush1.msra.mxu0 0.0
        %2114 = vmatprep.subr.mxu0 0.0
        %2115 = vmatpush1.msra.mxu0 0.0
        %2116 = vmatprep.subr.mxu0 0.0
        %2117 = vmatpush1.msra.mxu0 0.0
        %2118 = vmatprep.subr.mxu0 0.0
        %2119 = vmatpush1.msra.mxu0 0.0
        %2120 = vmatprep.subr.mxu0 0.0
        %2121 = vmatpush1.msra.mxu0 0.0
        %2122 = vmatprep.subr.mxu0 0.0
        %2123 = vmatpush1.msra.mxu0 0.0
        %2124 = vmatprep.subr.mxu0 0.0
        %2125 = vmatpush1.msra.mxu0 0.0
        %2126 = vmatprep.subr.mxu0 0.0
        %2127 = vmatpush1.msra.mxu0 0.0
        %2128 = vmatprep.subr.mxu0 0.0
        %2129 = vmatpush1.msra.mxu0 0.0
        %2130 = vmatprep.subr.mxu0 0.0
        %2131 = vmatpush1.msra.mxu0 0.0
        %2132 = vmatprep.subr.mxu0 0.0
        %2133 = vmatpush1.msra.mxu0 0.0
        %2134 = vmatprep.subr.mxu0 0.0
        %2135 = vmatpush1.msra.mxu0 0.0
        %2136 = vmatprep.subr.mxu0 0.0
        %2137 = vmatpush1.msra.mxu0 0.0
        %2138 = vmatprep.subr.mxu0 0.0
        %2139 = vmatpush1.msra.mxu0 0.0
        %2140 = vmatprep.subr.mxu0 0.0
        %2141 = vmatpush1.msra.mxu0 0.0
        %2142 = vmatprep.subr.mxu0 0.0
        %2143 = vmatpush1.msra.mxu0 0.0
        %2144 = vmatprep.subr.mxu0 0.0
        %2145 = vmatpush1.msra.mxu0 0.0
        %2146 = vmatprep.subr.mxu0 0.0
        %2147 = vmatpush1.msra.mxu0 0.0
        %2148 = vmatprep.subr.mxu0 0.0
        %2149 = vmatpush1.msra.mxu0 0.0
        %2150 = vmatprep.subr.mxu0 0.0
        %2151 = vmatpush1.msra.mxu0 0.0
        %2152 = vmatprep.subr.mxu0 0.0
        %2153 = vmatpush1.msra.mxu0 0.0
        %2154 = vmatprep.mubr.f32.mxu0 0.0
        %2155 = vmatmul.mubr.f32.gmra.mrb[0].mxu0 %v2085
        %v2156 = vpop.f32.mrb[0].mxu0
        %v2157 = vadd.f32 %v2082, %v2156
        %v2158 = vpop.f32.mrb[0].mxu0
        %2159 = vmatprep.mubr.f32.mxu0 0.0
        %2160 = vmatmul.mubr.f32.gmra.mrb[0].mxu0 %v2088
        %v2161 = vpop.f32.mrb[0].mxu0
        %v2162 = vadd.f32 %v2082, %v2161
        %v2163 = vpop.f32.mrb[0].mxu0
        %2164 = vdwg.mxu0
        %v2165 = vmax.f32 %v2157, 0.0
        %v2166 = vmax.f32 %v2162, 0.0
        %v2167 = vld [vmem:[%s12] sm:$0xff]
        %v2168 = vld [vmem:[%s12 + $0x8] sm:$0xff]
        %v2169 = vld [vmem:[%s12 + $0x10] sm:$0xff]
        %v2170 = vld [vmem:[%s12 + $0x18] sm:$0xff]
        %v2171 = vld [vmem:[%s12 + $0x20] sm:$0xff]
        %v2172 = vld [vmem:[%s12 + $0x28] sm:$0xff]
        %v2173 = vld [vmem:[%s12 + $0x30] sm:$0xff]
        %v2174 = vld [vmem:[%s12 + $0x38] sm:$0xff]
        %v2175 = vld [vmem:[%s13] sm:$0x1]
        %v2177 = vlaneseq
        %v2178 = vshrl.u32 %v2177, 7
        %v2179 = vsub.s32 0, %v2178
        %v2180 = vrot.slane %v2175, %v2179
        %v2183 = vsel %vm1922, %v2165, 0
        %v2186 = vsel %vm1922, %v2166, 0
        %2188 = vmatprep.subr.mxu0 0.0
        %2189 = vmatpush1.msra.mxu0 %v2167
        %2190 = vmatprep.subr.mxu0 0.0
        %2191 = vmatpush1.msra.mxu0 %v2168
        %2192 = vmatprep.subr.mxu0 0.0
        %2193 = vmatpush1.msra.mxu0 %v2169
        %2194 = vmatprep.subr.mxu0 0.0
        %2195 = vmatpush1.msra.mxu0 %v2170
        %2196 = vmatprep.subr.mxu0 0.0
        %2197 = vmatpush1.msra.mxu0 %v2171
        %2198 = vmatprep.subr.mxu0 0.0
        %2199 = vmatpush1.msra.mxu0 %v2172
        %2200 = vmatprep.subr.mxu0 0.0
        %2201 = vmatpush1.msra.mxu0 %v2173
        %2202 = vmatprep.subr.mxu0 0.0
        %2203 = vmatpush1.msra.mxu0 %v2174
        %2204 = vmatprep.subr.mxu0 0.0
        %2205 = vmatpush1.msra.mxu0 0.0
        %2206 = vmatprep.subr.mxu0 0.0
        %2207 = vmatpush1.msra.mxu0 0.0
        %2208 = vmatprep.subr.mxu0 0.0
        %2209 = vmatpush1.msra.mxu0 0.0
        %2210 = vmatprep.subr.mxu0 0.0
        %2211 = vmatpush1.msra.mxu0 0.0
        %2212 = vmatprep.subr.mxu0 0.0
        %2213 = vmatpush1.msra.mxu0 0.0
        %2214 = vmatprep.subr.mxu0 0.0
        %2215 = vmatpush1.msra.mxu0 0.0
        %2216 = vmatprep.subr.mxu0 0.0
        %2217 = vmatpush1.msra.mxu0 0.0
        %2218 = vmatprep.subr.mxu0 0.0
        %2219 = vmatpush1.msra.mxu0 0.0
        %2220 = vmatprep.subr.mxu0 0.0
        %2221 = vmatpush1.msra.mxu0 0.0
        %2222 = vmatprep.subr.mxu0 0.0
        %2223 = vmatpush1.msra.mxu0 0.0
        %2224 = vmatprep.subr.mxu0 0.0
        %2225 = vmatpush1.msra.mxu0 0.0
        %2226 = vmatprep.subr.mxu0 0.0
        %2227 = vmatpush1.msra.mxu0 0.0
        %2228 = vmatprep.subr.mxu0 0.0
        %2229 = vmatpush1.msra.mxu0 0.0
        %2230 = vmatprep.subr.mxu0 0.0
        %2231 = vmatpush1.msra.mxu0 0.0
        %2232 = vmatprep.subr.mxu0 0.0
        %2233 = vmatpush1.msra.mxu0 0.0
        %2234 = vmatprep.subr.mxu0 0.0
        %2235 = vmatpush1.msra.mxu0 0.0
        %2236 = vmatprep.subr.mxu0 0.0
        %2237 = vmatpush1.msra.mxu0 0.0
        %2238 = vmatprep.subr.mxu0 0.0
        %2239 = vmatpush1.msra.mxu0 0.0
        %2240 = vmatprep.subr.mxu0 0.0
        %2241 = vmatpush1.msra.mxu0 0.0
        %2242 = vmatprep.subr.mxu0 0.0
        %2243 = vmatpush1.msra.mxu0 0.0
        %2244 = vmatprep.subr.mxu0 0.0
        %2245 = vmatpush1.msra.mxu0 0.0
        %2246 = vmatprep.subr.mxu0 0.0
        %2247 = vmatpush1.msra.mxu0 0.0
        %2248 = vmatprep.subr.mxu0 0.0
        %2249 = vmatpush1.msra.mxu0 0.0
        %2250 = vmatprep.subr.mxu0 0.0
        %2251 = vmatpush1.msra.mxu0 0.0
        %2252 = vmatprep.mubr.f32.mxu0 0.0
        %2253 = vmatmul.mubr.f32.gmra.mrb[0].mxu0 %v2183
        %v2254 = vpop.f32.mrb[0].mxu0
        %v2255 = vadd.f32 %v2180, %v2254
        %v2256 = vpop.f32.mrb[0].mxu0
        %2257 = vmatprep.mubr.f32.mxu0 0.0
        %2258 = vmatmul.mubr.f32.gmra.mrb[0].mxu0 %v2186
        %v2259 = vpop.f32.mrb[0].mxu0
        %v2260 = vadd.f32 %v2180, %v2259
        %v2261 = vpop.f32.mrb[0].mxu0
        %2262 = vdwg.mxu0
        %v2263 = vadd.f32 %v2071, %v2255
        %v2264 = vadd.f32 %v2072, %v2260
        %v2265 = vsel %vm926, %v2263, 0.0
        %2266 = vadd.xlane.f32.xlu0 %v2265
        %v2267 = vpop.xlane.xlu0 %2266
        %v2268 = vsel %vm926, %v2264, 0.0
        %2269 = vadd.xlane.f32.xlu0 %v2268
        %v2270 = vpop.xlane.xlu0 %2269
        %v2271 = vmul.f32 %v2267, %v2034
        %v2272 = vmul.f32 %v2270, %v2034
        %v2273 = vsub.f32 %v2263, %v2271
        %v2274 = vsub.f32 %v2264, %v2272
        %v2275 = vmul.f32 %v2273, %v2273
        %v2276 = vmul.f32 %v2274, %v2274
        %v2277 = vsel %vm926, %v2275, 0.0
        %2278 = vadd.xlane.f32.xlu0 %v2277
        %v2279 = vpop.xlane.xlu0 %2278
        %v2280 = vsel %vm926, %v2276, 0.0
        %2281 = vadd.xlane.f32.xlu0 %v2280
        %v2282 = vpop.xlane.xlu0 %2281
        %v2283 = vmul.f32 %v2279, %v2034
        %v2284 = vmul.f32 %v2282, %v2034
        %v2285 = vadd.f32 %v2283, 1e-05
        %v2286 = vadd.f32 %v2284, 1e-05
        %v2287 = vrsqrt.pop %v2285
        %v2288 = vrsqrt.pop %v2286
        %v2289 = vmul.f32 %v2273, %v2287
        %v2290 = vmul.f32 %v2274, %v2288
        %v2291 = vld [vmem:[%s14] sm:$0x1]
        %v2293 = vlaneseq
        %v2294 = vshrl.u32 %v2293, 7
        %v2295 = vsub.s32 0, %v2294
        %v2296 = vrot.slane %v2291, %v2295
        %v2298 = vmul.f32 %v2289, %v2296
        %v2299 = vmul.f32 %v2290, %v2296
        %v2300 = vld [vmem:[%s15] sm:$0x1]
        %v2302 = vlaneseq
        %v2303 = vshrl.u32 %v2302, 7
        %v2304 = vsub.s32 0, %v2303
        %v2305 = vrot.slane %v2300, %v2304
        %v2307 = vadd.f32 %v2298, %v2305
        %v2308 = vadd.f32 %v2299, %v2305
        %v2309 = vld [vmem:[%s16] sm:$0xff]
        %v2310 = vld [vmem:[%s16 + $0x8] sm:$0xff]
        %v2311 = vld [vmem:[%s16 + $0x10] sm:$0xff]
        %v2312 = vld [vmem:[%s16 + $0x18] sm:$0xff]
        %v2314 = vsel %vm926, %v897, 0
        %2316 = vmatprep.subr.mxu0 0.0
        %2317 = vmatpush1.msra.mxu0 %v2309
        %2318 = vmatprep.subr.mxu0 0.0
        %2319 = vmatpush1.msra.mxu0 %v2310
        %2320 = vmatprep.subr.mxu0 0.0
        %2321 = vmatpush1.msra.mxu0 %v2311
        %2322 = vmatprep.subr.mxu0 0.0
        %2323 = vmatpush1.msra.mxu0 %v2312
        %2324 = vmatprep.subr.mxu0 0.0
        %2325 = vmatpush1.msra.mxu0 0.0
        %2326 = vmatprep.subr.mxu0 0.0
        %2327 = vmatpush1.msra.mxu0 0.0
        %2328 = vmatprep.subr.mxu0 0.0
        %2329 = vmatpush1.msra.mxu0 0.0
        %2330 = vmatprep.subr.mxu0 0.0
        %2331 = vmatpush1.msra.mxu0 0.0
        %2332 = vmatprep.subr.mxu0 0.0
        %2333 = vmatpush1.msra.mxu0 0.0
        %2334 = vmatprep.subr.mxu0 0.0
        %2335 = vmatpush1.msra.mxu0 0.0
        %2336 = vmatprep.subr.mxu0 0.0
        %2337 = vmatpush1.msra.mxu0 0.0
        %2338 = vmatprep.subr.mxu0 0.0
        %2339 = vmatpush1.msra.mxu0 0.0
        %2340 = vmatprep.subr.mxu0 0.0
        %2341 = vmatpush1.msra.mxu0 0.0
        %2342 = vmatprep.subr.mxu0 0.0
        %2343 = vmatpush1.msra.mxu0 0.0
        %2344 = vmatprep.subr.mxu0 0.0
        %2345 = vmatpush1.msra.mxu0 0.0
        %2346 = vmatprep.subr.mxu0 0.0
        %2347 = vmatpush1.msra.mxu0 0.0
        %2348 = vmatprep.subr.mxu0 0.0
        %2349 = vmatpush1.msra.mxu0 0.0
        %2350 = vmatprep.subr.mxu0 0.0
        %2351 = vmatpush1.msra.mxu0 0.0
        %2352 = vmatprep.subr.mxu0 0.0
        %2353 = vmatpush1.msra.mxu0 0.0
        %2354 = vmatprep.subr.mxu0 0.0
        %2355 = vmatpush1.msra.mxu0 0.0
        %2356 = vmatprep.subr.mxu0 0.0
        %2357 = vmatpush1.msra.mxu0 0.0
        %2358 = vmatprep.subr.mxu0 0.0
        %2359 = vmatpush1.msra.mxu0 0.0
        %2360 = vmatprep.subr.mxu0 0.0
        %2361 = vmatpush1.msra.mxu0 0.0
        %2362 = vmatprep.subr.mxu0 0.0
        %2363 = vmatpush1.msra.mxu0 0.0
        %2364 = vmatprep.subr.mxu0 0.0
        %2365 = vmatpush1.msra.mxu0 0.0
        %2366 = vmatprep.subr.mxu0 0.0
        %2367 = vmatpush1.msra.mxu0 0.0
        %2368 = vmatprep.subr.mxu0 0.0
        %2369 = vmatpush1.msra.mxu0 0.0
        %2370 = vmatprep.subr.mxu0 0.0
        %2371 = vmatpush1.msra.mxu0 0.0
        %2372 = vmatprep.subr.mxu0 0.0
        %2373 = vmatpush1.msra.mxu0 0.0
        %2374 = vmatprep.subr.mxu0 0.0
        %2375 = vmatpush1.msra.mxu0 0.0
        %2376 = vmatprep.subr.mxu0 0.0
        %2377 = vmatpush1.msra.mxu0 0.0
        %2378 = vmatprep.subr.mxu0 0.0
        %2379 = vmatpush1.msra.mxu0 0.0
        %2380 = vmatprep.mubr.f32.mxu0 0.0
        %2381 = vmatmul.mubr.f32.gmra.mrb[0].mxu0 %v2314
        %v2382 = vpop.f32.mrb[0].mxu0
        %v2383 = vadd.f32 0.0, %v2382
        %v2384 = vpop.f32.mrb[0].mxu0
        %2385 = vdwg.mxu0
        %v2386 = vmul.f32 %v2383, 0.17677669
        %v2387 = vld [vmem:[%s17] sm:$0xff]
        %v2388 = vld [vmem:[%s17 + $0x8] sm:$0xff]
        %v2389 = vld [vmem:[%s17 + $0x10] sm:$0xff]
        %v2390 = vld [vmem:[%s17 + $0x18] sm:$0xff]
        %v2391 = vld [vmem:[%s17 + $0x20] sm:$0xff]
        %v2392 = vld [vmem:[%s17 + $0x28] sm:$0xff]
        %v2393 = vld [vmem:[%s17 + $0x30] sm:$0xff]
        %v2394 = vld [vmem:[%s17 + $0x38] sm:$0xff]
        %v2396 = vsel %vm926, %v2307, 0
        %v2399 = vsel %vm926, %v2308, 0
        %2401 = vmatprep.subr.mxu0 %v2388
        %2402 = vmatpush1.msra.mxu0 %v2387
        %2403 = vmatprep.subr.mxu0 %v2390
        %2404 = vmatpush1.msra.mxu0 %v2389
        %2405 = vmatprep.subr.mxu0 %v2392
        %2406 = vmatpush1.msra.mxu0 %v2391
        %2407 = vmatprep.subr.mxu0 %v2394
        %2408 = vmatpush1.msra.mxu0 %v2393
        %2409 = vmatprep.subr.mxu0 0.0
        %2410 = vmatpush1.msra.mxu0 0.0
        %2411 = vmatprep.subr.mxu0 0.0
        %2412 = vmatpush1.msra.mxu0 0.0
        %2413 = vmatprep.subr.mxu0 0.0
        %2414 = vmatpush1.msra.mxu0 0.0
        %2415 = vmatprep.subr.mxu0 0.0
        %2416 = vmatpush1.msra.mxu0 0.0
        %2417 = vmatprep.subr.mxu0 0.0
        %2418 = vmatpush1.msra.mxu0 0.0
        %2419 = vmatprep.subr.mxu0 0.0
        %2420 = vmatpush1.msra.mxu0 0.0
        %2421 = vmatprep.subr.mxu0 0.0
        %2422 = vmatpush1.msra.mxu0 0.0
        %2423 = vmatprep.subr.mxu0 0.0
        %2424 = vmatpush1.msra.mxu0 0.0
        %2425 = vmatprep.subr.mxu0 0.0
        %2426 = vmatpush1.msra.mxu0 0.0
        %2427 = vmatprep.subr.mxu0 0.0
        %2428 = vmatpush1.msra.mxu0 0.0
        %2429 = vmatprep.subr.mxu0 0.0
        %2430 = vmatpush1.msra.mxu0 0.0
        %2431 = vmatprep.subr.mxu0 0.0
        %2432 = vmatpush1.msra.mxu0 0.0
        %2433 = vmatprep.subr.mxu0 0.0
        %2434 = vmatpush1.msra.mxu0 0.0
        %2435 = vmatprep.subr.mxu0 0.0
        %2436 = vmatpush1.msra.mxu0 0.0
        %2437 = vmatprep.subr.mxu0 0.0
        %2438 = vmatpush1.msra.mxu0 0.0
        %2439 = vmatprep.subr.mxu0 0.0
        %2440 = vmatpush1.msra.mxu0 0.0
        %2441 = vmatprep.subr.mxu0 0.0
        %2442 = vmatpush1.msra.mxu0 0.0
        %2443 = vmatprep.subr.mxu0 0.0
        %2444 = vmatpush1.msra.mxu0 0.0
        %2445 = vmatprep.subr.mxu0 0.0
        %2446 = vmatpush1.msra.mxu0 0.0
        %2447 = vmatprep.subr.mxu0 0.0
        %2448 = vmatpush1.msra.mxu0 0.0
        %2449 = vmatprep.subr.mxu0 0.0
        %2450 = vmatpush1.msra.mxu0 0.0
        %2451 = vmatprep.subr.mxu0 0.0
        %2452 = vmatpush1.msra.mxu0 0.0
        %2453 = vmatprep.subr.mxu0 0.0
        %2454 = vmatpush1.msra.mxu0 0.0
        %2455 = vmatprep.subr.mxu0 0.0
        %2456 = vmatpush1.msra.mxu0 0.0
        %2457 = vmatprep.subr.mxu0 0.0
        %2458 = vmatpush1.msra.mxu0 0.0
        %2459 = vmatprep.subr.mxu0 0.0
        %2460 = vmatpush1.msra.mxu0 0.0
        %2461 = vmatprep.subr.mxu0 0.0
        %2462 = vmatpush1.msra.mxu0 0.0
        %2463 = vmatprep.subr.mxu0 0.0
        %2464 = vmatpush1.msra.mxu0 0.0
        %2465 = vmatprep.mubr.f32.mxu0 0.0
        %2466 = vmatmul.mubr.f32.gmra.mrb[0].mxu0 %v2396
        %v2467 = vpop.f32.mrb[0].mxu0
        %v2468 = vadd.f32 0.0, %v2467
        %v2469 = vpop.f32.mrb[0].mxu0
        %v2470 = vadd.f32 0.0, %v2469
        %2471 = vmatprep.mubr.f32.mxu0 0.0
        %2472 = vmatmul.mubr.f32.gmra.mrb[0].mxu0 %v2399
        %v2473 = vpop.f32.mrb[0].mxu0
        %v2474 = vadd.f32 0.0, %v2473
        %v2475 = vpop.f32.mrb[0].mxu0
        %v2476 = vadd.f32 0.0, %v2475
        %2477 = vdwg.mxu0
        %v2479 = vsel %vm926, %v2386, 0
        %v2482 = vsel %vm926, %v2468, 0
        %v2485 = vsel %vm926, %v2474, 0
        %2487 = vmatprep.subr.mxu0 0.0
        %2488 = vmatpush1.xpose.msra.mxu0 %v2482
        %2489 = vmatprep.subr.mxu0 0.0
        %2490 = vmatpush1.xpose.msra.mxu0 %v2485
        %2491 = vmatprep.subr.mxu0 0.0
        %2492 = vmatpush1.xpose.msra.mxu0 0.0
        %2493 = vmatprep.subr.mxu0 0.0
        %2494 = vmatpush1.xpose.msra.mxu0 0.0
        %2495 = vmatprep.subr.mxu0 0.0
        %2496 = vmatpush1.xpose.msra.mxu0 0.0
        %2497 = vmatprep.subr.mxu0 0.0
        %2498 = vmatpush1.xpose.msra.mxu0 0.0
        %2499 = vmatprep.subr.mxu0 0.0
        %2500 = vmatpush1.xpose.msra.mxu0 0.0
        %2501 = vmatprep.subr.mxu0 0.0
        %2502 = vmatpush1.xpose.msra.mxu0 0.0
        %2503 = vmatprep.subr.mxu0 0.0
        %2504 = vmatpush1.xpose.msra.mxu0 0.0
        %2505 = vmatprep.subr.mxu0 0.0
        %2506 = vmatpush1.xpose.msra.mxu0 0.0
        %2507 = vmatprep.subr.mxu0 0.0
        %2508 = vmatpush1.xpose.msra.mxu0 0.0
        %2509 = vmatprep.subr.mxu0 0.0
        %2510 = vmatpush1.xpose.msra.mxu0 0.0
        %2511 = vmatprep.subr.mxu0 0.0
        %2512 = vmatpush1.xpose.msra.mxu0 0.0
        %2513 = vmatprep.subr.mxu0 0.0
        %2514 = vmatpush1.xpose.msra.mxu0 0.0
        %2515 = vmatprep.subr.mxu0 0.0
        %2516 = vmatpush1.xpose.msra.mxu0 0.0
        %2517 = vmatprep.subr.mxu0 0.0
        %2518 = vmatpush1.xpose.msra.mxu0 0.0
        %2519 = vmatprep.subr.mxu0 0.0
        %2520 = vmatpush1.xpose.msra.mxu0 0.0
        %2521 = vmatprep.subr.mxu0 0.0
        %2522 = vmatpush1.xpose.msra.mxu0 0.0
        %2523 = vmatprep.subr.mxu0 0.0
        %2524 = vmatpush1.xpose.msra.mxu0 0.0
        %2525 = vmatprep.subr.mxu0 0.0
        %2526 = vmatpush1.xpose.msra.mxu0 0.0
        %2527 = vmatprep.subr.mxu0 0.0
        %2528 = vmatpush1.xpose.msra.mxu0 0.0
        %2529 = vmatprep.subr.mxu0 0.0
        %2530 = vmatpush1.xpose.msra.mxu0 0.0
        %2531 = vmatprep.subr.mxu0 0.0
        %2532 = vmatpush1.xpose.msra.mxu0 0.0
        %2533 = vmatprep.subr.mxu0 0.0
        %2534 = vmatpush1.xpose.msra.mxu0 0.0
        %2535 = vmatprep.subr.mxu0 0.0
        %2536 = vmatpush1.xpose.msra.mxu0 0.0
        %2537 = vmatprep.subr.mxu0 0.0
        %2538 = vmatpush1.xpose.msra.mxu0 0.0
        %2539 = vmatprep.subr.mxu0 0.0
        %2540 = vmatpush1.xpose.msra.mxu0 0.0
        %2541 = vmatprep.subr.mxu0 0.0
        %2542 = vmatpush1.xpose.msra.mxu0 0.0
        %2543 = vmatprep.subr.mxu0 0.0
        %2544 = vmatpush1.xpose.msra.mxu0 0.0
        %2545 = vmatprep.subr.mxu0 0.0
        %2546 = vmatpush1.xpose.msra.mxu0 0.0
        %2547 = vmatprep.subr.mxu0 0.0
        %2548 = vmatpush1.xpose.msra.mxu0 0.0
        %2549 = vmatprep.subr.mxu0 0.0
        %2550 = vmatpush1.xpose.msra.mxu0 0.0
        %2551 = vmatprep.mubr.f32.mxu0 0.0
        %2552 = vmatmul.mubr.f32.gmra.mrb[0].mxu0 %v2479
        %v2553 = vpop.f32.mrb[0].mxu0
        %v2554 = vadd.f32 0.0, %v2553
        %v2555 = vpop.f32.mrb[0].mxu0
        %2556 = vdwg.mxu0
        %v2557 = vsel %vm921, 1, 0
        %v2558 = vlaneseq
        %v2559 = vshrl.u32 %v2558, 7
        %v2560 = vsub.s32 0, %v2559
        %v2561 = vrot.slane %v2557, %v2560
        %vm2562 = vcmp.eq.s32.totalorder %v2561, 1
        %v2563 = vsel %vm2562, -1e+09, %v2554
        %v2564 = vsel %vm1184, %v2563, -inf
        %2565 = vmax.xlane.f32.xlu0 %v2564
        %v2566 = vpop.xlane.xlu0 %2565
        %v2567 = vsub.f32 %v2563, %v2566
        %v2568 = vmul.f32 %v2567, 1.442695
        %v2569 = vpow.pop %v2568
        %v2570 = vsel %vm1184, %v2569, 0.0
        %2571 = vadd.xlane.f32.xlu0 %v2570
        %v2572 = vpop.xlane.xlu0 %2571
        %v2573 = vrcp.pop %v2572
        %v2574 = vmul.f32 %v2569, %v2573
        %v2576 = vsel %vm1184, %v2574, 0
        %2578 = vmatprep.subr.mxu0 0.0
        %2579 = vmatpush1.msra.mxu0 %v2470
        %2580 = vmatprep.subr.mxu0 0.0
        %2581 = vmatpush1.msra.mxu0 %v2476
        %2582 = vmatprep.subr.mxu0 0.0
        %2583 = vmatpush1.msra.mxu0 0.0
        %2584 = vmatprep.subr.mxu0 0.0
        %2585 = vmatpush1.msra.mxu0 0.0
        %2586 = vmatprep.subr.mxu0 0.0
        %2587 = vmatpush1.msra.mxu0 0.0
        %2588 = vmatprep.subr.mxu0 0.0
        %2589 = vmatpush1.msra.mxu0 0.0
        %2590 = vmatprep.subr.mxu0 0.0
        %2591 = vmatpush1.msra.mxu0 0.0
        %2592 = vmatprep.subr.mxu0 0.0
        %2593 = vmatpush1.msra.mxu0 0.0
        %2594 = vmatprep.subr.mxu0 0.0
        %2595 = vmatpush1.msra.mxu0 0.0
        %2596 = vmatprep.subr.mxu0 0.0
        %2597 = vmatpush1.msra.mxu0 0.0
        %2598 = vmatprep.subr.mxu0 0.0
        %2599 = vmatpush1.msra.mxu0 0.0
        %2600 = vmatprep.subr.mxu0 0.0
        %2601 = vmatpush1.msra.mxu0 0.0
        %2602 = vmatprep.subr.mxu0 0.0
        %2603 = vmatpush1.msra.mxu0 0.0
        %2604 = vmatprep.subr.mxu0 0.0
        %2605 = vmatpush1.msra.mxu0 0.0
        %2606 = vmatprep.subr.mxu0 0.0
        %2607 = vmatpush1.msra.mxu0 0.0
        %2608 = vmatprep.subr.mxu0 0.0
        %2609 = vmatpush1.msra.mxu0 0.0
        %2610 = vmatprep.subr.mxu0 0.0
        %2611 = vmatpush1.msra.mxu0 0.0
        %2612 = vmatprep.subr.mxu0 0.0
        %2613 = vmatpush1.msra.mxu0 0.0
        %2614 = vmatprep.subr.mxu0 0.0
        %2615 = vmatpush1.msra.mxu0 0.0
        %2616 = vmatprep.subr.mxu0 0.0
        %2617 = vmatpush1.msra.mxu0 0.0
        %2618 = vmatprep.subr.mxu0 0.0
        %2619 = vmatpush1.msra.mxu0 0.0
        %2620 = vmatprep.subr.mxu0 0.0
        %2621 = vmatpush1.msra.mxu0 0.0
        %2622 = vmatprep.subr.mxu0 0.0
        %2623 = vmatpush1.msra.mxu0 0.0
        %2624 = vmatprep.subr.mxu0 0.0
        %2625 = vmatpush1.msra.mxu0 0.0
        %2626 = vmatprep.subr.mxu0 0.0
        %2627 = vmatpush1.msra.mxu0 0.0
        %2628 = vmatprep.subr.mxu0 0.0
        %2629 = vmatpush1.msra.mxu0 0.0
        %2630 = vmatprep.subr.mxu0 0.0
        %2631 = vmatpush1.msra.mxu0 0.0
        %2632 = vmatprep.subr.mxu0 0.0
        %2633 = vmatpush1.msra.mxu0 0.0
        %2634 = vmatprep.subr.mxu0 0.0
        %2635 = vmatpush1.msra.mxu0 0.0
        %2636 = vmatprep.subr.mxu0 0.0
        %2637 = vmatpush1.msra.mxu0 0.0
        %2638 = vmatprep.subr.mxu0 0.0
        %2639 = vmatpush1.msra.mxu0 0.0
        %2640 = vmatprep.subr.mxu0 0.0
        %2641 = vmatpush1.msra.mxu0 0.0
        %2642 = vmatprep.mubr.f32.mxu0 0.0
        %2643 = vmatmul.mubr.f32.gmra.mrb[0].mxu0 %v2576
        %v2644 = vpop.f32.mrb[0].mxu0
        %v2645 = vadd.f32 0.0, %v2644
        %v2646 = vpop.f32.mrb[0].mxu0
        %2647 = vdwg.mxu0
        %2648 = vrot.lane.b32.xlu0 %v2386, 96
        %v2649 = vpop.permute.xlu0 %2648
        %2650 = vrot.lane.b32.xlu0 %v2468, 96
        %v2651 = vpop.permute.xlu0 %2650
        %2652 = vrot.lane.b32.xlu0 %v2474, 96
        %v2653 = vpop.permute.xlu0 %2652
        %v2654 = vsel %vm926, %v2649, 0
        %v2656 = vsel %vm926, %v2651, 0
        %v2658 = vsel %vm926, %v2653, 0
        %2660 = vmatprep.subr.mxu0 0.0
        %2661 = vmatpush1.xpose.msra.mxu0 %v2656
        %2662 = vmatprep.subr.mxu0 0.0
        %2663 = vmatpush1.xpose.msra.mxu0 %v2658
        %2664 = vmatprep.subr.mxu0 0.0
        %2665 = vmatpush1.xpose.msra.mxu0 0.0
        %2666 = vmatprep.subr.mxu0 0.0
        %2667 = vmatpush1.xpose.msra.mxu0 0.0
        %2668 = vmatprep.subr.mxu0 0.0
        %2669 = vmatpush1.xpose.msra.mxu0 0.0
        %2670 = vmatprep.subr.mxu0 0.0
        %2671 = vmatpush1.xpose.msra.mxu0 0.0
        %2672 = vmatprep.subr.mxu0 0.0
        %2673 = vmatpush1.xpose.msra.mxu0 0.0
        %2674 = vmatprep.subr.mxu0 0.0
        %2675 = vmatpush1.xpose.msra.mxu0 0.0
        %2676 = vmatprep.subr.mxu0 0.0
        %2677 = vmatpush1.xpose.msra.mxu0 0.0
        %2678 = vmatprep.subr.mxu0 0.0
        %2679 = vmatpush1.xpose.msra.mxu0 0.0
        %2680 = vmatprep.subr.mxu0 0.0
        %2681 = vmatpush1.xpose.msra.mxu0 0.0
        %2682 = vmatprep.subr.mxu0 0.0
        %2683 = vmatpush1.xpose.msra.mxu0 0.0
        %2684 = vmatprep.subr.mxu0 0.0
        %2685 = vmatpush1.xpose.msra.mxu0 0.0
        %2686 = vmatprep.subr.mxu0 0.0
        %2687 = vmatpush1.xpose.msra.mxu0 0.0
        %2688 = vmatprep.subr.mxu0 0.0
        %2689 = vmatpush1.xpose.msra.mxu0 0.0
        %2690 = vmatprep.subr.mxu0 0.0
        %2691 = vmatpush1.xpose.msra.mxu0 0.0
        %2692 = vmatprep.subr.mxu0 0.0
        %2693 = vmatpush1.xpose.msra.mxu0 0.0
        %2694 = vmatprep.subr.mxu0 0.0
        %2695 = vmatpush1.xpose.msra.mxu0 0.0
        %2696 = vmatprep.subr.mxu0 0.0
        %2697 = vmatpush1.xpose.msra.mxu0 0.0
        %2698 = vmatprep.subr.mxu0 0.0
        %2699 = vmatpush1.xpose.msra.mxu0 0.0
        %2700 = vmatprep.subr.mxu0 0.0
        %2701 = vmatpush1.xpose.msra.mxu0 0.0
        %2702 = vmatprep.subr.mxu0 0.0
        %2703 = vmatpush1.xpose.msra.mxu0 0.0
        %2704 = vmatprep.subr.mxu0 0.0
        %2705 = vmatpush1.xpose.msra.mxu0 0.0
        %2706 = vmatprep.subr.mxu0 0.0
        %2707 = vmatpush1.xpose.msra.mxu0 0.0
        %2708 = vmatprep.subr.mxu0 0.0
        %2709 = vmatpush1.xpose.msra.mxu0 0.0
        %2710 = vmatprep.subr.mxu0 0.0
        %2711 = vmatpush1.xpose.msra.mxu0 0.0
        %2712 = vmatprep.subr.mxu0 0.0
        %2713 = vmatpush1.xpose.msra.mxu0 0.0
        %2714 = vmatprep.subr.mxu0 0.0
        %2715 = vmatpush1.xpose.msra.mxu0 0.0
        %2716 = vmatprep.subr.mxu0 0.0
        %2717 = vmatpush1.xpose.msra.mxu0 0.0
        %2718 = vmatprep.subr.mxu0 0.0
        %2719 = vmatpush1.xpose.msra.mxu0 0.0
        %2720 = vmatprep.subr.mxu0 0.0
        %2721 = vmatpush1.xpose.msra.mxu0 0.0
        %2722 = vmatprep.subr.mxu0 0.0
        %2723 = vmatpush1.xpose.msra.mxu0 0.0
        %2724 = vmatprep.mubr.f32.mxu0 0.0
        %2725 = vmatmul.mubr.f32.gmra.mrb[0].mxu0 %v2654
        %v2726 = vpop.f32.mrb[0].mxu0
        %v2727 = vadd.f32 0.0, %v2726
        %v2728 = vpop.f32.mrb[0].mxu0
        %2729 = vdwg.mxu0
        %v2730 = vsel %vm2562, -1e+09, %v2727
        %v2731 = vsel %vm1184, %v2730, -inf
        %2732 = vmax.xlane.f32.xlu0 %v2731
        %v2733 = vpop.xlane.xlu0 %2732
        %v2734 = vsub.f32 %v2730, %v2733
        %v2735 = vmul.f32 %v2734, 1.442695
        %v2736 = vpow.pop %v2735
        %v2737 = vsel %vm1184, %v2736, 0.0
        %2738 = vadd.xlane.f32.xlu0 %v2737
        %v2739 = vpop.xlane.xlu0 %2738
        %v2740 = vrcp.pop %v2739
        %v2741 = vmul.f32 %v2736, %v2740
        %2744 = vrot.lane.b32.xlu0 %v2470, 96
        %v2745 = vpop.permute.xlu0 %2744
        %2746 = vrot.lane.b32.xlu0 %v2476, 96
        %v2747 = vpop.permute.xlu0 %2746
        %v2751 = vsel %vm1184, %v2741, 0
        %2753 = vmatprep.subr.mxu0 0.0
        %2754 = vmatpush1.msra.mxu0 %v2745
        %2755 = vmatprep.subr.mxu0 0.0
        %2756 = vmatpush1.msra.mxu0 %v2747
        %2757 = vmatprep.subr.mxu0 0.0
        %2758 = vmatpush1.msra.mxu0 0.0
        %2759 = vmatprep.subr.mxu0 0.0
        %2760 = vmatpush1.msra.mxu0 0.0
        %2761 = vmatprep.subr.mxu0 0.0
        %2762 = vmatpush1.msra.mxu0 0.0
        %2763 = vmatprep.subr.mxu0 0.0
        %2764 = vmatpush1.msra.mxu0 0.0
        %2765 = vmatprep.subr.mxu0 0.0
        %2766 = vmatpush1.msra.mxu0 0.0
        %2767 = vmatprep.subr.mxu0 0.0
        %2768 = vmatpush1.msra.mxu0 0.0
        %2769 = vmatprep.subr.mxu0 0.0
        %2770 = vmatpush1.msra.mxu0 0.0
        %2771 = vmatprep.subr.mxu0 0.0
        %2772 = vmatpush1.msra.mxu0 0.0
        %2773 = vmatprep.subr.mxu0 0.0
        %2774 = vmatpush1.msra.mxu0 0.0
        %2775 = vmatprep.subr.mxu0 0.0
        %2776 = vmatpush1.msra.mxu0 0.0
        %2777 = vmatprep.subr.mxu0 0.0
        %2778 = vmatpush1.msra.mxu0 0.0
        %2779 = vmatprep.subr.mxu0 0.0
        %2780 = vmatpush1.msra.mxu0 0.0
        %2781 = vmatprep.subr.mxu0 0.0
        %2782 = vmatpush1.msra.mxu0 0.0
        %2783 = vmatprep.subr.mxu0 0.0
        %2784 = vmatpush1.msra.mxu0 0.0
        %2785 = vmatprep.subr.mxu0 0.0
        %2786 = vmatpush1.msra.mxu0 0.0
        %2787 = vmatprep.subr.mxu0 0.0
        %2788 = vmatpush1.msra.mxu0 0.0
        %2789 = vmatprep.subr.mxu0 0.0
        %2790 = vmatpush1.msra.mxu0 0.0
        %2791 = vmatprep.subr.mxu0 0.0
        %2792 = vmatpush1.msra.mxu0 0.0
        %2793 = vmatprep.subr.mxu0 0.0
        %2794 = vmatpush1.msra.mxu0 0.0
        %2795 = vmatprep.subr.mxu0 0.0
        %2796 = vmatpush1.msra.mxu0 0.0
        %2797 = vmatprep.subr.mxu0 0.0
        %2798 = vmatpush1.msra.mxu0 0.0
        %2799 = vmatprep.subr.mxu0 0.0
        %2800 = vmatpush1.msra.mxu0 0.0
        %2801 = vmatprep.subr.mxu0 0.0
        %2802 = vmatpush1.msra.mxu0 0.0
        %2803 = vmatprep.subr.mxu0 0.0
        %2804 = vmatpush1.msra.mxu0 0.0
        %2805 = vmatprep.subr.mxu0 0.0
        %2806 = vmatpush1.msra.mxu0 0.0
        %2807 = vmatprep.subr.mxu0 0.0
        %2808 = vmatpush1.msra.mxu0 0.0
        %2809 = vmatprep.subr.mxu0 0.0
        %2810 = vmatpush1.msra.mxu0 0.0
        %2811 = vmatprep.subr.mxu0 0.0
        %2812 = vmatpush1.msra.mxu0 0.0
        %2813 = vmatprep.subr.mxu0 0.0
        %2814 = vmatpush1.msra.mxu0 0.0
        %2815 = vmatprep.subr.mxu0 0.0
        %2816 = vmatpush1.msra.mxu0 0.0
        %2817 = vmatprep.mubr.f32.mxu0 0.0
        %2818 = vmatmul.mubr.f32.gmra.mrb[0].mxu0 %v2751
        %v2819 = vpop.f32.mrb[0].mxu0
        %v2820 = vadd.f32 0.0, %v2819
        %v2821 = vpop.f32.mrb[0].mxu0
        %2822 = vdwg.mxu0
        %2823 = vrot.lane.b32.xlu0 %v2386, 64
        %v2824 = vpop.permute.xlu0 %2823
        %2825 = vrot.lane.b32.xlu0 %v2468, 64
        %v2826 = vpop.permute.xlu0 %2825
        %2827 = vrot.lane.b32.xlu0 %v2474, 64
        %v2828 = vpop.permute.xlu0 %2827
        %v2829 = vsel %vm926, %v2824, 0
        %v2831 = vsel %vm926, %v2826, 0
        %v2833 = vsel %vm926, %v2828, 0
        %2835 = vmatprep.subr.mxu0 0.0
        %2836 = vmatpush1.xpose.msra.mxu0 %v2831
        %2837 = vmatprep.subr.mxu0 0.0
        %2838 = vmatpush1.xpose.msra.mxu0 %v2833
        %2839 = vmatprep.subr.mxu0 0.0
        %2840 = vmatpush1.xpose.msra.mxu0 0.0
        %2841 = vmatprep.subr.mxu0 0.0
        %2842 = vmatpush1.xpose.msra.mxu0 0.0
        %2843 = vmatprep.subr.mxu0 0.0
        %2844 = vmatpush1.xpose.msra.mxu0 0.0
        %2845 = vmatprep.subr.mxu0 0.0
        %2846 = vmatpush1.xpose.msra.mxu0 0.0
        %2847 = vmatprep.subr.mxu0 0.0
        %2848 = vmatpush1.xpose.msra.mxu0 0.0
        %2849 = vmatprep.subr.mxu0 0.0
        %2850 = vmatpush1.xpose.msra.mxu0 0.0
        %2851 = vmatprep.subr.mxu0 0.0
        %2852 = vmatpush1.xpose.msra.mxu0 0.0
        %2853 = vmatprep.subr.mxu0 0.0
        %2854 = vmatpush1.xpose.msra.mxu0 0.0
        %2855 = vmatprep.subr.mxu0 0.0
        %2856 = vmatpush1.xpose.msra.mxu0 0.0
        %2857 = vmatprep.subr.mxu0 0.0
        %2858 = vmatpush1.xpose.msra.mxu0 0.0
        %2859 = vmatprep.subr.mxu0 0.0
        %2860 = vmatpush1.xpose.msra.mxu0 0.0
        %2861 = vmatprep.subr.mxu0 0.0
        %2862 = vmatpush1.xpose.msra.mxu0 0.0
        %2863 = vmatprep.subr.mxu0 0.0
        %2864 = vmatpush1.xpose.msra.mxu0 0.0
        %2865 = vmatprep.subr.mxu0 0.0
        %2866 = vmatpush1.xpose.msra.mxu0 0.0
        %2867 = vmatprep.subr.mxu0 0.0
        %2868 = vmatpush1.xpose.msra.mxu0 0.0
        %2869 = vmatprep.subr.mxu0 0.0
        %2870 = vmatpush1.xpose.msra.mxu0 0.0
        %2871 = vmatprep.subr.mxu0 0.0
        %2872 = vmatpush1.xpose.msra.mxu0 0.0
        %2873 = vmatprep.subr.mxu0 0.0
        %2874 = vmatpush1.xpose.msra.mxu0 0.0
        %2875 = vmatprep.subr.mxu0 0.0
        %2876 = vmatpush1.xpose.msra.mxu0 0.0
        %2877 = vmatprep.subr.mxu0 0.0
        %2878 = vmatpush1.xpose.msra.mxu0 0.0
        %2879 = vmatprep.subr.mxu0 0.0
        %2880 = vmatpush1.xpose.msra.mxu0 0.0
        %2881 = vmatprep.subr.mxu0 0.0
        %2882 = vmatpush1.xpose.msra.mxu0 0.0
        %2883 = vmatprep.subr.mxu0 0.0
        %2884 = vmatpush1.xpose.msra.mxu0 0.0
        %2885 = vmatprep.subr.mxu0 0.0
        %2886 = vmatpush1.xpose.msra.mxu0 0.0
        %2887 = vmatprep.subr.mxu0 0.0
        %2888 = vmatpush1.xpose.msra.mxu0 0.0
        %2889 = vmatprep.subr.mxu0 0.0
        %2890 = vmatpush1.xpose.msra.mxu0 0.0
        %2891 = vmatprep.subr.mxu0 0.0
        %2892 = vmatpush1.xpose.msra.mxu0 0.0
        %2893 = vmatprep.subr.mxu0 0.0
        %2894 = vmatpush1.xpose.msra.mxu0 0.0
        %2895 = vmatprep.subr.mxu0 0.0
        %2896 = vmatpush1.xpose.msra.mxu0 0.0
        %2897 = vmatprep.subr.mxu0 0.0
        %2898 = vmatpush1.xpose.msra.mxu0 0.0
        %2899 = vmatprep.mubr.f32.mxu0 0.0
        %2900 = vmatmul.mubr.f32.gmra.mrb[0].mxu0 %v2829
        %v2901 = vpop.f32.mrb[0].mxu0
        %v2902 = vadd.f32 0.0, %v2901
        %v2903 = vpop.f32.mrb[0].mxu0
        %2904 = vdwg.mxu0
        %v2905 = vsel %vm2562, -1e+09, %v2902
        %v2906 = vsel %vm1184, %v2905, -inf
        %2907 = vmax.xlane.f32.xlu0 %v2906
        %v2908 = vpop.xlane.xlu0 %2907
        %v2909 = vsub.f32 %v2905, %v2908
        %v2910 = vmul.f32 %v2909, 1.442695
        %v2911 = vpow.pop %v2910
        %v2912 = vsel %vm1184, %v2911, 0.0
        %2913 = vadd.xlane.f32.xlu0 %v2912
        %v2914 = vpop.xlane.xlu0 %2913
        %v2915 = vrcp.pop %v2914
        %v2916 = vmul.f32 %v2911, %v2915
        %2917 = vrot.lane.b32.xlu0 %v2470, 64
        %v2918 = vpop.permute.xlu0 %2917
        %2919 = vrot.lane.b32.xlu0 %v2476, 64
        %v2920 = vpop.permute.xlu0 %2919
        %v2924 = vsel %vm1184, %v2916, 0
        %2926 = vmatprep.subr.mxu0 0.0
        %2927 = vmatpush1.msra.mxu0 %v2918
        %2928 = vmatprep.subr.mxu0 0.0
        %2929 = vmatpush1.msra.mxu0 %v2920
        %2930 = vmatprep.subr.mxu0 0.0
        %2931 = vmatpush1.msra.mxu0 0.0
        %2932 = vmatprep.subr.mxu0 0.0
        %2933 = vmatpush1.msra.mxu0 0.0
        %2934 = vmatprep.subr.mxu0 0.0
        %2935 = vmatpush1.msra.mxu0 0.0
        %2936 = vmatprep.subr.mxu0 0.0
        %2937 = vmatpush1.msra.mxu0 0.0
        %2938 = vmatprep.subr.mxu0 0.0
        %2939 = vmatpush1.msra.mxu0 0.0
        %2940 = vmatprep.subr.mxu0 0.0
        %2941 = vmatpush1.msra.mxu0 0.0
        %2942 = vmatprep.subr.mxu0 0.0
        %2943 = vmatpush1.msra.mxu0 0.0
        %2944 = vmatprep.subr.mxu0 0.0
        %2945 = vmatpush1.msra.mxu0 0.0
        %2946 = vmatprep.subr.mxu0 0.0
        %2947 = vmatpush1.msra.mxu0 0.0
        %2948 = vmatprep.subr.mxu0 0.0
        %2949 = vmatpush1.msra.mxu0 0.0
        %2950 = vmatprep.subr.mxu0 0.0
        %2951 = vmatpush1.msra.mxu0 0.0
        %2952 = vmatprep.subr.mxu0 0.0
        %2953 = vmatpush1.msra.mxu0 0.0
        %2954 = vmatprep.subr.mxu0 0.0
        %2955 = vmatpush1.msra.mxu0 0.0
        %2956 = vmatprep.subr.mxu0 0.0
        %2957 = vmatpush1.msra.mxu0 0.0
        %2958 = vmatprep.subr.mxu0 0.0
        %2959 = vmatpush1.msra.mxu0 0.0
        %2960 = vmatprep.subr.mxu0 0.0
        %2961 = vmatpush1.msra.mxu0 0.0
        %2962 = vmatprep.subr.mxu0 0.0
        %2963 = vmatpush1.msra.mxu0 0.0
        %2964 = vmatprep.subr.mxu0 0.0
        %2965 = vmatpush1.msra.mxu0 0.0
        %2966 = vmatprep.subr.mxu0 0.0
        %2967 = vmatpush1.msra.mxu0 0.0
        %2968 = vmatprep.subr.mxu0 0.0
        %2969 = vmatpush1.msra.mxu0 0.0
        %2970 = vmatprep.subr.mxu0 0.0
        %2971 = vmatpush1.msra.mxu0 0.0
        %2972 = vmatprep.subr.mxu0 0.0
        %2973 = vmatpush1.msra.mxu0 0.0
        %2974 = vmatprep.subr.mxu0 0.0
        %2975 = vmatpush1.msra.mxu0 0.0
        %2976 = vmatprep.subr.mxu0 0.0
        %2977 = vmatpush1.msra.mxu0 0.0
        %2978 = vmatprep.subr.mxu0 0.0
        %2979 = vmatpush1.msra.mxu0 0.0
        %2980 = vmatprep.subr.mxu0 0.0
        %2981 = vmatpush1.msra.mxu0 0.0
        %2982 = vmatprep.subr.mxu0 0.0
        %2983 = vmatpush1.msra.mxu0 0.0
        %2984 = vmatprep.subr.mxu0 0.0
        %2985 = vmatpush1.msra.mxu0 0.0
        %2986 = vmatprep.subr.mxu0 0.0
        %2987 = vmatpush1.msra.mxu0 0.0
        %2988 = vmatprep.subr.mxu0 0.0
        %2989 = vmatpush1.msra.mxu0 0.0
        %2990 = vmatprep.mubr.f32.mxu0 0.0
        %2991 = vmatmul.mubr.f32.gmra.mrb[0].mxu0 %v2924
        %v2992 = vpop.f32.mrb[0].mxu0
        %v2993 = vadd.f32 0.0, %v2992
        %v2994 = vpop.f32.mrb[0].mxu0
        %2995 = vdwg.mxu0
        %2996 = vrot.lane.b32.xlu0 %v2386, 32
        %v2997 = vpop.permute.xlu0 %2996
        %2998 = vrot.lane.b32.xlu0 %v2468, 32
        %v2999 = vpop.permute.xlu0 %2998
        %3000 = vrot.lane.b32.xlu0 %v2474, 32
        %v3001 = vpop.permute.xlu0 %3000
        %v3002 = vsel %vm926, %v2997, 0
        %v3004 = vsel %vm926, %v2999, 0
        %v3006 = vsel %vm926, %v3001, 0
        %3008 = vmatprep.subr.mxu0 0.0
        %3009 = vmatpush1.xpose.msra.mxu0 %v3004
        %3010 = vmatprep.subr.mxu0 0.0
        %3011 = vmatpush1.xpose.msra.mxu0 %v3006
        %3012 = vmatprep.subr.mxu0 0.0
        %3013 = vmatpush1.xpose.msra.mxu0 0.0
        %3014 = vmatprep.subr.mxu0 0.0
        %3015 = vmatpush1.xpose.msra.mxu0 0.0
        %3016 = vmatprep.subr.mxu0 0.0
        %3017 = vmatpush1.xpose.msra.mxu0 0.0
        %3018 = vmatprep.subr.mxu0 0.0
        %3019 = vmatpush1.xpose.msra.mxu0 0.0
        %3020 = vmatprep.subr.mxu0 0.0
        %3021 = vmatpush1.xpose.msra.mxu0 0.0
        %3022 = vmatprep.subr.mxu0 0.0
        %3023 = vmatpush1.xpose.msra.mxu0 0.0
        %3024 = vmatprep.subr.mxu0 0.0
        %3025 = vmatpush1.xpose.msra.mxu0 0.0
        %3026 = vmatprep.subr.mxu0 0.0
        %3027 = vmatpush1.xpose.msra.mxu0 0.0
        %3028 = vmatprep.subr.mxu0 0.0
        %3029 = vmatpush1.xpose.msra.mxu0 0.0
        %3030 = vmatprep.subr.mxu0 0.0
        %3031 = vmatpush1.xpose.msra.mxu0 0.0
        %3032 = vmatprep.subr.mxu0 0.0
        %3033 = vmatpush1.xpose.msra.mxu0 0.0
        %3034 = vmatprep.subr.mxu0 0.0
        %3035 = vmatpush1.xpose.msra.mxu0 0.0
        %3036 = vmatprep.subr.mxu0 0.0
        %3037 = vmatpush1.xpose.msra.mxu0 0.0
        %3038 = vmatprep.subr.mxu0 0.0
        %3039 = vmatpush1.xpose.msra.mxu0 0.0
        %3040 = vmatprep.subr.mxu0 0.0
        %3041 = vmatpush1.xpose.msra.mxu0 0.0
        %3042 = vmatprep.subr.mxu0 0.0
        %3043 = vmatpush1.xpose.msra.mxu0 0.0
        %3044 = vmatprep.subr.mxu0 0.0
        %3045 = vmatpush1.xpose.msra.mxu0 0.0
        %3046 = vmatprep.subr.mxu0 0.0
        %3047 = vmatpush1.xpose.msra.mxu0 0.0
        %3048 = vmatprep.subr.mxu0 0.0
        %3049 = vmatpush1.xpose.msra.mxu0 0.0
        %3050 = vmatprep.subr.mxu0 0.0
        %3051 = vmatpush1.xpose.msra.mxu0 0.0
        %3052 = vmatprep.subr.mxu0 0.0
        %3053 = vmatpush1.xpose.msra.mxu0 0.0
        %3054 = vmatprep.subr.mxu0 0.0
        %3055 = vmatpush1.xpose.msra.mxu0 0.0
        %3056 = vmatprep.subr.mxu0 0.0
        %3057 = vmatpush1.xpose.msra.mxu0 0.0
        %3058 = vmatprep.subr.mxu0 0.0
        %3059 = vmatpush1.xpose.msra.mxu0 0.0
        %3060 = vmatprep.subr.mxu0 0.0
        %3061 = vmatpush1.xpose.msra.mxu0 0.0
        %3062 = vmatprep.subr.mxu0 0.0
        %3063 = vmatpush1.xpose.msra.mxu0 0.0
        %3064 = vmatprep.subr.mxu0 0.0
        %3065 = vmatpush1.xpose.msra.mxu0 0.0
        %3066 = vmatprep.subr.mxu0 0.0
        %3067 = vmatpush1.xpose.msra.mxu0 0.0
        %3068 = vmatprep.subr.mxu0 0.0
        %3069 = vmatpush1.xpose.msra.mxu0 0.0
        %3070 = vmatprep.subr.mxu0 0.0
        %3071 = vmatpush1.xpose.msra.mxu0 0.0
        %3072 = vmatprep.mubr.f32.mxu0 0.0
        %3073 = vmatmul.mubr.f32.gmra.mrb[0].mxu0 %v3002
        %v3074 = vpop.f32.mrb[0].mxu0
        %v3075 = vadd.f32 0.0, %v3074
        %v3076 = vpop.f32.mrb[0].mxu0
        %3077 = vdwg.mxu0
        %v3078 = vsel %vm2562, -1e+09, %v3075
        %v3079 = vsel %vm1184, %v3078, -inf
        %3080 = vmax.xlane.f32.xlu0 %v3079
        %v3081 = vpop.xlane.xlu0 %3080
        %v3082 = vsub.f32 %v3078, %v3081
        %v3083 = vmul.f32 %v3082, 1.442695
        %v3084 = vpow.pop %v3083
        %v3085 = vsel %vm1184, %v3084, 0.0
        %3086 = vadd.xlane.f32.xlu0 %v3085
        %v3087 = vpop.xlane.xlu0 %3086
        %v3088 = vrcp.pop %v3087
        %v3089 = vmul.f32 %v3084, %v3088
        %3090 = vrot.lane.b32.xlu0 %v2470, 32
        %v3091 = vpop.permute.xlu0 %3090
        %3092 = vrot.lane.b32.xlu0 %v2476, 32
        %v3093 = vpop.permute.xlu0 %3092
        %v3097 = vsel %vm1184, %v3089, 0
        %3099 = vmatprep.subr.mxu0 0.0
        %3100 = vmatpush1.msra.mxu0 %v3091
        %3101 = vmatprep.subr.mxu0 0.0
        %3102 = vmatpush1.msra.mxu0 %v3093
        %3103 = vmatprep.subr.mxu0 0.0
        %3104 = vmatpush1.msra.mxu0 0.0
        %3105 = vmatprep.subr.mxu0 0.0
        %3106 = vmatpush1.msra.mxu0 0.0
        %3107 = vmatprep.subr.mxu0 0.0
        %3108 = vmatpush1.msra.mxu0 0.0
        %3109 = vmatprep.subr.mxu0 0.0
        %3110 = vmatpush1.msra.mxu0 0.0
        %3111 = vmatprep.subr.mxu0 0.0
        %3112 = vmatpush1.msra.mxu0 0.0
        %3113 = vmatprep.subr.mxu0 0.0
        %3114 = vmatpush1.msra.mxu0 0.0
        %3115 = vmatprep.subr.mxu0 0.0
        %3116 = vmatpush1.msra.mxu0 0.0
        %3117 = vmatprep.subr.mxu0 0.0
        %3118 = vmatpush1.msra.mxu0 0.0
        %3119 = vmatprep.subr.mxu0 0.0
        %3120 = vmatpush1.msra.mxu0 0.0
        %3121 = vmatprep.subr.mxu0 0.0
        %3122 = vmatpush1.msra.mxu0 0.0
        %3123 = vmatprep.subr.mxu0 0.0
        %3124 = vmatpush1.msra.mxu0 0.0
        %3125 = vmatprep.subr.mxu0 0.0
        %3126 = vmatpush1.msra.mxu0 0.0
        %3127 = vmatprep.subr.mxu0 0.0
        %3128 = vmatpush1.msra.mxu0 0.0
        %3129 = vmatprep.subr.mxu0 0.0
        %3130 = vmatpush1.msra.mxu0 0.0
        %3131 = vmatprep.subr.mxu0 0.0
        %3132 = vmatpush1.msra.mxu0 0.0
        %3133 = vmatprep.subr.mxu0 0.0
        %3134 = vmatpush1.msra.mxu0 0.0
        %3135 = vmatprep.subr.mxu0 0.0
        %3136 = vmatpush1.msra.mxu0 0.0
        %3137 = vmatprep.subr.mxu0 0.0
        %3138 = vmatpush1.msra.mxu0 0.0
        %3139 = vmatprep.subr.mxu0 0.0
        %3140 = vmatpush1.msra.mxu0 0.0
        %3141 = vmatprep.subr.mxu0 0.0
        %3142 = vmatpush1.msra.mxu0 0.0
        %3143 = vmatprep.subr.mxu0 0.0
        %3144 = vmatpush1.msra.mxu0 0.0
        %3145 = vmatprep.subr.mxu0 0.0
        %3146 = vmatpush1.msra.mxu0 0.0
        %3147 = vmatprep.subr.mxu0 0.0
        %3148 = vmatpush1.msra.mxu0 0.0
        %3149 = vmatprep.subr.mxu0 0.0
        %3150 = vmatpush1.msra.mxu0 0.0
        %3151 = vmatprep.subr.mxu0 0.0
        %3152 = vmatpush1.msra.mxu0 0.0
        %3153 = vmatprep.subr.mxu0 0.0
        %3154 = vmatpush1.msra.mxu0 0.0
        %3155 = vmatprep.subr.mxu0 0.0
        %3156 = vmatpush1.msra.mxu0 0.0
        %3157 = vmatprep.subr.mxu0 0.0
        %3158 = vmatpush1.msra.mxu0 0.0
        %3159 = vmatprep.subr.mxu0 0.0
        %3160 = vmatpush1.msra.mxu0 0.0
        %3161 = vmatprep.subr.mxu0 0.0
        %3162 = vmatpush1.msra.mxu0 0.0
        %3163 = vmatprep.mubr.f32.mxu0 0.0
        %3164 = vmatmul.mubr.f32.gmra.mrb[0].mxu0 %v3097
        %v3165 = vpop.f32.mrb[0].mxu0
        %v3166 = vadd.f32 0.0, %v3165
        %v3167 = vpop.f32.mrb[0].mxu0
        %3168 = vdwg.mxu0
        %3170 = vrot.lane.b32.xlu0 %v2820, 32
        %v3171 = vpop.permute.xlu0 %3170
        %3174 = vrot.lane.b32.xlu0 %v2993, 64
        %v3175 = vpop.permute.xlu0 %3174
        %3178 = vrot.lane.b32.xlu0 %v3166, 96
        %v3179 = vpop.permute.xlu0 %3178
        %v3181 = vsel %vm926, %v2645, %v3171
        %v3182 = vsel %vm1922, %v3181, %v3175
        %v3183 = vsel %vm1925, %v3182, %v3179
        %v3184 = vld [vmem:[%s18] sm:$0xff]
        %v3185 = vld [vmem:[%s18 + $0x8] sm:$0xff]
        %v3186 = vld [vmem:[%s18 + $0x10] sm:$0xff]
        %v3187 = vld [vmem:[%s18 + $0x18] sm:$0xff]
        %v3188 = vld [vmem:[%s18 + $0x20] sm:$0xff]
        %v3189 = vld [vmem:[%s18 + $0x28] sm:$0xff]
        %v3190 = vld [vmem:[%s18 + $0x30] sm:$0xff]
        %v3191 = vld [vmem:[%s18 + $0x38] sm:$0xff]
        %v3192 = vld [vmem:[%s18 + $0x40] sm:$0xff]
        %v3193 = vld [vmem:[%s18 + $0x48] sm:$0xff]
        %v3194 = vld [vmem:[%s18 + $0x50] sm:$0xff]
        %v3195 = vld [vmem:[%s18 + $0x58] sm:$0xff]
        %v3196 = vld [vmem:[%s18 + $0x60] sm:$0xff]
        %v3197 = vld [vmem:[%s18 + $0x68] sm:$0xff]
        %v3198 = vld [vmem:[%s18 + $0x70] sm:$0xff]
        %v3199 = vld [vmem:[%s18 + $0x78] sm:$0xff]
        %v3200 = vld [vmem:[%s19] sm:$0x1]
        %v3202 = vlaneseq
        %v3203 = vshrl.u32 %v3202, 7
        %v3204 = vsub.s32 0, %v3203
        %v3205 = vrot.slane %v3200, %v3204
        %3207 = vmatprep.subr.mxu0 0.0
        %3208 = vmatpush1.msra.mxu0 %v3184
        %3209 = vmatprep.subr.mxu0 0.0
        %3210 = vmatpush1.msra.mxu0 %v3185
        %3211 = vmatprep.subr.mxu0 0.0
        %3212 = vmatpush1.msra.mxu0 %v3186
        %3213 = vmatprep.subr.mxu0 0.0
        %3214 = vmatpush1.msra.mxu0 %v3187
        %3215 = vmatprep.subr.mxu0 0.0
        %3216 = vmatpush1.msra.mxu0 %v3188
        %3217 = vmatprep.subr.mxu0 0.0
        %3218 = vmatpush1.msra.mxu0 %v3189
        %3219 = vmatprep.subr.mxu0 0.0
        %3220 = vmatpush1.msra.mxu0 %v3190
        %3221 = vmatprep.subr.mxu0 0.0
        %3222 = vmatpush1.msra.mxu0 %v3191
        %3223 = vmatprep.subr.mxu0 0.0
        %3224 = vmatpush1.msra.mxu0 %v3192
        %3225 = vmatprep.subr.mxu0 0.0
        %3226 = vmatpush1.msra.mxu0 %v3193
        %3227 = vmatprep.subr.mxu0 0.0
        %3228 = vmatpush1.msra.mxu0 %v3194
        %3229 = vmatprep.subr.mxu0 0.0
        %3230 = vmatpush1.msra.mxu0 %v3195
        %3231 = vmatprep.subr.mxu0 0.0
        %3232 = vmatpush1.msra.mxu0 %v3196
        %3233 = vmatprep.subr.mxu0 0.0
        %3234 = vmatpush1.msra.mxu0 %v3197
        %3235 = vmatprep.subr.mxu0 0.0
        %3236 = vmatpush1.msra.mxu0 %v3198
        %3237 = vmatprep.subr.mxu0 0.0
        %3238 = vmatpush1.msra.mxu0 %v3199
        %3239 = vmatprep.subr.mxu0 0.0
        %3240 = vmatpush1.msra.mxu0 0.0
        %3241 = vmatprep.subr.mxu0 0.0
        %3242 = vmatpush1.msra.mxu0 0.0
        %3243 = vmatprep.subr.mxu0 0.0
        %3244 = vmatpush1.msra.mxu0 0.0
        %3245 = vmatprep.subr.mxu0 0.0
        %3246 = vmatpush1.msra.mxu0 0.0
        %3247 = vmatprep.subr.mxu0 0.0
        %3248 = vmatpush1.msra.mxu0 0.0
        %3249 = vmatprep.subr.mxu0 0.0
        %3250 = vmatpush1.msra.mxu0 0.0
        %3251 = vmatprep.subr.mxu0 0.0
        %3252 = vmatpush1.msra.mxu0 0.0
        %3253 = vmatprep.subr.mxu0 0.0
        %3254 = vmatpush1.msra.mxu0 0.0
        %3255 = vmatprep.subr.mxu0 0.0
        %3256 = vmatpush1.msra.mxu0 0.0
        %3257 = vmatprep.subr.mxu0 0.0
        %3258 = vmatpush1.msra.mxu0 0.0
        %3259 = vmatprep.subr.mxu0 0.0
        %3260 = vmatpush1.msra.mxu0 0.0
        %3261 = vmatprep.subr.mxu0 0.0
        %3262 = vmatpush1.msra.mxu0 0.0
        %3263 = vmatprep.subr.mxu0 0.0
        %3264 = vmatpush1.msra.mxu0 0.0
        %3265 = vmatprep.subr.mxu0 0.0
        %3266 = vmatpush1.msra.mxu0 0.0
        %3267 = vmatprep.subr.mxu0 0.0
        %3268 = vmatpush1.msra.mxu0 0.0
        %3269 = vmatprep.subr.mxu0 0.0
        %3270 = vmatpush1.msra.mxu0 0.0
        %3271 = vmatprep.mubr.f32.mxu0 0.0
        %3272 = vmatmul.mubr.f32.gmra.mrb[0].mxu0 %v3183
        %v3273 = vpop.f32.mrb[0].mxu0
        %v3274 = vadd.f32 %v3205, %v3273
        %v3275 = vpop.f32.mrb[0].mxu0
        %3276 = vdwg.mxu0
        %v3277 = vadd.f32 %v897, %v3274
        %v3278 = vsel %vm926, %v3277, 0.0
        %3279 = vadd.xlane.f32.xlu0 %v3278
        %v3280 = vpop.xlane.xlu0 %3279
        %v3281 = vmul.f32 %v3280, %v2034
        %v3282 = vsub.f32 %v3277, %v3281
        %v3283 = vmul.f32 %v3282, %v3282
        %v3284 = vsel %vm926, %v3283, 0.0
        %3285 = vadd.xlane.f32.xlu0 %v3284
        %v3286 = vpop.xlane.xlu0 %3285
        %v3287 = vmul.f32 %v3286, %v2034
        %v3288 = vadd.f32 %v3287, 1e-05
        %v3289 = vrsqrt.pop %v3288
        %v3290 = vmul.f32 %v3282, %v3289
        %v3291 = vld [vmem:[%s20] sm:$0x1]
        %v3293 = vlaneseq
        %v3294 = vshrl.u32 %v3293, 7
        %v3295 = vsub.s32 0, %v3294
        %v3296 = vrot.slane %v3291, %v3295
        %v3298 = vmul.f32 %v3290, %v3296
        %v3299 = vld [vmem:[%s21] sm:$0x1]
        %v3301 = vlaneseq
        %v3302 = vshrl.u32 %v3301, 7
        %v3303 = vsub.s32 0, %v3302
        %v3304 = vrot.slane %v3299, %v3303
        %v3306 = vadd.f32 %v3298, %v3304
        %v3307 = vld [vmem:[%s22] sm:$0xff]
        %v3308 = vld [vmem:[%s22 + $0x8] sm:$0xff]
        %v3309 = vld [vmem:[%s22 + $0x10] sm:$0xff]
        %v3310 = vld [vmem:[%s22 + $0x18] sm:$0xff]
        %v3311 = vld [vmem:[%s23] sm:$0x1]
        %v3313 = vlaneseq
        %v3314 = vshrl.u32 %v3313, 7
        %v3315 = vsub.s32 0, %v3314
        %v3316 = vrot.slane %v3311, %v3315
        %v3319 = vsel %vm926, %v3306, 0
        %3321 = vmatprep.subr.mxu0 0.0
        %3322 = vmatpush1.msra.mxu0 %v3307
        %3323 = vmatprep.subr.mxu0 0.0
        %3324 = vmatpush1.msra.mxu0 %v3308
        %3325 = vmatprep.subr.mxu0 0.0
        %3326 = vmatpush1.msra.mxu0 %v3309
        %3327 = vmatprep.subr.mxu0 0.0
        %3328 = vmatpush1.msra.mxu0 %v3310
        %3329 = vmatprep.subr.mxu0 0.0
        %3330 = vmatpush1.msra.mxu0 0.0
        %3331 = vmatprep.subr.mxu0 0.0
        %3332 = vmatpush1.msra.mxu0 0.0
        %3333 = vmatprep.subr.mxu0 0.0
        %3334 = vmatpush1.msra.mxu0 0.0
        %3335 = vmatprep.subr.mxu0 0.0
        %3336 = vmatpush1.msra.mxu0 0.0
        %3337 = vmatprep.subr.mxu0 0.0
        %3338 = vmatpush1.msra.mxu0 0.0
        %3339 = vmatprep.subr.mxu0 0.0
        %3340 = vmatpush1.msra.mxu0 0.0
        %3341 = vmatprep.subr.mxu0 0.0
        %3342 = vmatpush1.msra.mxu0 0.0
        %3343 = vmatprep.subr.mxu0 0.0
        %3344 = vmatpush1.msra.mxu0 0.0
        %3345 = vmatprep.subr.mxu0 0.0
        %3346 = vmatpush1.msra.mxu0 0.0
        %3347 = vmatprep.subr.mxu0 0.0
        %3348 = vmatpush1.msra.mxu0 0.0
        %3349 = vmatprep.subr.mxu0 0.0
        %3350 = vmatpush1.msra.mxu0 0.0
        %3351 = vmatprep.subr.mxu0 0.0
        %3352 = vmatpush1.msra.mxu0 0.0
        %3353 = vmatprep.subr.mxu0 0.0
        %3354 = vmatpush1.msra.mxu0 0.0
        %3355 = vmatprep.subr.mxu0 0.0
        %3356 = vmatpush1.msra.mxu0 0.0
        %3357 = vmatprep.subr.mxu0 0.0
        %3358 = vmatpush1.msra.mxu0 0.0
        %3359 = vmatprep.subr.mxu0 0.0
        %3360 = vmatpush1.msra.mxu0 0.0
        %3361 = vmatprep.subr.mxu0 0.0
        %3362 = vmatpush1.msra.mxu0 0.0
        %3363 = vmatprep.subr.mxu0 0.0
        %3364 = vmatpush1.msra.mxu0 0.0
        %3365 = vmatprep.subr.mxu0 0.0
        %3366 = vmatpush1.msra.mxu0 0.0
        %3367 = vmatprep.subr.mxu0 0.0
        %3368 = vmatpush1.msra.mxu0 0.0
        %3369 = vmatprep.subr.mxu0 0.0
        %3370 = vmatpush1.msra.mxu0 0.0
        %3371 = vmatprep.subr.mxu0 0.0
        %3372 = vmatpush1.msra.mxu0 0.0
        %3373 = vmatprep.subr.mxu0 0.0
        %3374 = vmatpush1.msra.mxu0 0.0
        %3375 = vmatprep.subr.mxu0 0.0
        %3376 = vmatpush1.msra.mxu0 0.0
        %3377 = vmatprep.subr.mxu0 0.0
        %3378 = vmatpush1.msra.mxu0 0.0
        %3379 = vmatprep.subr.mxu0 0.0
        %3380 = vmatpush1.msra.mxu0 0.0
        %3381 = vmatprep.subr.mxu0 0.0
        %3382 = vmatpush1.msra.mxu0 0.0
        %3383 = vmatprep.subr.mxu0 0.0
        %3384 = vmatpush1.msra.mxu0 0.0
        %3385 = vmatprep.mubr.f32.mxu0 0.0
        %3386 = vmatmul.mubr.f32.gmra.mrb[0].mxu0 %v3319
        %v3387 = vpop.f32.mrb[0].mxu0
        %v3388 = vadd.f32 %v3316, %v3387
        %v3389 = vpop.f32.mrb[0].mxu0
        %3390 = vdwg.mxu0
        %v3391 = vmax.f32 %v3388, 0.0
        %v3392 = vld [vmem:[%s24] sm:$0xff]
        %v3393 = vld [vmem:[%s24 + $0x8] sm:$0xff]
        %v3394 = vld [vmem:[%s24 + $0x10] sm:$0xff]
        %v3395 = vld [vmem:[%s24 + $0x18] sm:$0xff]
        %v3396 = vld [vmem:[%s24 + $0x20] sm:$0xff]
        %v3397 = vld [vmem:[%s24 + $0x28] sm:$0xff]
        %v3398 = vld [vmem:[%s24 + $0x30] sm:$0xff]
        %v3399 = vld [vmem:[%s24 + $0x38] sm:$0xff]
        %v3400 = vld [vmem:[%s25] sm:$0x1]
        %v3402 = vlaneseq
        %v3403 = vshrl.u32 %v3402, 7
        %v3404 = vsub.s32 0, %v3403
        %v3405 = vrot.slane %v3400, %v3404
        %v3408 = vsel %vm1922, %v3391, 0
        %3410 = vmatprep.subr.mxu0 0.0
        %3411 = vmatpush1.msra.mxu0 %v3392
        %3412 = vmatprep.subr.mxu0 0.0
        %3413 = vmatpush1.msra.mxu0 %v3393
        %3414 = vmatprep.subr.mxu0 0.0
        %3415 = vmatpush1.msra.mxu0 %v3394
        %3416 = vmatprep.subr.mxu0 0.0
        %3417 = vmatpush1.msra.mxu0 %v3395
        %3418 = vmatprep.subr.mxu0 0.0
        %3419 = vmatpush1.msra.mxu0 %v3396
        %3420 = vmatprep.subr.mxu0 0.0
        %3421 = vmatpush1.msra.mxu0 %v3397
        %3422 = vmatprep.subr.mxu0 0.0
        %3423 = vmatpush1.msra.mxu0 %v3398
        %3424 = vmatprep.subr.mxu0 0.0
        %3425 = vmatpush1.msra.mxu0 %v3399
        %3426 = vmatprep.subr.mxu0 0.0
        %3427 = vmatpush1.msra.mxu0 0.0
        %3428 = vmatprep.subr.mxu0 0.0
        %3429 = vmatpush1.msra.mxu0 0.0
        %3430 = vmatprep.subr.mxu0 0.0
        %3431 = vmatpush1.msra.mxu0 0.0
        %3432 = vmatprep.subr.mxu0 0.0
        %3433 = vmatpush1.msra.mxu0 0.0
        %3434 = vmatprep.subr.mxu0 0.0
        %3435 = vmatpush1.msra.mxu0 0.0
        %3436 = vmatprep.subr.mxu0 0.0
        %3437 = vmatpush1.msra.mxu0 0.0
        %3438 = vmatprep.subr.mxu0 0.0
        %3439 = vmatpush1.msra.mxu0 0.0
        %3440 = vmatprep.subr.mxu0 0.0
        %3441 = vmatpush1.msra.mxu0 0.0
        %3442 = vmatprep.subr.mxu0 0.0
        %3443 = vmatpush1.msra.mxu0 0.0
        %3444 = vmatprep.subr.mxu0 0.0
        %3445 = vmatpush1.msra.mxu0 0.0
        %3446 = vmatprep.subr.mxu0 0.0
        %3447 = vmatpush1.msra.mxu0 0.0
        %3448 = vmatprep.subr.mxu0 0.0
        %3449 = vmatpush1.msra.mxu0 0.0
        %3450 = vmatprep.subr.mxu0 0.0
        %3451 = vmatpush1.msra.mxu0 0.0
        %3452 = vmatprep.subr.mxu0 0.0
        %3453 = vmatpush1.msra.mxu0 0.0
        %3454 = vmatprep.subr.mxu0 0.0
        %3455 = vmatpush1.msra.mxu0 0.0
        %3456 = vmatprep.subr.mxu0 0.0
        %3457 = vmatpush1.msra.mxu0 0.0
        %3458 = vmatprep.subr.mxu0 0.0
        %3459 = vmatpush1.msra.mxu0 0.0
        %3460 = vmatprep.subr.mxu0 0.0
        %3461 = vmatpush1.msra.mxu0 0.0
        %3462 = vmatprep.subr.mxu0 0.0
        %3463 = vmatpush1.msra.mxu0 0.0
        %3464 = vmatprep.subr.mxu0 0.0
        %3465 = vmatpush1.msra.mxu0 0.0
        %3466 = vmatprep.subr.mxu0 0.0
        %3467 = vmatpush1.msra.mxu0 0.0
        %3468 = vmatprep.subr.mxu0 0.0
        %3469 = vmatpush1.msra.mxu0 0.0
        %3470 = vmatprep.subr.mxu0 0.0
        %3471 = vmatpush1.msra.mxu0 0.0
        %3472 = vmatprep.subr.mxu0 0.0
        %3473 = vmatpush1.msra.mxu0 0.0
        %3474 = vmatprep.mubr.f32.mxu0 0.0
        %3475 = vmatmul.mubr.f32.gmra.mrb[0].mxu0 %v3408
        %v3476 = vpop.f32.mrb[0].mxu0
        %v3477 = vadd.f32 %v3405, %v3476
        %v3478 = vpop.f32.mrb[0].mxu0
        %3479 = vdwg.mxu0
        %v3480 = vadd.f32 %v3306, %v3477
        %v3481 = vsel %vm926, %v3480, 0.0
        %3482 = vadd.xlane.f32.xlu0 %v3481
        %v3483 = vpop.xlane.xlu0 %3482
        %v3484 = vmul.f32 %v3483, %v2034
        %v3485 = vsub.f32 %v3480, %v3484
        %v3486 = vmul.f32 %v3485, %v3485
        %v3487 = vsel %vm926, %v3486, 0.0
        %3488 = vadd.xlane.f32.xlu0 %v3487
        %v3489 = vpop.xlane.xlu0 %3488
        %v3490 = vmul.f32 %v3489, %v2034
        %v3491 = vadd.f32 %v3490, 1e-05
        %v3492 = vrsqrt.pop %v3491
        %v3493 = vmul.f32 %v3485, %v3492
        %v3494 = vld [vmem:[%s26] sm:$0x1]
        %v3496 = vlaneseq
        %v3497 = vshrl.u32 %v3496, 7
        %v3498 = vsub.s32 0, %v3497
        %v3499 = vrot.slane %v3494, %v3498
        %v3501 = vmul.f32 %v3493, %v3499
        %v3502 = vld [vmem:[%s27] sm:$0x1]
        %v3504 = vlaneseq
        %v3505 = vshrl.u32 %v3504, 7
        %v3506 = vsub.s32 0, %v3505
        %v3507 = vrot.slane %v3502, %v3506
        %v3509 = vadd.f32 %v3501, %v3507
        %3510 = vst.msk [vmem:[%s877] sm:$0xff] %vm926, %v3509
        %s3511 = sand.u32 %s658, 1
        %s3512 = scalar_lea.sflag [#allocation3], %s3511
        %s3513 = sand.u32 %s658, 1
        %s3514 = smul.addr %s3513, 8
        %s3515 = scalar_lea.vmem [#allocation2], %s3514
        // Predicated region
        $region133: #{tpu_custom_call.1} parent=131 // pred_check
          %p3516 = pneg %p668
        $region134: #{tpu_custom_call.1} parent=131 // pred_check_branch
          %3518 = sbr.rel (%p3516) target = $region136
        $region135: #{tpu_custom_call.1} parent=131 // pred_region
          %s3520 = ssub.s32 128, 128
          %3521 = vsyncadd %s3512, %s3520
          %s3522 = smul.addr %s42, 128
          %s3523 = scalar_lea.hbm %s28, %s3522
          %s3525 = sshll.u32 %s3515, 4
          %s3526 = int_to_ptr.vmem [resolvable:$true] %s3525
          %3528 = dma.vmem_to_hbm [thread:$0]  %s3526, 128, %s3523, %s3512
        $region136: #{tpu_custom_call.1} parent=131 // pred_fallthru
          _
      $region132: #{tpu_custom_call.1} parent=5 // pred_fallthru
        _
      %p3529 = scmp.le.s32.totalorder 2, %s37
      // Predicated region
      $region137: #{tpu_custom_call.1} parent=5 // pred_check
        %p3530 = pneg %p3529
      $region138: #{tpu_custom_call.1} parent=5 // pred_check_branch
        %3532 = sbr.rel (%p3530) target = $region140
      $region139: #{tpu_custom_call.1} parent=5 // pred_region
        %s3533 = ssub.s32 %s37, 2
        // Predicated region
        $region141: #{tpu_custom_call.1} parent=139 // pred_check
          %p3534 = pneg %p674
        $region142: #{tpu_custom_call.1} parent=139 // pred_check_branch
          %3536 = sbr.rel (%p3534) target = $region144
        $region143: #{tpu_custom_call.1} parent=139 // pred_region
          %s3537 = sand.u32 %s659, 1
          %s3538 = scalar_lea.sflag [#allocation3], %s3537
          %s3539 = sand.u32 %s659, 1
          %s3540 = smul.addr %s3539, 8
          %s3541 = scalar_lea.vmem [#allocation2], %s3540
          %3542 = dma.done %s3538, 128
        $region144: #{tpu_custom_call.1} parent=139 // pred_fallthru
          _
      $region140: #{tpu_custom_call.1} parent=5 // pred_fallthru
        _
    $region6: #{tpu_custom_call.1} parent=1 // loop_footer
      %s41 = sadd.s32 1, %s37
    $region7: #{tpu_custom_call.1} parent=1 // loop_footer_branch
      %36 = sbr.rel target = $region3
    $region8: #{tpu_custom_call.1} parent=1 // loop_exit
      _
    %3543 = vsyncpa [#allocation3], 1
    %s3544 = scalar_lea.sflag [#allocation3], 1
    %3545 = vsyncpa %s3544, 1

</llo_original>
